<compile_context>
chip_gen: v7x
topology: tpu7x:2x2x1
jax: 0.10.0
libtpu: 0.0.40
codegen_flags: <defaults>
</compile_context>

<pallas_src>
import functools

import jax
import jax.numpy as jnp
from jax.experimental import pallas as pl
from jax.experimental.pallas import tpu as pltpu


def _conv3dc_kernel(wr_ref, wi_ref, b_ref, prev_ref, cur_ref, next_ref,
                    y_ref, win_ref, *, k0, k1, t_tile, h, w):
    """One T-tile of the complex 'same' 3-D conv.

    wr_ref, wi_ref : (k0*k0*k1,) f32 SMEM, conv weights flattened (di, dj, dk)
    b_ref          : (2,)        f32 SMEM, [bR - bI, bR + bI]
    prev/cur/next  : (2, t_tile, H, W) f32 VMEM tiles of [real, imag] halves
                     at T-block indices t-1, t, t+1 (clamped at the ends)
    y_ref          : (2, t_tile, H, W) f32 VMEM; [0] = real, [1] = imag
    win_ref        : (2, Tb, H + 2*pad0, W + 2*pad0) f32 VMEM scratch
    """
    pad0 = (k0 - 1) // 2
    pad1 = (k1 - 1) // 2
    T, H, W = t_tile, h, w
    kk = k0 * k1
    t = pl.program_id(0)
    nt = pl.num_programs(0)

    # ---- assemble the haloed window in scratch (zero 'same' border) -------
    # The border is rewritten every step: cheap, and it keeps the grid axis
    # free of cross-step state so it can stay "parallel" (megacore friendly).
    win_ref[...] = jnp.zeros_like(win_ref)
    win_ref[:, pad1:pad1 + T, pad0:pad0 + H, pad0:pad0 + W] = cur_ref[...]
    if pad1 > 0:
        # T halo comes from the neighbouring tiles; zeroed at the array ends.
        lo = jnp.where(t > 0, prev_ref[:, T - pad1:, :, :], 0.0)
        hi = jnp.where(t + 1 < nt, next_ref[:, :pad1, :, :], 0.0)
        win_ref[:, :pad1, pad0:pad0 + H, pad0:pad0 + W] = lo
        win_ref[:, pad1 + T:, pad0:pad0 + H, pad0:pad0 + W] = hi

    # ---- bias folded into the accumulator init ----------------------------
    acc_r = jnp.full((T, H, W), b_ref[0], jnp.float32)   # + (bR - bI)
    acc_i = jnp.full((T, H, W), b_ref[1], jnp.float32)   # + (bR + bI)

    # ---- tap loop ----------------------------------------------------------
    for di in range(k0):                                  # sublane (H) shift
        for dj in range(k0):                              # lane (W) shift
            # Un-hoisted: reload the shifted slab from VMEM per (di, dj).
            # Loads have slack (VALU is the binding slot); only the two
            # accumulators stay live across the whole tap loop.
            xr = win_ref[0, :, di:di + H, dj:dj + W]      # (Tb, H, W)
            xi = win_ref[1, :, di:di + H, dj:dj + W]
            for dk in range(k1):                          # T shift (free)
                idx = di * kk + dj * k1 + dk
                wr = wr_ref[idx]
                wi = wi_ref[idx]
                sr = xr[dk:dk + T]                        # (T, H, W)
                si = xi[dk:dk + T]
                acc_r = acc_r + (wr * sr - wi * si)
                acc_i = acc_i + (wr * si + wi * sr)

    # Lane-dense stores (W = B is the full lane dim).
    y_ref[0, :, :, :] = acc_r
    y_ref[1, :, :, :] = acc_i


def conv3dc_forward(x, wR, wI, bR, bI, kernel, *, t_tile=None):
    """Pallas implementation of Conv3dC.forward.  x: (A, B, n) float."""
    k0, k1 = kernel
    pad0 = (k0 - 1) // 2
    pad1 = (k1 - 1) // 2
    A, B, n = x.shape
    assert n % 2 == 0, "last axis must hold [real | imag] halves of equal size"
    nh = n // 2

    # Register-tile heuristic: keep each accumulator <= ~8 vregs, then balance
    # the tiles across the grid (equal work per step; nt >= 2 for v7x's 2 TCs
    # whenever nh allows it).
    # TODO(synk): for very large A*B, sub-chunk T inside the kernel with a
    # lax.fori_loop so the DMA tile can grow independently of the register tile.
    if t_tile is None:
        t_tile = max(1, min(16, 8192 // max(1, A * B)))
    t_tile = max(1, min(int(t_tile), nh))
    nt = -(-nh // t_tile)
    t_tile = -(-nh // nt)                 # balanced tiles, same grid size
    nh_p = nt * t_tile
    Tb = t_tile + 2 * pad1

    # (A, B, n) -> (2, nh, A, B); only the T tail is zero-padded to nh_p.
    # No H/W padding and no overlapping-window copy is written to HBM.
    # TODO(synk): fold the two layout transposes into the kernel with manual
    # DMA (pl.ANY + make_async_copy) to drop the remaining wrapper HBM passes.
    xt = jnp.transpose(x.astype(jnp.float32), (2, 0, 1)).reshape(2, nh, A, B)
    x_pad = jnp.pad(xt, ((0, 0), (0, nh_p - nh), (0, 0), (0, 0)))

    # Weights flattened row-major in (di, dj, dk) = (k0, k0, k1) tap order.
    wR_flat = jnp.asarray(wR, jnp.float32).reshape(-1)
    wI_flat = jnp.asarray(wI, jnp.float32).reshape(-1)
    bR = jnp.asarray(bR, jnp.float32)
    bI = jnp.asarray(bI, jnp.float32)
    biases = jnp.stack([bR - bI, bR + bI]).reshape(2)

    kern = functools.partial(_conv3dc_kernel, k0=k0, k1=k1,
                             t_tile=t_tile, h=A, w=B)

    blk = (2, t_tile, A, B)
    last = nt - 1

    # VMEM budget: 3 input tiles + 1 output tile, double-buffered, + scratch.
    blk_bytes = 2 * t_tile * A * B * 4
    hp = -(-(A + 2 * pad0) // 8) * 8
    wp = -(-(B + 2 * pad0) // 128) * 128
    scratch_bytes = 2 * Tb * hp * wp * 4
    vmem_est = 8 * blk_bytes + scratch_bytes
    vmem_limit = int(min(48 * 2 ** 20, max(8 * 2 ** 20, 4 * vmem_est)))

    y = pl.pallas_call(
        kern,
        out_shape=jax.ShapeDtypeStruct((2, nh_p, A, B), jnp.float32),
        grid=(nt,),
        in_specs=[
            pl.BlockSpec(memory_space=pltpu.MemorySpace.SMEM),   # wR flat
            pl.BlockSpec(memory_space=pltpu.MemorySpace.SMEM),   # wI flat
            pl.BlockSpec(memory_space=pltpu.MemorySpace.SMEM),   # [bR-bI, bR+bI]
            pl.BlockSpec(blk, lambda t: (0, jnp.maximum(t - 1, 0), 0, 0)),
            pl.BlockSpec(blk, lambda t: (0, t, 0, 0)),
            pl.BlockSpec(blk, lambda t: (0, jnp.minimum(t + 1, last), 0, 0)),
        ],
        out_specs=pl.BlockSpec(blk, lambda t: (0, t, 0, 0)),
        scratch_shapes=[
            pltpu.VMEM((2, Tb, A + 2 * pad0, B + 2 * pad0), jnp.float32)],
        compiler_params=pltpu.CompilerParams(
            dimension_semantics=("parallel",),
            vmem_limit_bytes=vmem_limit),
    )(wR_flat, wI_flat, biases, x_pad, x_pad, x_pad)

    # (2, nh_p, A, B) -> (A, B, n): fold [real | imag] back into the last
    # axis (replaces the concat); under jit this fuses with the slice.
    y = y[:, :nh].reshape(n, A, B)
    return jnp.transpose(y, (1, 2, 0)).astype(x.dtype)


def _conv3d_ref(x3, w3, b, pad0, pad1):
    """Reference Conv3d(1, 1) via lax.conv_general_dilated.  x3: (A, B, nh)."""
    x5 = x3[None, None].astype(jnp.float32)
    w5 = w3[None, None].astype(jnp.float32)
    y = jax.lax.conv_general_dilated(
        x5, w5, window_strides=(1, 1, 1),
        padding=((pad0, pad0), (pad0, pad0), (pad1, pad1)),
        dimension_numbers=('NCDHW', 'OIDHW', 'NCDHW'))
    return y[0, 0] + b


def conv3dc_reference(x, wR, wI, bR, bI, kernel):
    k0, k1 = kernel
    pad0 = (k0 - 1) // 2
    pad1 = (k1 - 1) // 2
    nh = x.shape[-1] // 2
    xR = x[:, :, :nh]
    xI = x[:, :, nh:]
    yR = _conv3d_ref(xR, wR, bR, pad0, pad1) - _conv3d_ref(xI, wI, bI, pad0, pad1)
    yI = _conv3d_ref(xI, wR, bR, pad0, pad1) + _conv3d_ref(xR, wI, bI, pad0, pad1)
    return jnp.concatenate([yR, yI], axis=-1)


if __name__ == "__main__":
    # NOTE: demo shape only; benchmark on production volumes (larger A, nh)
    # where per-step overhead and wrapper ops no longer dominate.
    kernel = (3, 3)            # Conv3dC(kernel) -> conv kernel (3, 3, 3)
    k0, k1 = kernel
    A, B, n = 8, 128, 20       # lane axis B multiple of 128; nh = 10

    key = jax.random.PRNGKey(0)
    kx, kwr, kwi, kbr, kbi = jax.random.split(key, 5)

    # Deterministic Conv3d-style init: U(-bound, bound), bound = 1/sqrt(fan_in).
    fan_in = k0 * k0 * k1
    bound = 1.0 / (fan_in ** 0.5)
    wR = jax.random.uniform(kwr, (k0, k0, k1), jnp.float32, -bound, bound)
    wI = jax.random.uniform(kwi, (k0, k0, k1), jnp.float32, -bound, bound)
    bR = jax.random.uniform(kbr, (), jnp.float32, -bound, bound)
    bI = jax.random.uniform(kbi, (), jnp.float32, -bound, bound)

    x = jax.random.normal(kx, (A, B, n), jnp.float32)

    fwd = jax.jit(functools.partial(conv3dc_forward, kernel=kernel))
    out = jax.block_until_ready(fwd(x, wR, wI, bR, bI))

    ref = jax.block_until_ready(conv3dc_reference(x, wR, wI, bR, bI, kernel))

    assert out.shape == (A, B, n), out.shape
    max_err = float(jnp.max(jnp.abs(out - ref)))
    assert jnp.allclose(out, ref, atol=1e-3, rtol=1e-3), max_err

    print("KERNEL_OK")
</pallas_src>

<mosaic_0001>
module attributes {stable_mosaic.version = 11 : i64} {
  func.func @_conv3dc_kernel(%arg0: i32, %arg1: memref<27xf32, #tpu.memory_space<smem>>, %arg2: memref<27xf32, #tpu.memory_space<smem>>, %arg3: memref<2xf32, #tpu.memory_space<smem>>, %arg4: memref<2x5x8x128xf32, #tpu.memory_space<vmem>>, %arg5: memref<2x5x8x128xf32, #tpu.memory_space<vmem>>, %arg6: memref<2x5x8x128xf32, #tpu.memory_space<vmem>>, %arg7: memref<2x5x8x128xf32, #tpu.memory_space<vmem>>, %arg8: memref<2x7x10x130xf32, #tpu.memory_space<vmem>>) attributes {dimension_semantics = [#tpu.dimension_semantics<parallel>], iteration_bounds = array<i64: 2>, scalar_prefetch = 0 : i64, scratch_operands = 1 : i64, tpu.core_type = #tpu.core_type<tc>, window_params = [{transform_indices = @transform_0, window_bounds = array<i64: 27>}, {transform_indices = @transform_1, window_bounds = array<i64: 27>}, {transform_indices = @transform_2, window_bounds = array<i64: 2>}, {transform_indices = @transform_3, window_bounds = array<i64: 2, 5, 8, 128>}, {transform_indices = @transform_4, window_bounds = array<i64: 2, 5, 8, 128>}, {transform_indices = @transform_5, window_bounds = array<i64: 2, 5, 8, 128>}, {transform_indices = @transform_6, window_bounds = array<i64: 2, 5, 8, 128>}]} {
    %cst = arith.constant 0.000000e+00 : f32
    %0 = vector.broadcast %cst : f32 to vector<2x7x10x130xf32>
    %c0 = arith.constant 0 : index
    %c0_0 = arith.constant 0 : index
    %c0_1 = arith.constant 0 : index
    %c0_2 = arith.constant 0 : index
    %1 = vector.load %arg8[%c0, %c0_0, %c0_1, %c0_2] : memref<2x7x10x130xf32, #tpu.memory_space<vmem>>, vector<2x7x10x130xf32>
    tpu.vector_store %arg8[%c0, %c0_0, %c0_1, %c0_2], %0 {strides = array<i32>} : memref<2x7x10x130xf32, #tpu.memory_space<vmem>>, vector<2x7x10x130xf32>,
    %c0_3 = arith.constant 0 : index
    %c0_4 = arith.constant 0 : index
    %c0_5 = arith.constant 0 : index
    %c0_6 = arith.constant 0 : index
    %2 = vector.load %arg5[%c0_3, %c0_4, %c0_5, %c0_6] : memref<2x5x8x128xf32, #tpu.memory_space<vmem>>, vector<2x5x8x128xf32>
    %c0_7 = arith.constant 0 : index
    %c1 = arith.constant 1 : index
    %c1_8 = arith.constant 1 : index
    %c1_9 = arith.constant 1 : index
    %3 = vector.load %arg8[%c0_7, %c1, %c1_8, %c1_9] : memref<2x7x10x130xf32, #tpu.memory_space<vmem>>, vector<2x5x8x128xf32>
    tpu.vector_store %arg8[%c0_7, %c1, %c1_8, %c1_9], %2 {strides = array<i32>} : memref<2x7x10x130xf32, #tpu.memory_space<vmem>>, vector<2x5x8x128xf32>,
    %c0_i32 = arith.constant 0 : i32
    %4 = arith.cmpi sgt, %arg0, %c0_i32 : i32
    %c0_10 = arith.constant 0 : index
    %c4 = arith.constant 4 : index
    %c0_11 = arith.constant 0 : index
    %c0_12 = arith.constant 0 : index
    %5 = vector.load %arg4[%c0_10, %c4, %c0_11, %c0_12] : memref<2x5x8x128xf32, #tpu.memory_space<vmem>>, vector<2x1x8x128xf32>
    %cst_13 = arith.constant 0.000000e+00 : f32
    %6 = vector.broadcast %cst_13 : f32 to vector<2x1x8x128xf32>
    %7 = arith.select %4, %5, %6 : vector<2x1x8x128xf32>
    %c1_i32 = arith.constant 1 : i32
    %8 = arith.addi %arg0, %c1_i32 : i32
    %c2_i32 = arith.constant 2 : i32
    %9 = arith.cmpi slt, %8, %c2_i32 : i32
    %c0_14 = arith.constant 0 : index
    %c0_15 = arith.constant 0 : index
    %c0_16 = arith.constant 0 : index
    %c0_17 = arith.constant 0 : index
    %10 = vector.load %arg6[%c0_14, %c0_15, %c0_16, %c0_17] : memref<2x5x8x128xf32, #tpu.memory_space<vmem>>, vector<2x1x8x128xf32>
    %cst_18 = arith.constant 0.000000e+00 : f32
    %11 = vector.broadcast %cst_18 : f32 to vector<2x1x8x128xf32>
    %12 = arith.select %9, %10, %11 : vector<2x1x8x128xf32>
    %c0_19 = arith.constant 0 : index
    %c0_20 = arith.constant 0 : index
    %c1_21 = arith.constant 1 : index
    %c1_22 = arith.constant 1 : index
    %13 = vector.load %arg8[%c0_19, %c0_20, %c1_21, %c1_22] : memref<2x7x10x130xf32, #tpu.memory_space<vmem>>, vector<2x1x8x128xf32>
    tpu.vector_store %arg8[%c0_19, %c0_20, %c1_21, %c1_22], %7 {strides = array<i32>} : memref<2x7x10x130xf32, #tpu.memory_space<vmem>>, vector<2x1x8x128xf32>,
    %c0_23 = arith.constant 0 : index
    %c6 = arith.constant 6 : index
    %c1_24 = arith.constant 1 : index
    %c1_25 = arith.constant 1 : index
    %14 = vector.load %arg8[%c0_23, %c6, %c1_24, %c1_25] : memref<2x7x10x130xf32, #tpu.memory_space<vmem>>, vector<2x1x8x128xf32>
    tpu.vector_store %arg8[%c0_23, %c6, %c1_24, %c1_25], %12 {strides = array<i32>} : memref<2x7x10x130xf32, #tpu.memory_space<vmem>>, vector<2x1x8x128xf32>,
    %c0_26 = arith.constant 0 : index
    %15 = memref.load %arg3[%c0_26] : memref<2xf32, #tpu.memory_space<smem>>
    %16 = vector.broadcast %15 : f32 to vector<5x8x128xf32>
    %c1_27 = arith.constant 1 : index
    %17 = memref.load %arg3[%c1_27] : memref<2xf32, #tpu.memory_space<smem>>
    %18 = vector.broadcast %17 : f32 to vector<5x8x128xf32>
    %c0_28 = arith.constant 0 : index
    %c0_29 = arith.constant 0 : index
    %c0_30 = arith.constant 0 : index
    %c0_31 = arith.constant 0 : index
    %19 = vector.load %arg8[%c0_28, %c0_29, %c0_30, %c0_31] : memref<2x7x10x130xf32, #tpu.memory_space<vmem>>, vector<1x7x8x128xf32>
    %20 = vector.shape_cast %19 : vector<1x7x8x128xf32> to vector<7x8x128xf32>
    %c1_32 = arith.constant 1 : index
    %c0_33 = arith.constant 0 : index
    %c0_34 = arith.constant 0 : index
    %c0_35 = arith.constant 0 : index
    %21 = vector.load %arg8[%c1_32, %c0_33, %c0_34, %c0_35] : memref<2x7x10x130xf32, #tpu.memory_space<vmem>>, vector<1x7x8x128xf32>
    %22 = vector.shape_cast %21 : vector<1x7x8x128xf32> to vector<7x8x128xf32>
    %c0_36 = arith.constant 0 : index
    %23 = memref.load %arg1[%c0_36] : memref<27xf32, #tpu.memory_space<smem>>
    %c0_37 = arith.constant 0 : index
    %24 = memref.load %arg2[%c0_37] : memref<27xf32, #tpu.memory_space<smem>>
    %25 = vector.extract_strided_slice %20 {offsets = [0, 0, 0], sizes = [5, 8, 128], strides = [1, 1, 1]} : vector<7x8x128xf32> to vector<5x8x128xf32>
    %26 = vector.extract_strided_slice %22 {offsets = [0, 0, 0], sizes = [5, 8, 128], strides = [1, 1, 1]} : vector<7x8x128xf32> to vector<5x8x128xf32>
    %27 = vector.broadcast %23 : f32 to vector<5x8x128xf32>
    %28 = arith.mulf %27, %25 : vector<5x8x128xf32>
    %29 = vector.broadcast %24 : f32 to vector<5x8x128xf32>
    %30 = arith.mulf %29, %26 : vector<5x8x128xf32>
    %31 = arith.subf %28, %30 : vector<5x8x128xf32>
    %32 = arith.addf %16, %31 : vector<5x8x128xf32>
    %33 = vector.broadcast %23 : f32 to vector<5x8x128xf32>
    %34 = arith.mulf %33, %26 : vector<5x8x128xf32>
    %35 = vector.broadcast %24 : f32 to vector<5x8x128xf32>
    %36 = arith.mulf %35, %25 : vector<5x8x128xf32>
    %37 = arith.addf %34, %36 : vector<5x8x128xf32>
    %38 = arith.addf %18, %37 : vector<5x8x128xf32>
    %c1_38 = arith.constant 1 : index
    %39 = memref.load %arg1[%c1_38] : memref<27xf32, #tpu.memory_space<smem>>
    %c1_39 = arith.constant 1 : index
    %40 = memref.load %arg2[%c1_39] : memref<27xf32, #tpu.memory_space<smem>>
    %41 = vector.extract_strided_slice %20 {offsets = [1, 0, 0], sizes = [5, 8, 128], strides = [1, 1, 1]} : vector<7x8x128xf32> to vector<5x8x128xf32>
    %42 = vector.extract_strided_slice %22 {offsets = [1, 0, 0], sizes = [5, 8, 128], strides = [1, 1, 1]} : vector<7x8x128xf32> to vector<5x8x128xf32>
    %43 = vector.broadcast %39 : f32 to vector<5x8x128xf32>
    %44 = arith.mulf %43, %41 : vector<5x8x128xf32>
    %45 = vector.broadcast %40 : f32 to vector<5x8x128xf32>
    %46 = arith.mulf %45, %42 : vector<5x8x128xf32>
    %47 = arith.subf %44, %46 : vector<5x8x128xf32>
    %48 = arith.addf %32, %47 : vector<5x8x128xf32>
    %49 = vector.broadcast %39 : f32 to vector<5x8x128xf32>
    %50 = arith.mulf %49, %42 : vector<5x8x128xf32>
    %51 = vector.broadcast %40 : f32 to vector<5x8x128xf32>
    %52 = arith.mulf %51, %41 : vector<5x8x128xf32>
    %53 = arith.addf %50, %52 : vector<5x8x128xf32>
    %54 = arith.addf %38, %53 : vector<5x8x128xf32>
    %c2 = arith.constant 2 : index
    %55 = memref.load %arg1[%c2] : memref<27xf32, #tpu.memory_space<smem>>
    %c2_40 = arith.constant 2 : index
    %56 = memref.load %arg2[%c2_40] : memref<27xf32, #tpu.memory_space<smem>>
    %57 = vector.extract_strided_slice %20 {offsets = [2, 0, 0], sizes = [5, 8, 128], strides = [1, 1, 1]} : vector<7x8x128xf32> to vector<5x8x128xf32>
    %58 = vector.extract_strided_slice %22 {offsets = [2, 0, 0], sizes = [5, 8, 128], strides = [1, 1, 1]} : vector<7x8x128xf32> to vector<5x8x128xf32>
    %59 = vector.broadcast %55 : f32 to vector<5x8x128xf32>
    %60 = arith.mulf %59, %57 : vector<5x8x128xf32>
    %61 = vector.broadcast %56 : f32 to vector<5x8x128xf32>
    %62 = arith.mulf %61, %58 : vector<5x8x128xf32>
    %63 = arith.subf %60, %62 : vector<5x8x128xf32>
    %64 = arith.addf %48, %63 : vector<5x8x128xf32>
    %65 = vector.broadcast %55 : f32 to vector<5x8x128xf32>
    %66 = arith.mulf %65, %58 : vector<5x8x128xf32>
    %67 = vector.broadcast %56 : f32 to vector<5x8x128xf32>
    %68 = arith.mulf %67, %57 : vector<5x8x128xf32>
    %69 = arith.addf %66, %68 : vector<5x8x128xf32>
    %70 = arith.addf %54, %69 : vector<5x8x128xf32>
    %c0_41 = arith.constant 0 : index
    %c0_42 = arith.constant 0 : index
    %c0_43 = arith.constant 0 : index
    %c1_44 = arith.constant 1 : index
    %71 = vector.load %arg8[%c0_41, %c0_42, %c0_43, %c1_44] : memref<2x7x10x130xf32, #tpu.memory_space<vmem>>, vector<1x7x8x128xf32>
    %72 = vector.shape_cast %71 : vector<1x7x8x128xf32> to vector<7x8x128xf32>
    %c1_45 = arith.constant 1 : index
    %c0_46 = arith.constant 0 : index
    %c0_47 = arith.constant 0 : index
    %c1_48 = arith.constant 1 : index
    %73 = vector.load %arg8[%c1_45, %c0_46, %c0_47, %c1_48] : memref<2x7x10x130xf32, #tpu.memory_space<vmem>>, vector<1x7x8x128xf32>
    %74 = vector.shape_cast %73 : vector<1x7x8x128xf32> to vector<7x8x128xf32>
    %c3 = arith.constant 3 : index
    %75 = memref.load %arg1[%c3] : memref<27xf32, #tpu.memory_space<smem>>
    %c3_49 = arith.constant 3 : index
    %76 = memref.load %arg2[%c3_49] : memref<27xf32, #tpu.memory_space<smem>>
    %77 = vector.extract_strided_slice %72 {offsets = [0, 0, 0], sizes = [5, 8, 128], strides = [1, 1, 1]} : vector<7x8x128xf32> to vector<5x8x128xf32>
    %78 = vector.extract_strided_slice %74 {offsets = [0, 0, 0], sizes = [5, 8, 128], strides = [1, 1, 1]} : vector<7x8x128xf32> to vector<5x8x128xf32>
    %79 = vector.broadcast %75 : f32 to vector<5x8x128xf32>
    %80 = arith.mulf %79, %77 : vector<5x8x128xf32>
    %81 = vector.broadcast %76 : f32 to vector<5x8x128xf32>
    %82 = arith.mulf %81, %78 : vector<5x8x128xf32>
    %83 = arith.subf %80, %82 : vector<5x8x128xf32>
    %84 = arith.addf %64, %83 : vector<5x8x128xf32>
    %85 = vector.broadcast %75 : f32 to vector<5x8x128xf32>
    %86 = arith.mulf %85, %78 : vector<5x8x128xf32>
    %87 = vector.broadcast %76 : f32 to vector<5x8x128xf32>
    %88 = arith.mulf %87, %77 : vector<5x8x128xf32>
    %89 = arith.addf %86, %88 : vector<5x8x128xf32>
    %90 = arith.addf %70, %89 : vector<5x8x128xf32>
    %c4_50 = arith.constant 4 : index
    %91 = memref.load %arg1[%c4_50] : memref<27xf32, #tpu.memory_space<smem>>
    %c4_51 = arith.constant 4 : index
    %92 = memref.load %arg2[%c4_51] : memref<27xf32, #tpu.memory_space<smem>>
    %93 = vector.extract_strided_slice %72 {offsets = [1, 0, 0], sizes = [5, 8, 128], strides = [1, 1, 1]} : vector<7x8x128xf32> to vector<5x8x128xf32>
    %94 = vector.extract_strided_slice %74 {offsets = [1, 0, 0], sizes = [5, 8, 128], strides = [1, 1, 1]} : vector<7x8x128xf32> to vector<5x8x128xf32>
    %95 = vector.broadcast %91 : f32 to vector<5x8x128xf32>
    %96 = arith.mulf %95, %93 : vector<5x8x128xf32>
    %97 = vector.broadcast %92 : f32 to vector<5x8x128xf32>
    %98 = arith.mulf %97, %94 : vector<5x8x128xf32>
    %99 = arith.subf %96, %98 : vector<5x8x128xf32>
    %100 = arith.addf %84, %99 : vector<5x8x128xf32>
    %101 = vector.broadcast %91 : f32 to vector<5x8x128xf32>
    %102 = arith.mulf %101, %94 : vector<5x8x128xf32>
    %103 = vector.broadcast %92 : f32 to vector<5x8x128xf32>
    %104 = arith.mulf %103, %93 : vector<5x8x128xf32>
    %105 = arith.addf %102, %104 : vector<5x8x128xf32>
    %106 = arith.addf %90, %105 : vector<5x8x128xf32>
    %c5 = arith.constant 5 : index
    %107 = memref.load %arg1[%c5] : memref<27xf32, #tpu.memory_space<smem>>
    %c5_52 = arith.constant 5 : index
    %108 = memref.load %arg2[%c5_52] : memref<27xf32, #tpu.memory_space<smem>>
    %109 = vector.extract_strided_slice %72 {offsets = [2, 0, 0], sizes = [5, 8, 128], strides = [1, 1, 1]} : vector<7x8x128xf32> to vector<5x8x128xf32>
    %110 = vector.extract_strided_slice %74 {offsets = [2, 0, 0], sizes = [5, 8, 128], strides = [1, 1, 1]} : vector<7x8x128xf32> to vector<5x8x128xf32>
    %111 = vector.broadcast %107 : f32 to vector<5x8x128xf32>
    %112 = arith.mulf %111, %109 : vector<5x8x128xf32>
    %113 = vector.broadcast %108 : f32 to vector<5x8x128xf32>
    %114 = arith.mulf %113, %110 : vector<5x8x128xf32>
    %115 = arith.subf %112, %114 : vector<5x8x128xf32>
    %116 = arith.addf %100, %115 : vector<5x8x128xf32>
    %117 = vector.broadcast %107 : f32 to vector<5x8x128xf32>
    %118 = arith.mulf %117, %110 : vector<5x8x128xf32>
    %119 = vector.broadcast %108 : f32 to vector<5x8x128xf32>
    %120 = arith.mulf %119, %109 : vector<5x8x128xf32>
    %121 = arith.addf %118, %120 : vector<5x8x128xf32>
    %122 = arith.addf %106, %121 : vector<5x8x128xf32>
    %c0_53 = arith.constant 0 : index
    %c0_54 = arith.constant 0 : index
    %c0_55 = arith.constant 0 : index
    %c2_56 = arith.constant 2 : index
    %123 = vector.load %arg8[%c0_53, %c0_54, %c0_55, %c2_56] : memref<2x7x10x130xf32, #tpu.memory_space<vmem>>, vector<1x7x8x128xf32>
    %124 = vector.shape_cast %123 : vector<1x7x8x128xf32> to vector<7x8x128xf32>
    %c1_57 = arith.constant 1 : index
    %c0_58 = arith.constant 0 : index
    %c0_59 = arith.constant 0 : index
    %c2_60 = arith.constant 2 : index
    %125 = vector.load %arg8[%c1_57, %c0_58, %c0_59, %c2_60] : memref<2x7x10x130xf32, #tpu.memory_space<vmem>>, vector<1x7x8x128xf32>
    %126 = vector.shape_cast %125 : vector<1x7x8x128xf32> to vector<7x8x128xf32>
    %c6_61 = arith.constant 6 : index
    %127 = memref.load %arg1[%c6_61] : memref<27xf32, #tpu.memory_space<smem>>
    %c6_62 = arith.constant 6 : index
    %128 = memref.load %arg2[%c6_62] : memref<27xf32, #tpu.memory_space<smem>>
    %129 = vector.extract_strided_slice %124 {offsets = [0, 0, 0], sizes = [5, 8, 128], strides = [1, 1, 1]} : vector<7x8x128xf32> to vector<5x8x128xf32>
    %130 = vector.extract_strided_slice %126 {offsets = [0, 0, 0], sizes = [5, 8, 128], strides = [1, 1, 1]} : vector<7x8x128xf32> to vector<5x8x128xf32>
    %131 = vector.broadcast %127 : f32 to vector<5x8x128xf32>
    %132 = arith.mulf %131, %129 : vector<5x8x128xf32>
    %133 = vector.broadcast %128 : f32 to vector<5x8x128xf32>
    %134 = arith.mulf %133, %130 : vector<5x8x128xf32>
    %135 = arith.subf %132, %134 : vector<5x8x128xf32>
    %136 = arith.addf %116, %135 : vector<5x8x128xf32>
    %137 = vector.broadcast %127 : f32 to vector<5x8x128xf32>
    %138 = arith.mulf %137, %130 : vector<5x8x128xf32>
    %139 = vector.broadcast %128 : f32 to vector<5x8x128xf32>
    %140 = arith.mulf %139, %129 : vector<5x8x128xf32>
    %141 = arith.addf %138, %140 : vector<5x8x128xf32>
    %142 = arith.addf %122, %141 : vector<5x8x128xf32>
    %c7 = arith.constant 7 : index
    %143 = memref.load %arg1[%c7] : memref<27xf32, #tpu.memory_space<smem>>
    %c7_63 = arith.constant 7 : index
    %144 = memref.load %arg2[%c7_63] : memref<27xf32, #tpu.memory_space<smem>>
    %145 = vector.extract_strided_slice %124 {offsets = [1, 0, 0], sizes = [5, 8, 128], strides = [1, 1, 1]} : vector<7x8x128xf32> to vector<5x8x128xf32>
    %146 = vector.extract_strided_slice %126 {offsets = [1, 0, 0], sizes = [5, 8, 128], strides = [1, 1, 1]} : vector<7x8x128xf32> to vector<5x8x128xf32>
    %147 = vector.broadcast %143 : f32 to vector<5x8x128xf32>
    %148 = arith.mulf %147, %145 : vector<5x8x128xf32>
    %149 = vector.broadcast %144 : f32 to vector<5x8x128xf32>
    %150 = arith.mulf %149, %146 : vector<5x8x128xf32>
    %151 = arith.subf %148, %150 : vector<5x8x128xf32>
    %152 = arith.addf %136, %151 : vector<5x8x128xf32>
    %153 = vector.broadcast %143 : f32 to vector<5x8x128xf32>
    %154 = arith.mulf %153, %146 : vector<5x8x128xf32>
    %155 = vector.broadcast %144 : f32 to vector<5x8x128xf32>
    %156 = arith.mulf %155, %145 : vector<5x8x128xf32>
    %157 = arith.addf %154, %156 : vector<5x8x128xf32>
    %158 = arith.addf %142, %157 : vector<5x8x128xf32>
    %c8 = arith.constant 8 : index
    %159 = memref.load %arg1[%c8] : memref<27xf32, #tpu.memory_space<smem>>
    %c8_64 = arith.constant 8 : index
    %160 = memref.load %arg2[%c8_64] : memref<27xf32, #tpu.memory_space<smem>>
    %161 = vector.extract_strided_slice %124 {offsets = [2, 0, 0], sizes = [5, 8, 128], strides = [1, 1, 1]} : vector<7x8x128xf32> to vector<5x8x128xf32>
    %162 = vector.extract_strided_slice %126 {offsets = [2, 0, 0], sizes = [5, 8, 128], strides = [1, 1, 1]} : vector<7x8x128xf32> to vector<5x8x128xf32>
    %163 = vector.broadcast %159 : f32 to vector<5x8x128xf32>
    %164 = arith.mulf %163, %161 : vector<5x8x128xf32>
    %165 = vector.broadcast %160 : f32 to vector<5x8x128xf32>
    %166 = arith.mulf %165, %162 : vector<5x8x128xf32>
    %167 = arith.subf %164, %166 : vector<5x8x128xf32>
    %168 = arith.addf %152, %167 : vector<5x8x128xf32>
    %169 = vector.broadcast %159 : f32 to vector<5x8x128xf32>
    %170 = arith.mulf %169, %162 : vector<5x8x128xf32>
    %171 = vector.broadcast %160 : f32 to vector<5x8x128xf32>
    %172 = arith.mulf %171, %161 : vector<5x8x128xf32>
    %173 = arith.addf %170, %172 : vector<5x8x128xf32>
    %174 = arith.addf %158, %173 : vector<5x8x128xf32>
    %c0_65 = arith.constant 0 : index
    %c0_66 = arith.constant 0 : index
    %c1_67 = arith.constant 1 : index
    %c0_68 = arith.constant 0 : index
    %175 = vector.load %arg8[%c0_65, %c0_66, %c1_67, %c0_68] : memref<2x7x10x130xf32, #tpu.memory_space<vmem>>, vector<1x7x8x128xf32>
    %176 = vector.shape_cast %175 : vector<1x7x8x128xf32> to vector<7x8x128xf32>
    %c1_69 = arith.constant 1 : index
    %c0_70 = arith.constant 0 : index
    %c1_71 = arith.constant 1 : index
    %c0_72 = arith.constant 0 : index
    %177 = vector.load %arg8[%c1_69, %c0_70, %c1_71, %c0_72] : memref<2x7x10x130xf32, #tpu.memory_space<vmem>>, vector<1x7x8x128xf32>
    %178 = vector.shape_cast %177 : vector<1x7x8x128xf32> to vector<7x8x128xf32>
    %c9 = arith.constant 9 : index
    %179 = memref.load %arg1[%c9] : memref<27xf32, #tpu.memory_space<smem>>
    %c9_73 = arith.constant 9 : index
    %180 = memref.load %arg2[%c9_73] : memref<27xf32, #tpu.memory_space<smem>>
    %181 = vector.extract_strided_slice %176 {offsets = [0, 0, 0], sizes = [5, 8, 128], strides = [1, 1, 1]} : vector<7x8x128xf32> to vector<5x8x128xf32>
    %182 = vector.extract_strided_slice %178 {offsets = [0, 0, 0], sizes = [5, 8, 128], strides = [1, 1, 1]} : vector<7x8x128xf32> to vector<5x8x128xf32>
    %183 = vector.broadcast %179 : f32 to vector<5x8x128xf32>
    %184 = arith.mulf %183, %181 : vector<5x8x128xf32>
    %185 = vector.broadcast %180 : f32 to vector<5x8x128xf32>
    %186 = arith.mulf %185, %182 : vector<5x8x128xf32>
    %187 = arith.subf %184, %186 : vector<5x8x128xf32>
    %188 = arith.addf %168, %187 : vector<5x8x128xf32>
    %189 = vector.broadcast %179 : f32 to vector<5x8x128xf32>
    %190 = arith.mulf %189, %182 : vector<5x8x128xf32>
    %191 = vector.broadcast %180 : f32 to vector<5x8x128xf32>
    %192 = arith.mulf %191, %181 : vector<5x8x128xf32>
    %193 = arith.addf %190, %192 : vector<5x8x128xf32>
    %194 = arith.addf %174, %193 : vector<5x8x128xf32>
    %c10 = arith.constant 10 : index
    %195 = memref.load %arg1[%c10] : memref<27xf32, #tpu.memory_space<smem>>
    %c10_74 = arith.constant 10 : index
    %196 = memref.load %arg2[%c10_74] : memref<27xf32, #tpu.memory_space<smem>>
    %197 = vector.extract_strided_slice %176 {offsets = [1, 0, 0], sizes = [5, 8, 128], strides = [1, 1, 1]} : vector<7x8x128xf32> to vector<5x8x128xf32>
    %198 = vector.extract_strided_slice %178 {offsets = [1, 0, 0], sizes = [5, 8, 128], strides = [1, 1, 1]} : vector<7x8x128xf32> to vector<5x8x128xf32>
    %199 = vector.broadcast %195 : f32 to vector<5x8x128xf32>
    %200 = arith.mulf %199, %197 : vector<5x8x128xf32>
    %201 = vector.broadcast %196 : f32 to vector<5x8x128xf32>
    %202 = arith.mulf %201, %198 : vector<5x8x128xf32>
    %203 = arith.subf %200, %202 : vector<5x8x128xf32>
    %204 = arith.addf %188, %203 : vector<5x8x128xf32>
    %205 = vector.broadcast %195 : f32 to vector<5x8x128xf32>
    %206 = arith.mulf %205, %198 : vector<5x8x128xf32>
    %207 = vector.broadcast %196 : f32 to vector<5x8x128xf32>
    %208 = arith.mulf %207, %197 : vector<5x8x128xf32>
    %209 = arith.addf %206, %208 : vector<5x8x128xf32>
    %210 = arith.addf %194, %209 : vector<5x8x128xf32>
    %c11 = arith.constant 11 : index
    %211 = memref.load %arg1[%c11] : memref<27xf32, #tpu.memory_space<smem>>
    %c11_75 = arith.constant 11 : index
    %212 = memref.load %arg2[%c11_75] : memref<27xf32, #tpu.memory_space<smem>>
    %213 = vector.extract_strided_slice %176 {offsets = [2, 0, 0], sizes = [5, 8, 128], strides = [1, 1, 1]} : vector<7x8x128xf32> to vector<5x8x128xf32>
    %214 = vector.extract_strided_slice %178 {offsets = [2, 0, 0], sizes = [5, 8, 128], strides = [1, 1, 1]} : vector<7x8x128xf32> to vector<5x8x128xf32>
    %215 = vector.broadcast %211 : f32 to vector<5x8x128xf32>
    %216 = arith.mulf %215, %213 : vector<5x8x128xf32>
    %217 = vector.broadcast %212 : f32 to vector<5x8x128xf32>
    %218 = arith.mulf %217, %214 : vector<5x8x128xf32>
    %219 = arith.subf %216, %218 : vector<5x8x128xf32>
    %220 = arith.addf %204, %219 : vector<5x8x128xf32>
    %221 = vector.broadcast %211 : f32 to vector<5x8x128xf32>
    %222 = arith.mulf %221, %214 : vector<5x8x128xf32>
    %223 = vector.broadcast %212 : f32 to vector<5x8x128xf32>
    %224 = arith.mulf %223, %213 : vector<5x8x128xf32>
    %225 = arith.addf %222, %224 : vector<5x8x128xf32>
    %226 = arith.addf %210, %225 : vector<5x8x128xf32>
    %c0_76 = arith.constant 0 : index
    %c0_77 = arith.constant 0 : index
    %c1_78 = arith.constant 1 : index
    %c1_79 = arith.constant 1 : index
    %227 = vector.load %arg8[%c0_76, %c0_77, %c1_78, %c1_79] : memref<2x7x10x130xf32, #tpu.memory_space<vmem>>, vector<1x7x8x128xf32>
    %228 = vector.shape_cast %227 : vector<1x7x8x128xf32> to vector<7x8x128xf32>
    %c1_80 = arith.constant 1 : index
    %c0_81 = arith.constant 0 : index
    %c1_82 = arith.constant 1 : index
    %c1_83 = arith.constant 1 : index
    %229 = vector.load %arg8[%c1_80, %c0_81, %c1_82, %c1_83] : memref<2x7x10x130xf32, #tpu.memory_space<vmem>>, vector<1x7x8x128xf32>
    %230 = vector.shape_cast %229 : vector<1x7x8x128xf32> to vector<7x8x128xf32>
    %c12 = arith.constant 12 : index
    %231 = memref.load %arg1[%c12] : memref<27xf32, #tpu.memory_space<smem>>
    %c12_84 = arith.constant 12 : index
    %232 = memref.load %arg2[%c12_84] : memref<27xf32, #tpu.memory_space<smem>>
    %233 = vector.extract_strided_slice %228 {offsets = [0, 0, 0], sizes = [5, 8, 128], strides = [1, 1, 1]} : vector<7x8x128xf32> to vector<5x8x128xf32>
    %234 = vector.extract_strided_slice %230 {offsets = [0, 0, 0], sizes = [5, 8, 128], strides = [1, 1, 1]} : vector<7x8x128xf32> to vector<5x8x128xf32>
    %235 = vector.broadcast %231 : f32 to vector<5x8x128xf32>
    %236 = arith.mulf %235, %233 : vector<5x8x128xf32>
    %237 = vector.broadcast %232 : f32 to vector<5x8x128xf32>
    %238 = arith.mulf %237, %234 : vector<5x8x128xf32>
    %239 = arith.subf %236, %238 : vector<5x8x128xf32>
    %240 = arith.addf %220, %239 : vector<5x8x128xf32>
    %241 = vector.broadcast %231 : f32 to vector<5x8x128xf32>
    %242 = arith.mulf %241, %234 : vector<5x8x128xf32>
    %243 = vector.broadcast %232 : f32 to vector<5x8x128xf32>
    %244 = arith.mulf %243, %233 : vector<5x8x128xf32>
    %245 = arith.addf %242, %244 : vector<5x8x128xf32>
    %246 = arith.addf %226, %245 : vector<5x8x128xf32>
    %c13 = arith.constant 13 : index
    %247 = memref.load %arg1[%c13] : memref<27xf32, #tpu.memory_space<smem>>
    %c13_85 = arith.constant 13 : index
    %248 = memref.load %arg2[%c13_85] : memref<27xf32, #tpu.memory_space<smem>>
    %249 = vector.extract_strided_slice %228 {offsets = [1, 0, 0], sizes = [5, 8, 128], strides = [1, 1, 1]} : vector<7x8x128xf32> to vector<5x8x128xf32>
    %250 = vector.extract_strided_slice %230 {offsets = [1, 0, 0], sizes = [5, 8, 128], strides = [1, 1, 1]} : vector<7x8x128xf32> to vector<5x8x128xf32>
    %251 = vector.broadcast %247 : f32 to vector<5x8x128xf32>
    %252 = arith.mulf %251, %249 : vector<5x8x128xf32>
    %253 = vector.broadcast %248 : f32 to vector<5x8x128xf32>
    %254 = arith.mulf %253, %250 : vector<5x8x128xf32>
    %255 = arith.subf %252, %254 : vector<5x8x128xf32>
    %256 = arith.addf %240, %255 : vector<5x8x128xf32>
    %257 = vector.broadcast %247 : f32 to vector<5x8x128xf32>
    %258 = arith.mulf %257, %250 : vector<5x8x128xf32>
    %259 = vector.broadcast %248 : f32 to vector<5x8x128xf32>
    %260 = arith.mulf %259, %249 : vector<5x8x128xf32>
    %261 = arith.addf %258, %260 : vector<5x8x128xf32>
    %262 = arith.addf %246, %261 : vector<5x8x128xf32>
    %c14 = arith.constant 14 : index
    %263 = memref.load %arg1[%c14] : memref<27xf32, #tpu.memory_space<smem>>
    %c14_86 = arith.constant 14 : index
    %264 = memref.load %arg2[%c14_86] : memref<27xf32, #tpu.memory_space<smem>>
    %265 = vector.extract_strided_slice %228 {offsets = [2, 0, 0], sizes = [5, 8, 128], strides = [1, 1, 1]} : vector<7x8x128xf32> to vector<5x8x128xf32>
    %266 = vector.extract_strided_slice %230 {offsets = [2, 0, 0], sizes = [5, 8, 128], strides = [1, 1, 1]} : vector<7x8x128xf32> to vector<5x8x128xf32>
    %267 = vector.broadcast %263 : f32 to vector<5x8x128xf32>
    %268 = arith.mulf %267, %265 : vector<5x8x128xf32>
    %269 = vector.broadcast %264 : f32 to vector<5x8x128xf32>
    %270 = arith.mulf %269, %266 : vector<5x8x128xf32>
    %271 = arith.subf %268, %270 : vector<5x8x128xf32>
    %272 = arith.addf %256, %271 : vector<5x8x128xf32>
    %273 = vector.broadcast %263 : f32 to vector<5x8x128xf32>
    %274 = arith.mulf %273, %266 : vector<5x8x128xf32>
    %275 = vector.broadcast %264 : f32 to vector<5x8x128xf32>
    %276 = arith.mulf %275, %265 : vector<5x8x128xf32>
    %277 = arith.addf %274, %276 : vector<5x8x128xf32>
    %278 = arith.addf %262, %277 : vector<5x8x128xf32>
    %c0_87 = arith.constant 0 : index
    %c0_88 = arith.constant 0 : index
    %c1_89 = arith.constant 1 : index
    %c2_90 = arith.constant 2 : index
    %279 = vector.load %arg8[%c0_87, %c0_88, %c1_89, %c2_90] : memref<2x7x10x130xf32, #tpu.memory_space<vmem>>, vector<1x7x8x128xf32>
    %280 = vector.shape_cast %279 : vector<1x7x8x128xf32> to vector<7x8x128xf32>
    %c1_91 = arith.constant 1 : index
    %c0_92 = arith.constant 0 : index
    %c1_93 = arith.constant 1 : index
    %c2_94 = arith.constant 2 : index
    %281 = vector.load %arg8[%c1_91, %c0_92, %c1_93, %c2_94] : memref<2x7x10x130xf32, #tpu.memory_space<vmem>>, vector<1x7x8x128xf32>
    %282 = vector.shape_cast %281 : vector<1x7x8x128xf32> to vector<7x8x128xf32>
    %c15 = arith.constant 15 : index
    %283 = memref.load %arg1[%c15] : memref<27xf32, #tpu.memory_space<smem>>
    %c15_95 = arith.constant 15 : index
    %284 = memref.load %arg2[%c15_95] : memref<27xf32, #tpu.memory_space<smem>>
    %285 = vector.extract_strided_slice %280 {offsets = [0, 0, 0], sizes = [5, 8, 128], strides = [1, 1, 1]} : vector<7x8x128xf32> to vector<5x8x128xf32>
    %286 = vector.extract_strided_slice %282 {offsets = [0, 0, 0], sizes = [5, 8, 128], strides = [1, 1, 1]} : vector<7x8x128xf32> to vector<5x8x128xf32>
    %287 = vector.broadcast %283 : f32 to vector<5x8x128xf32>
    %288 = arith.mulf %287, %285 : vector<5x8x128xf32>
    %289 = vector.broadcast %284 : f32 to vector<5x8x128xf32>
    %290 = arith.mulf %289, %286 : vector<5x8x128xf32>
    %291 = arith.subf %288, %290 : vector<5x8x128xf32>
    %292 = arith.addf %272, %291 : vector<5x8x128xf32>
    %293 = vector.broadcast %283 : f32 to vector<5x8x128xf32>
    %294 = arith.mulf %293, %286 : vector<5x8x128xf32>
    %295 = vector.broadcast %284 : f32 to vector<5x8x128xf32>
    %296 = arith.mulf %295, %285 : vector<5x8x128xf32>
    %297 = arith.addf %294, %296 : vector<5x8x128xf32>
    %298 = arith.addf %278, %297 : vector<5x8x128xf32>
    %c16 = arith.constant 16 : index
    %299 = memref.load %arg1[%c16] : memref<27xf32, #tpu.memory_space<smem>>
    %c16_96 = arith.constant 16 : index
    %300 = memref.load %arg2[%c16_96] : memref<27xf32, #tpu.memory_space<smem>>
    %301 = vector.extract_strided_slice %280 {offsets = [1, 0, 0], sizes = [5, 8, 128], strides = [1, 1, 1]} : vector<7x8x128xf32> to vector<5x8x128xf32>
    %302 = vector.extract_strided_slice %282 {offsets = [1, 0, 0], sizes = [5, 8, 128], strides = [1, 1, 1]} : vector<7x8x128xf32> to vector<5x8x128xf32>
    %303 = vector.broadcast %299 : f32 to vector<5x8x128xf32>
    %304 = arith.mulf %303, %301 : vector<5x8x128xf32>
    %305 = vector.broadcast %300 : f32 to vector<5x8x128xf32>
    %306 = arith.mulf %305, %302 : vector<5x8x128xf32>
    %307 = arith.subf %304, %306 : vector<5x8x128xf32>
    %308 = arith.addf %292, %307 : vector<5x8x128xf32>
    %309 = vector.broadcast %299 : f32 to vector<5x8x128xf32>
    %310 = arith.mulf %309, %302 : vector<5x8x128xf32>
    %311 = vector.broadcast %300 : f32 to vector<5x8x128xf32>
    %312 = arith.mulf %311, %301 : vector<5x8x128xf32>
    %313 = arith.addf %310, %312 : vector<5x8x128xf32>
    %314 = arith.addf %298, %313 : vector<5x8x128xf32>
    %c17 = arith.constant 17 : index
    %315 = memref.load %arg1[%c17] : memref<27xf32, #tpu.memory_space<smem>>
    %c17_97 = arith.constant 17 : index
    %316 = memref.load %arg2[%c17_97] : memref<27xf32, #tpu.memory_space<smem>>
    %317 = vector.extract_strided_slice %280 {offsets = [2, 0, 0], sizes = [5, 8, 128], strides = [1, 1, 1]} : vector<7x8x128xf32> to vector<5x8x128xf32>
    %318 = vector.extract_strided_slice %282 {offsets = [2, 0, 0], sizes = [5, 8, 128], strides = [1, 1, 1]} : vector<7x8x128xf32> to vector<5x8x128xf32>
    %319 = vector.broadcast %315 : f32 to vector<5x8x128xf32>
    %320 = arith.mulf %319, %317 : vector<5x8x128xf32>
    %321 = vector.broadcast %316 : f32 to vector<5x8x128xf32>
    %322 = arith.mulf %321, %318 : vector<5x8x128xf32>
    %323 = arith.subf %320, %322 : vector<5x8x128xf32>
    %324 = arith.addf %308, %323 : vector<5x8x128xf32>
    %325 = vector.broadcast %315 : f32 to vector<5x8x128xf32>
    %326 = arith.mulf %325, %318 : vector<5x8x128xf32>
    %327 = vector.broadcast %316 : f32 to vector<5x8x128xf32>
    %328 = arith.mulf %327, %317 : vector<5x8x128xf32>
    %329 = arith.addf %326, %328 : vector<5x8x128xf32>
    %330 = arith.addf %314, %329 : vector<5x8x128xf32>
    %c0_98 = arith.constant 0 : index
    %c0_99 = arith.constant 0 : index
    %c2_100 = arith.constant 2 : index
    %c0_101 = arith.constant 0 : index
    %331 = vector.load %arg8[%c0_98, %c0_99, %c2_100, %c0_101] : memref<2x7x10x130xf32, #tpu.memory_space<vmem>>, vector<1x7x8x128xf32>
    %332 = vector.shape_cast %331 : vector<1x7x8x128xf32> to vector<7x8x128xf32>
    %c1_102 = arith.constant 1 : index
    %c0_103 = arith.constant 0 : index
    %c2_104 = arith.constant 2 : index
    %c0_105 = arith.constant 0 : index
    %333 = vector.load %arg8[%c1_102, %c0_103, %c2_104, %c0_105] : memref<2x7x10x130xf32, #tpu.memory_space<vmem>>, vector<1x7x8x128xf32>
    %334 = vector.shape_cast %333 : vector<1x7x8x128xf32> to vector<7x8x128xf32>
    %c18 = arith.constant 18 : index
    %335 = memref.load %arg1[%c18] : memref<27xf32, #tpu.memory_space<smem>>
    %c18_106 = arith.constant 18 : index
    %336 = memref.load %arg2[%c18_106] : memref<27xf32, #tpu.memory_space<smem>>
    %337 = vector.extract_strided_slice %332 {offsets = [0, 0, 0], sizes = [5, 8, 128], strides = [1, 1, 1]} : vector<7x8x128xf32> to vector<5x8x128xf32>
    %338 = vector.extract_strided_slice %334 {offsets = [0, 0, 0], sizes = [5, 8, 128], strides = [1, 1, 1]} : vector<7x8x128xf32> to vector<5x8x128xf32>
    %339 = vector.broadcast %335 : f32 to vector<5x8x128xf32>
    %340 = arith.mulf %339, %337 : vector<5x8x128xf32>
    %341 = vector.broadcast %336 : f32 to vector<5x8x128xf32>
    %342 = arith.mulf %341, %338 : vector<5x8x128xf32>
    %343 = arith.subf %340, %342 : vector<5x8x128xf32>
    %344 = arith.addf %324, %343 : vector<5x8x128xf32>
    %345 = vector.broadcast %335 : f32 to vector<5x8x128xf32>
    %346 = arith.mulf %345, %338 : vector<5x8x128xf32>
    %347 = vector.broadcast %336 : f32 to vector<5x8x128xf32>
    %348 = arith.mulf %347, %337 : vector<5x8x128xf32>
    %349 = arith.addf %346, %348 : vector<5x8x128xf32>
    %350 = arith.addf %330, %349 : vector<5x8x128xf32>
    %c19 = arith.constant 19 : index
    %351 = memref.load %arg1[%c19] : memref<27xf32, #tpu.memory_space<smem>>
    %c19_107 = arith.constant 19 : index
    %352 = memref.load %arg2[%c19_107] : memref<27xf32, #tpu.memory_space<smem>>
    %353 = vector.extract_strided_slice %332 {offsets = [1, 0, 0], sizes = [5, 8, 128], strides = [1, 1, 1]} : vector<7x8x128xf32> to vector<5x8x128xf32>
    %354 = vector.extract_strided_slice %334 {offsets = [1, 0, 0], sizes = [5, 8, 128], strides = [1, 1, 1]} : vector<7x8x128xf32> to vector<5x8x128xf32>
    %355 = vector.broadcast %351 : f32 to vector<5x8x128xf32>
    %356 = arith.mulf %355, %353 : vector<5x8x128xf32>
    %357 = vector.broadcast %352 : f32 to vector<5x8x128xf32>
    %358 = arith.mulf %357, %354 : vector<5x8x128xf32>
    %359 = arith.subf %356, %358 : vector<5x8x128xf32>
    %360 = arith.addf %344, %359 : vector<5x8x128xf32>
    %361 = vector.broadcast %351 : f32 to vector<5x8x128xf32>
    %362 = arith.mulf %361, %354 : vector<5x8x128xf32>
    %363 = vector.broadcast %352 : f32 to vector<5x8x128xf32>
    %364 = arith.mulf %363, %353 : vector<5x8x128xf32>
    %365 = arith.addf %362, %364 : vector<5x8x128xf32>
    %366 = arith.addf %350, %365 : vector<5x8x128xf32>
    %c20 = arith.constant 20 : index
    %367 = memref.load %arg1[%c20] : memref<27xf32, #tpu.memory_space<smem>>
    %c20_108 = arith.constant 20 : index
    %368 = memref.load %arg2[%c20_108] : memref<27xf32, #tpu.memory_space<smem>>
    %369 = vector.extract_strided_slice %332 {offsets = [2, 0, 0], sizes = [5, 8, 128], strides = [1, 1, 1]} : vector<7x8x128xf32> to vector<5x8x128xf32>
    %370 = vector.extract_strided_slice %334 {offsets = [2, 0, 0], sizes = [5, 8, 128], strides = [1, 1, 1]} : vector<7x8x128xf32> to vector<5x8x128xf32>
    %371 = vector.broadcast %367 : f32 to vector<5x8x128xf32>
    %372 = arith.mulf %371, %369 : vector<5x8x128xf32>
    %373 = vector.broadcast %368 : f32 to vector<5x8x128xf32>
    %374 = arith.mulf %373, %370 : vector<5x8x128xf32>
    %375 = arith.subf %372, %374 : vector<5x8x128xf32>
    %376 = arith.addf %360, %375 : vector<5x8x128xf32>
    %377 = vector.broadcast %367 : f32 to vector<5x8x128xf32>
    %378 = arith.mulf %377, %370 : vector<5x8x128xf32>
    %379 = vector.broadcast %368 : f32 to vector<5x8x128xf32>
    %380 = arith.mulf %379, %369 : vector<5x8x128xf32>
    %381 = arith.addf %378, %380 : vector<5x8x128xf32>
    %382 = arith.addf %366, %381 : vector<5x8x128xf32>
    %c0_109 = arith.constant 0 : index
    %c0_110 = arith.constant 0 : index
    %c2_111 = arith.constant 2 : index
    %c1_112 = arith.constant 1 : index
    %383 = vector.load %arg8[%c0_109, %c0_110, %c2_111, %c1_112] : memref<2x7x10x130xf32, #tpu.memory_space<vmem>>, vector<1x7x8x128xf32>
    %384 = vector.shape_cast %383 : vector<1x7x8x128xf32> to vector<7x8x128xf32>
    %c1_113 = arith.constant 1 : index
    %c0_114 = arith.constant 0 : index
    %c2_115 = arith.constant 2 : index
    %c1_116 = arith.constant 1 : index
    %385 = vector.load %arg8[%c1_113, %c0_114, %c2_115, %c1_116] : memref<2x7x10x130xf32, #tpu.memory_space<vmem>>, vector<1x7x8x128xf32>
    %386 = vector.shape_cast %385 : vector<1x7x8x128xf32> to vector<7x8x128xf32>
    %c21 = arith.constant 21 : index
    %387 = memref.load %arg1[%c21] : memref<27xf32, #tpu.memory_space<smem>>
    %c21_117 = arith.constant 21 : index
    %388 = memref.load %arg2[%c21_117] : memref<27xf32, #tpu.memory_space<smem>>
    %389 = vector.extract_strided_slice %384 {offsets = [0, 0, 0], sizes = [5, 8, 128], strides = [1, 1, 1]} : vector<7x8x128xf32> to vector<5x8x128xf32>
    %390 = vector.extract_strided_slice %386 {offsets = [0, 0, 0], sizes = [5, 8, 128], strides = [1, 1, 1]} : vector<7x8x128xf32> to vector<5x8x128xf32>
    %391 = vector.broadcast %387 : f32 to vector<5x8x128xf32>
    %392 = arith.mulf %391, %389 : vector<5x8x128xf32>
    %393 = vector.broadcast %388 : f32 to vector<5x8x128xf32>
    %394 = arith.mulf %393, %390 : vector<5x8x128xf32>
    %395 = arith.subf %392, %394 : vector<5x8x128xf32>
    %396 = arith.addf %376, %395 : vector<5x8x128xf32>
    %397 = vector.broadcast %387 : f32 to vector<5x8x128xf32>
    %398 = arith.mulf %397, %390 : vector<5x8x128xf32>
    %399 = vector.broadcast %388 : f32 to vector<5x8x128xf32>
    %400 = arith.mulf %399, %389 : vector<5x8x128xf32>
    %401 = arith.addf %398, %400 : vector<5x8x128xf32>
    %402 = arith.addf %382, %401 : vector<5x8x128xf32>
    %c22 = arith.constant 22 : index
    %403 = memref.load %arg1[%c22] : memref<27xf32, #tpu.memory_space<smem>>
    %c22_118 = arith.constant 22 : index
    %404 = memref.load %arg2[%c22_118] : memref<27xf32, #tpu.memory_space<smem>>
    %405 = vector.extract_strided_slice %384 {offsets = [1, 0, 0], sizes = [5, 8, 128], strides = [1, 1, 1]} : vector<7x8x128xf32> to vector<5x8x128xf32>
    %406 = vector.extract_strided_slice %386 {offsets = [1, 0, 0], sizes = [5, 8, 128], strides = [1, 1, 1]} : vector<7x8x128xf32> to vector<5x8x128xf32>
    %407 = vector.broadcast %403 : f32 to vector<5x8x128xf32>
    %408 = arith.mulf %407, %405 : vector<5x8x128xf32>
    %409 = vector.broadcast %404 : f32 to vector<5x8x128xf32>
    %410 = arith.mulf %409, %406 : vector<5x8x128xf32>
    %411 = arith.subf %408, %410 : vector<5x8x128xf32>
    %412 = arith.addf %396, %411 : vector<5x8x128xf32>
    %413 = vector.broadcast %403 : f32 to vector<5x8x128xf32>
    %414 = arith.mulf %413, %406 : vector<5x8x128xf32>
    %415 = vector.broadcast %404 : f32 to vector<5x8x128xf32>
    %416 = arith.mulf %415, %405 : vector<5x8x128xf32>
    %417 = arith.addf %414, %416 : vector<5x8x128xf32>
    %418 = arith.addf %402, %417 : vector<5x8x128xf32>
    %c23 = arith.constant 23 : index
    %419 = memref.load %arg1[%c23] : memref<27xf32, #tpu.memory_space<smem>>
    %c23_119 = arith.constant 23 : index
    %420 = memref.load %arg2[%c23_119] : memref<27xf32, #tpu.memory_space<smem>>
    %421 = vector.extract_strided_slice %384 {offsets = [2, 0, 0], sizes = [5, 8, 128], strides = [1, 1, 1]} : vector<7x8x128xf32> to vector<5x8x128xf32>
    %422 = vector.extract_strided_slice %386 {offsets = [2, 0, 0], sizes = [5, 8, 128], strides = [1, 1, 1]} : vector<7x8x128xf32> to vector<5x8x128xf32>
    %423 = vector.broadcast %419 : f32 to vector<5x8x128xf32>
    %424 = arith.mulf %423, %421 : vector<5x8x128xf32>
    %425 = vector.broadcast %420 : f32 to vector<5x8x128xf32>
    %426 = arith.mulf %425, %422 : vector<5x8x128xf32>
    %427 = arith.subf %424, %426 : vector<5x8x128xf32>
    %428 = arith.addf %412, %427 : vector<5x8x128xf32>
    %429 = vector.broadcast %419 : f32 to vector<5x8x128xf32>
    %430 = arith.mulf %429, %422 : vector<5x8x128xf32>
    %431 = vector.broadcast %420 : f32 to vector<5x8x128xf32>
    %432 = arith.mulf %431, %421 : vector<5x8x128xf32>
    %433 = arith.addf %430, %432 : vector<5x8x128xf32>
    %434 = arith.addf %418, %433 : vector<5x8x128xf32>
    %c0_120 = arith.constant 0 : index
    %c0_121 = arith.constant 0 : index
    %c2_122 = arith.constant 2 : index
    %c2_123 = arith.constant 2 : index
    %435 = vector.load %arg8[%c0_120, %c0_121, %c2_122, %c2_123] : memref<2x7x10x130xf32, #tpu.memory_space<vmem>>, vector<1x7x8x128xf32>
    %436 = vector.shape_cast %435 : vector<1x7x8x128xf32> to vector<7x8x128xf32>
    %c1_124 = arith.constant 1 : index
    %c0_125 = arith.constant 0 : index
    %c2_126 = arith.constant 2 : index
    %c2_127 = arith.constant 2 : index
    %437 = vector.load %arg8[%c1_124, %c0_125, %c2_126, %c2_127] : memref<2x7x10x130xf32, #tpu.memory_space<vmem>>, vector<1x7x8x128xf32>
    %438 = vector.shape_cast %437 : vector<1x7x8x128xf32> to vector<7x8x128xf32>
    %c24 = arith.constant 24 : index
    %439 = memref.load %arg1[%c24] : memref<27xf32, #tpu.memory_space<smem>>
    %c24_128 = arith.constant 24 : index
    %440 = memref.load %arg2[%c24_128] : memref<27xf32, #tpu.memory_space<smem>>
    %441 = vector.extract_strided_slice %436 {offsets = [0, 0, 0], sizes = [5, 8, 128], strides = [1, 1, 1]} : vector<7x8x128xf32> to vector<5x8x128xf32>
    %442 = vector.extract_strided_slice %438 {offsets = [0, 0, 0], sizes = [5, 8, 128], strides = [1, 1, 1]} : vector<7x8x128xf32> to vector<5x8x128xf32>
    %443 = vector.broadcast %439 : f32 to vector<5x8x128xf32>
    %444 = arith.mulf %443, %441 : vector<5x8x128xf32>
    %445 = vector.broadcast %440 : f32 to vector<5x8x128xf32>
    %446 = arith.mulf %445, %442 : vector<5x8x128xf32>
    %447 = arith.subf %444, %446 : vector<5x8x128xf32>
    %448 = arith.addf %428, %447 : vector<5x8x128xf32>
    %449 = vector.broadcast %439 : f32 to vector<5x8x128xf32>
    %450 = arith.mulf %449, %442 : vector<5x8x128xf32>
    %451 = vector.broadcast %440 : f32 to vector<5x8x128xf32>
    %452 = arith.mulf %451, %441 : vector<5x8x128xf32>
    %453 = arith.addf %450, %452 : vector<5x8x128xf32>
    %454 = arith.addf %434, %453 : vector<5x8x128xf32>
    %c25 = arith.constant 25 : index
    %455 = memref.load %arg1[%c25] : memref<27xf32, #tpu.memory_space<smem>>
    %c25_129 = arith.constant 25 : index
    %456 = memref.load %arg2[%c25_129] : memref<27xf32, #tpu.memory_space<smem>>
    %457 = vector.extract_strided_slice %436 {offsets = [1, 0, 0], sizes = [5, 8, 128], strides = [1, 1, 1]} : vector<7x8x128xf32> to vector<5x8x128xf32>
    %458 = vector.extract_strided_slice %438 {offsets = [1, 0, 0], sizes = [5, 8, 128], strides = [1, 1, 1]} : vector<7x8x128xf32> to vector<5x8x128xf32>
    %459 = vector.broadcast %455 : f32 to vector<5x8x128xf32>
    %460 = arith.mulf %459, %457 : vector<5x8x128xf32>
    %461 = vector.broadcast %456 : f32 to vector<5x8x128xf32>
    %462 = arith.mulf %461, %458 : vector<5x8x128xf32>
    %463 = arith.subf %460, %462 : vector<5x8x128xf32>
    %464 = arith.addf %448, %463 : vector<5x8x128xf32>
    %465 = vector.broadcast %455 : f32 to vector<5x8x128xf32>
    %466 = arith.mulf %465, %458 : vector<5x8x128xf32>
    %467 = vector.broadcast %456 : f32 to vector<5x8x128xf32>
    %468 = arith.mulf %467, %457 : vector<5x8x128xf32>
    %469 = arith.addf %466, %468 : vector<5x8x128xf32>
    %470 = arith.addf %454, %469 : vector<5x8x128xf32>
    %c26 = arith.constant 26 : index
    %471 = memref.load %arg1[%c26] : memref<27xf32, #tpu.memory_space<smem>>
    %c26_130 = arith.constant 26 : index
    %472 = memref.load %arg2[%c26_130] : memref<27xf32, #tpu.memory_space<smem>>
    %473 = vector.extract_strided_slice %436 {offsets = [2, 0, 0], sizes = [5, 8, 128], strides = [1, 1, 1]} : vector<7x8x128xf32> to vector<5x8x128xf32>
    %474 = vector.extract_strided_slice %438 {offsets = [2, 0, 0], sizes = [5, 8, 128], strides = [1, 1, 1]} : vector<7x8x128xf32> to vector<5x8x128xf32>
    %475 = vector.broadcast %471 : f32 to vector<5x8x128xf32>
    %476 = arith.mulf %475, %473 : vector<5x8x128xf32>
    %477 = vector.broadcast %472 : f32 to vector<5x8x128xf32>
    %478 = arith.mulf %477, %474 : vector<5x8x128xf32>
    %479 = arith.subf %476, %478 : vector<5x8x128xf32>
    %480 = arith.addf %464, %479 : vector<5x8x128xf32>
    %481 = vector.broadcast %471 : f32 to vector<5x8x128xf32>
    %482 = arith.mulf %481, %474 : vector<5x8x128xf32>
    %483 = vector.broadcast %472 : f32 to vector<5x8x128xf32>
    %484 = arith.mulf %483, %473 : vector<5x8x128xf32>
    %485 = arith.addf %482, %484 : vector<5x8x128xf32>
    %486 = arith.addf %470, %485 : vector<5x8x128xf32>
    %c0_131 = arith.constant 0 : index
    %c0_132 = arith.constant 0 : index
    %c0_133 = arith.constant 0 : index
    %c0_134 = arith.constant 0 : index
    %487 = vector.load %arg7[%c0_131, %c0_132, %c0_133, %c0_134] : memref<2x5x8x128xf32, #tpu.memory_space<vmem>>, vector<1x5x8x128xf32>
    %488 = vector.shape_cast %487 : vector<1x5x8x128xf32> to vector<5x8x128xf32>
    %489 = vector.shape_cast %480 : vector<5x8x128xf32> to vector<1x5x8x128xf32>
    tpu.vector_store %arg7[%c0_131, %c0_132, %c0_133, %c0_134], %489 {strides = array<i32>} : memref<2x5x8x128xf32, #tpu.memory_space<vmem>>, vector<1x5x8x128xf32>,
    %c1_135 = arith.constant 1 : index
    %c0_136 = arith.constant 0 : index
    %c0_137 = arith.constant 0 : index
    %c0_138 = arith.constant 0 : index
    %490 = vector.load %arg7[%c1_135, %c0_136, %c0_137, %c0_138] : memref<2x5x8x128xf32, #tpu.memory_space<vmem>>, vector<1x5x8x128xf32>
    %491 = vector.shape_cast %490 : vector<1x5x8x128xf32> to vector<5x8x128xf32>
    %492 = vector.shape_cast %486 : vector<5x8x128xf32> to vector<1x5x8x128xf32>
    tpu.vector_store %arg7[%c1_135, %c0_136, %c0_137, %c0_138], %492 {strides = array<i32>} : memref<2x5x8x128xf32, #tpu.memory_space<vmem>>, vector<1x5x8x128xf32>,
    return
  }
  func.func @transform_0(%arg0: i32) -> i32 {
    %c0_i32 = arith.constant 0 : i32
    %c0_i32_0 = arith.constant 0 : i32
    return %c0_i32 : i32
  }
  func.func @transform_1(%arg0: i32) -> i32 {
    %c0_i32 = arith.constant 0 : i32
    %c0_i32_0 = arith.constant 0 : i32
    return %c0_i32 : i32
  }
  func.func @transform_2(%arg0: i32) -> i32 {
    %c0_i32 = arith.constant 0 : i32
    %c0_i32_0 = arith.constant 0 : i32
    return %c0_i32 : i32
  }
  func.func @transform_3(%arg0: i32) -> (i32, i32, i32, i32) {
    %c1_i32 = arith.constant 1 : i32
    %0 = arith.subi %arg0, %c1_i32 : i32
    %c0_i32 = arith.constant 0 : i32
    %1 = arith.maxsi %0, %c0_i32 : i32
    %c0_i32_0 = arith.constant 0 : i32
    %c0_i32_1 = arith.constant 0 : i32
    %c0_i32_2 = arith.constant 0 : i32
    %c0_i32_3 = arith.constant 0 : i32
    return %c0_i32_0, %1, %c0_i32_1, %c0_i32_2 : i32, i32, i32, i32
  }
  func.func @transform_4(%arg0: i32) -> (i32, i32, i32, i32) {
    %c0_i32 = arith.constant 0 : i32
    %c0_i32_0 = arith.constant 0 : i32
    %c0_i32_1 = arith.constant 0 : i32
    %c0_i32_2 = arith.constant 0 : i32
    return %c0_i32, %arg0, %c0_i32_0, %c0_i32_1 : i32, i32, i32, i32
  }
  func.func @transform_5(%arg0: i32) -> (i32, i32, i32, i32) {
    %c1_i32 = arith.constant 1 : i32
    %0 = arith.addi %arg0, %c1_i32 : i32
    %c1_i32_0 = arith.constant 1 : i32
    %1 = arith.minsi %0, %c1_i32_0 : i32
    %c0_i32 = arith.constant 0 : i32
    %c0_i32_1 = arith.constant 0 : i32
    %c0_i32_2 = arith.constant 0 : i32
    %c0_i32_3 = arith.constant 0 : i32
    return %c0_i32, %1, %c0_i32_1, %c0_i32_2 : i32, i32, i32, i32
  }
  func.func @transform_6(%arg0: i32) -> (i32, i32, i32, i32) {
    %c0_i32 = arith.constant 0 : i32
    %c0_i32_0 = arith.constant 0 : i32
    %c0_i32_1 = arith.constant 0 : i32
    %c0_i32_2 = arith.constant 0 : i32
    return %c0_i32, %arg0, %c0_i32_0, %c0_i32_1 : i32, i32, i32, i32
  }
}

</mosaic_0001>

<llo_original>
// kernel: conv3dc_forward.1
$region0: #{conv3dc_forward.1}
  #allocation0 [shape = 'u32[]', space=smem, size = 0x4, offset = 0x4, fixed_abs, tag = 'smem constant byte address 0x4 - core index']
  #allocation1 [shape = 'u32[144,128]{1,0:T(1,128)}', space=vmem, size = 0x12000, scoped, tag = 'internal scratch']
  #allocation2 [shape = 'f32[2,7,10,130]{3,2,1,0:T(8,128)}', space=vmem, size = 0x38000, scoped, tag = 'scratch operand']
  #allocation15 [shape = 's32[]', space=sflag, size = 0x4, offset = 0, fixed_abs, tag = 'sflag constant byte address 0x0 - dummy sync flag']
  #allocation17 [shape = 's32[]', space=sflag, size = 0x4, offset = 0, fixed_abs, tag = 'sflag constant byte address 0x0 - dummy sync flag']
  #allocation19 [shape = 's32[]', space=sflag, size = 0x4, offset = 0, fixed_abs, tag = 'sflag constant byte address 0x0 - dummy sync flag']
  #allocation21 [shape = 's32[]', space=sflag, size = 0x4, offset = 0, fixed_abs, tag = 'sflag constant byte address 0x0 - dummy sync flag']
  %s0 = inlined_call_operand.vmem [shape: f32[27], index: 0, kind: input, shape index: {}]
  %s1 = inlined_call_operand.vmem [shape: f32[27], index: 1, kind: input, shape index: {}]
  %s2 = inlined_call_operand.vmem [shape: f32[2], index: 2, kind: input, shape index: {}]
  %s3 = inlined_call_operand.hbm [shape: f32[2,10,8,128], index: 3, kind: input, shape index: {}, may-alias: {3,4,5}]
  %s4 = inlined_call_operand.hbm [shape: f32[2,10,8,128], index: 4, kind: input, shape index: {}, may-alias: {3,4,5}]
  %s5 = inlined_call_operand.hbm [shape: f32[2,10,8,128], index: 5, kind: input, shape index: {}, may-alias: {3,4,5}]
  %s6 = inlined_call_operand.hbm [shape: f32[2,10,8,128], index: 6, kind: output, shape index: {}]
  %s7 = sld [smem:[#allocation0]]
  $region81: #{conv3dc_forward.1} parent=0
    _
  %s9 = ssub.s32 1, %s7
  %s10 = scalar_select 0, %s9, %s7
  $region1: #{conv3dc_forward.1} parent=0
    #allocation3 [shape = 'u8[512]{0}', space=smem, size = 0x200, scoped, tag = 'input window, operand 0, single buffered']
    #allocation4 [shape = 's32[2]{0}', space=sflag, size = 0x8, scoped, tag = 'scoped memory for conv3dc_forward.1']
    #allocation5 [shape = 's32[2]{0}', space=sflag, size = 0x8, scoped, tag = 'scoped memory for conv3dc_forward.1']
    #allocation6 [shape = 's32[2]{0}', space=sflag, size = 0x8, scoped, tag = 'scoped memory for conv3dc_forward.1']
    #allocation7 [shape = 'u8[512]{0}', space=smem, size = 0x200, scoped, tag = 'input window, operand 1, single buffered']
    #allocation8 [shape = 's32[1]{0}', space=sflag, size = 0x4, scoped, tag = 'scoped memory for conv3dc_forward.1']
    #allocation9 [shape = 'u8[512]{0}', space=smem, size = 0x200, scoped, tag = 'input window, operand 2, single buffered']
    #allocation10 [shape = 'u8[81920]{0}', space=vmem, size = 0x14000, scoped, tag = 'input window, operand 3']
    #allocation11 [shape = 'u8[81920]{0}', space=vmem, size = 0x14000, scoped, tag = 'input window, operand 4']
    #allocation12 [shape = 's32[2]{0}', space=sflag, size = 0x8, scoped, tag = 'scoped memory for conv3dc_forward.1']
    #allocation13 [shape = 'u8[81920]{0}', space=vmem, size = 0x14000, scoped, tag = 'input window, operand 5']
    #allocation14 [shape = 'u8[81920]{0}', space=vmem, size = 0x14000, scoped, tag = 'output window, operand 0']
    %11 = vsyncpa [#allocation6], 0
    %12 = vsyncpa [#allocation8], 0
    %13 = vsyncpa [#allocation4], 0
    %s14 = scalar_lea.sflag [#allocation4], 1
    %15 = vsyncpa %s14, 0
    %16 = vsyncpa [#allocation12], 0
    %s17 = scalar_lea.sflag [#allocation12], 1
    %18 = vsyncpa %s17, 0
    %19 = vsyncpa [#allocation5], 0
    %s20 = scalar_lea.sflag [#allocation5], 1
    %21 = vsyncpa %s20, 0
    loop: start=0, step=1, limit=4
    $region2: #{conv3dc_forward.1} parent=1 // loop_pre_header
      _
    $region3: #{conv3dc_forward.1} parent=1 // loop_header
      %s23 = sphi 0, %s27
      %p24 = scmp.ge.s32.totalorder %s23, 4
      %s31 = sphi 0, %s31
      %s33 = sphi 0, %s31
      %s34 = sphi 0, %s33
      %s48 = sphi 0, %s34
      %s52 = sphi 0, %s52
      %s54 = sphi 0, %s52
      %s55 = sphi 0, %s54
      %s69 = sphi 0, %s55
      %s73 = sphi 0, %s73
      %s75 = sphi 0, %s73
      %s76 = sphi 0, %s75
      %s90 = sphi 0, %s76
      %s102 = sphi 0, %s104
      %s105 = sphi 0, %s102
      %s106 = sphi 0, %s105
      %s122 = sphi 0, %s106
      %s128 = sphi 0, %s130
      %s131 = sphi 0, %s128
      %s132 = sphi 0, %s131
      %s148 = sphi 0, %s132
      %s160 = sphi 0, %s162
      %s163 = sphi 0, %s160
      %s164 = sphi 0, %s163
      %s180 = sphi 0, %s164
      %s186 = sphi 0, %s188
      %s189 = sphi 0, %s186
      %s190 = sphi 0, %s189
      %s206 = sphi 0, %s190
    $region4: #{conv3dc_forward.1} parent=1 // loop_header_branch
      %26 = sbr.rel (%p24) target = $region8
    $region5: #{conv3dc_forward.1} parent=1 // loop_body
      %s28 = ssub.s32 %s23, 1
      %s29 = ssub.s32 %s23, 2
      %s30 = sadd.s32 %s23, 1
      %s32 = sadd.s32 %s31, 1
      %p35 = scmp.eq.s32.totalorder %s23, 1
      %p36 = scmp.ne.s32.totalorder %s31, %s33
      %p37 = scmp.eq.s32.totalorder %s23, 0
      %p38 = por %p36, %p37
      %p39 = scmp.ne.s32.totalorder %s31, %s33
      %p40 = scmp.eq.s32.totalorder %s28, 1
      %p41 = por %p39, %p40
      %p42 = scmp.ne.s32.totalorder %s33, %s34
      %p43 = scmp.eq.s32.totalorder %s28, 0
      %p44 = por %p42, %p43
      %p45 = scmp.ne.s32.totalorder %s33, %s34
      %p46 = scmp.eq.s32.totalorder %s29, 1
      %p47 = por %p45, %p46
      %p49 = scmp.ne.s32.totalorder %s34, %s48
      %p50 = scmp.eq.s32.totalorder %s29, 0
      %p51 = por %p49, %p50
      %s53 = sadd.s32 %s52, 1
      %p56 = scmp.eq.s32.totalorder %s23, 1
      %p57 = scmp.ne.s32.totalorder %s52, %s54
      %p58 = scmp.eq.s32.totalorder %s23, 0
      %p59 = por %p57, %p58
      %p60 = scmp.ne.s32.totalorder %s52, %s54
      %p61 = scmp.eq.s32.totalorder %s28, 1
      %p62 = por %p60, %p61
      %p63 = scmp.ne.s32.totalorder %s54, %s55
      %p64 = scmp.eq.s32.totalorder %s28, 0
      %p65 = por %p63, %p64
      %p66 = scmp.ne.s32.totalorder %s54, %s55
      %p67 = scmp.eq.s32.totalorder %s29, 1
      %p68 = por %p66, %p67
      %p70 = scmp.ne.s32.totalorder %s55, %s69
      %p71 = scmp.eq.s32.totalorder %s29, 0
      %p72 = por %p70, %p71
      %s74 = sadd.s32 %s73, 1
      %p77 = scmp.eq.s32.totalorder %s23, 1
      %p78 = scmp.ne.s32.totalorder %s73, %s75
      %p79 = scmp.eq.s32.totalorder %s23, 0
      %p80 = por %p78, %p79
      %p81 = scmp.ne.s32.totalorder %s73, %s75
      %p82 = scmp.eq.s32.totalorder %s28, 1
      %p83 = por %p81, %p82
      %p84 = scmp.ne.s32.totalorder %s75, %s76
      %p85 = scmp.eq.s32.totalorder %s28, 0
      %p86 = por %p84, %p85
      %p87 = scmp.ne.s32.totalorder %s75, %s76
      %p88 = scmp.eq.s32.totalorder %s29, 1
      %p89 = por %p87, %p88
      %p91 = scmp.ne.s32.totalorder %s76, %s90
      %p92 = scmp.eq.s32.totalorder %s29, 0
      %p93 = por %p91, %p92
      %s94 = ssub.s32 %s23, 1
      %p95 = scmp.gt.s32.totalorder %s94, 0
      %s96 = scalar_select %p95, %s94, 0
      %s97 = ssub.s32 %s30, 1
      %p98 = scmp.gt.s32.totalorder %s97, 0
      %s99 = scalar_select %p98, %s97, 0
      %s100 = ssub.s32 %s96, %s99
      %p101 = scmp.eq.s32.totalorder %s100, 0
      %s103 = sadd.s32 %s102, 1
      %s104 = scalar_select %p101, %s102, %s103
      %p107 = pneg %p101
      %p108 = scmp.eq.s32.totalorder %s23, 1
      %p109 = por %p107, %p108
      %p110 = scmp.ne.s32.totalorder %s102, %s105
      %p111 = scmp.eq.s32.totalorder %s23, 0
      %p112 = por %p110, %p111
      %p113 = scmp.ne.s32.totalorder %s102, %s105
      %p114 = scmp.eq.s32.totalorder %s28, 1
      %p115 = por %p113, %p114
      %p116 = scmp.ne.s32.totalorder %s105, %s106
      %p117 = scmp.eq.s32.totalorder %s28, 0
      %p118 = por %p116, %p117
      %p119 = scmp.ne.s32.totalorder %s105, %s106
      %p120 = scmp.eq.s32.totalorder %s29, 1
      %p121 = por %p119, %p120
      %p123 = scmp.ne.s32.totalorder %s106, %s122
      %p124 = scmp.eq.s32.totalorder %s29, 0
      %p125 = por %p123, %p124
      %s126 = ssub.s32 %s23, %s30
      %p127 = scmp.eq.s32.totalorder %s126, 0
      %s129 = sadd.s32 %s128, 1
      %s130 = scalar_select %p127, %s128, %s129
      %p133 = pneg %p127
      %p134 = scmp.eq.s32.totalorder %s23, 1
      %p135 = por %p133, %p134
      %p136 = scmp.ne.s32.totalorder %s128, %s131
      %p137 = scmp.eq.s32.totalorder %s23, 0
      %p138 = por %p136, %p137
      %p139 = scmp.ne.s32.totalorder %s128, %s131
      %p140 = scmp.eq.s32.totalorder %s28, 1
      %p141 = por %p139, %p140
      %p142 = scmp.ne.s32.totalorder %s131, %s132
      %p143 = scmp.eq.s32.totalorder %s28, 0
      %p144 = por %p142, %p143
      %p145 = scmp.ne.s32.totalorder %s131, %s132
      %p146 = scmp.eq.s32.totalorder %s29, 1
      %p147 = por %p145, %p146
      %p149 = scmp.ne.s32.totalorder %s132, %s148
      %p150 = scmp.eq.s32.totalorder %s29, 0
      %p151 = por %p149, %p150
      %s152 = sadd.s32 %s23, 1
      %p153 = scmp.lt.s32.totalorder %s152, 1
      %s154 = scalar_select %p153, %s152, 1
      %s155 = sadd.s32 %s30, 1
      %p156 = scmp.lt.s32.totalorder %s155, 1
      %s157 = scalar_select %p156, %s155, 1
      %s158 = ssub.s32 %s154, %s157
      %p159 = scmp.eq.s32.totalorder %s158, 0
      %s161 = sadd.s32 %s160, 1
      %s162 = scalar_select %p159, %s160, %s161
      %p165 = pneg %p159
      %p166 = scmp.eq.s32.totalorder %s23, 1
      %p167 = por %p165, %p166
      %p168 = scmp.ne.s32.totalorder %s160, %s163
      %p169 = scmp.eq.s32.totalorder %s23, 0
      %p170 = por %p168, %p169
      %p171 = scmp.ne.s32.totalorder %s160, %s163
      %p172 = scmp.eq.s32.totalorder %s28, 1
      %p173 = por %p171, %p172
      %p174 = scmp.ne.s32.totalorder %s163, %s164
      %p175 = scmp.eq.s32.totalorder %s28, 0
      %p176 = por %p174, %p175
      %p177 = scmp.ne.s32.totalorder %s163, %s164
      %p178 = scmp.eq.s32.totalorder %s29, 1
      %p179 = por %p177, %p178
      %p181 = scmp.ne.s32.totalorder %s164, %s180
      %p182 = scmp.eq.s32.totalorder %s29, 0
      %p183 = por %p181, %p182
      %s184 = ssub.s32 %s23, %s30
      %p185 = scmp.eq.s32.totalorder %s184, 0
      %s187 = sadd.s32 %s186, 1
      %s188 = scalar_select %p185, %s186, %s187
      %p191 = pneg %p185
      %p192 = scmp.eq.s32.totalorder %s23, 1
      %p193 = por %p191, %p192
      %p194 = scmp.ne.s32.totalorder %s186, %s189
      %p195 = scmp.eq.s32.totalorder %s23, 0
      %p196 = por %p194, %p195
      %p197 = scmp.ne.s32.totalorder %s186, %s189
      %p198 = scmp.eq.s32.totalorder %s28, 1
      %p199 = por %p197, %p198
      %p200 = scmp.ne.s32.totalorder %s189, %s190
      %p201 = scmp.eq.s32.totalorder %s28, 0
      %p202 = por %p200, %p201
      %p203 = scmp.ne.s32.totalorder %s189, %s190
      %p204 = scmp.eq.s32.totalorder %s29, 1
      %p205 = por %p203, %p204
      %p207 = scmp.ne.s32.totalorder %s190, %s206
      %p208 = scmp.eq.s32.totalorder %s29, 0
      %p209 = por %p207, %p208
      %p210 = scmp.le.s32.totalorder 1, %s23
      %p211 = scmp.lt.s32.totalorder %s23, 3
      %p212 = pnand %p210, %p211
      %p213 = pneg %p212
      // Predicated region
      $region9: #{conv3dc_forward.1} parent=5 // pred_check
        _
      $region10: #{conv3dc_forward.1} parent=5 // pred_check_branch
        %215 = sbr.rel (%p212) target = $region12
      $region11: #{conv3dc_forward.1} parent=5 // pred_region
        %s216 = ssub.s32 %s23, 1
        // Predicated region
        $region13: #{conv3dc_forward.1} parent=11 // pred_check
          %p217 = pneg %p44
        $region14: #{conv3dc_forward.1} parent=11 // pred_check_branch
          %219 = sbr.rel (%p217) target = $region16
        $region15: #{conv3dc_forward.1} parent=11 // pred_region
          %s221 = ssub.s32 16, 16
          %222 = vsyncadd [#allocation6], %s221
          %s224 = sshll.u32 %s0, 4
          %s225 = int_to_ptr.vmem [resolvable:$true] %s224
          %227 = dma.vmem_to_smem %s225, 16, [#allocation3], [#allocation6]
        $region16: #{conv3dc_forward.1} parent=11 // pred_fallthru
          _
        // Predicated region
        $region17: #{conv3dc_forward.1} parent=11 // pred_check
          %p228 = pneg %p65
        $region18: #{conv3dc_forward.1} parent=11 // pred_check_branch
          %230 = sbr.rel (%p228) target = $region20
        $region19: #{conv3dc_forward.1} parent=11 // pred_region
          %s232 = ssub.s32 16, 16
          %233 = vsyncadd [#allocation8], %s232
          %s235 = sshll.u32 %s1, 4
          %s236 = int_to_ptr.vmem [resolvable:$true] %s235
          %238 = dma.vmem_to_smem %s236, 16, [#allocation7], [#allocation8]
        $region20: #{conv3dc_forward.1} parent=11 // pred_fallthru
          _
        // Predicated region
        $region21: #{conv3dc_forward.1} parent=11 // pred_check
          %p239 = pneg %p86
        $region22: #{conv3dc_forward.1} parent=11 // pred_check_branch
          %241 = sbr.rel (%p239) target = $region24
        $region23: #{conv3dc_forward.1} parent=11 // pred_region
          %s243 = ssub.s32 16, 16
          %244 = vsyncadd [#allocation8], %s243
          %s246 = sshll.u32 %s2, 4
          %s247 = int_to_ptr.vmem [resolvable:$true] %s246
          %249 = dma.vmem_to_smem %s247, 16, [#allocation9], [#allocation8]
        $region24: #{conv3dc_forward.1} parent=11 // pred_fallthru
          _
      $region12: #{conv3dc_forward.1} parent=5 // pred_fallthru
        _
      %p250 = scmp.lt.s32.totalorder %s23, 2
      // Predicated region
      $region25: #{conv3dc_forward.1} parent=5 // pred_check
        %p251 = pneg %p250
      $region26: #{conv3dc_forward.1} parent=5 // pred_check_branch
        %253 = sbr.rel (%p251) target = $region28
      $region27: #{conv3dc_forward.1} parent=5 // pred_region
        // Predicated region
        $region29: #{conv3dc_forward.1} parent=27 // pred_check
          %p254 = pneg %p112
        $region30: #{conv3dc_forward.1} parent=27 // pred_check_branch
          %256 = sbr.rel (%p254) target = $region32
        $region31: #{conv3dc_forward.1} parent=27 // pred_region
          #allocation16 [shape = 'u32[6]{0}', space=smem, size = 0x18, scoped, tag = 'DMA stride descriptor']
          %s257 = sand.u32 %s102, 1
          %s258 = scalar_lea.sflag [#allocation4], %s257
          %s259 = sand.u32 %s102, 1
          %s260 = smul.addr %s259, 80
          %s261 = scalar_lea.vmem [#allocation10], %s260
          %s262 = ssub.s32 %s23, 1
          %p263 = scmp.gt.s32.totalorder %s262, 0
          %s264 = scalar_select %p263, %s262, 0
          %s265 = smul.u32 5, %s264
          %s267 = ssub.s32 1280, 1280
          %268 = vsyncadd %s258, %s267
          %s269 = smul.addr %s265, 128
          %s270 = scalar_lea.hbm %s3, %s269
          %s272 = sshll.u32 1, 14
          %s273 = sxor.u32 4294967295, %s272
          %s275 = sld [smem:[#allocation0]]
          %s276 = sadd.s32 2, %s275
          %s278 = sshll.u32 7, 26
          %s279 = sxor.u32 4294967295, %s278
          %s280 = sand.u32 0, %s279
          %s281 = sshll.u32 %s276, 26
          %s282 = sor.u32 %s280, %s281
          %s283 = sshll.u32 %s261, 4
          %s284 = int_to_ptr.vmem [resolvable:$true] %s283
          %290 = sst [smem:[#allocation16]] 1280
          %s291 = scalar_lea.smem [#allocation16], 1
          %292 = sst [smem:[%s291]] 640
          %s293 = scalar_lea.smem [#allocation16], 2
          %294 = sst [smem:[%s293]] 5
          %s295 = scalar_lea.smem [#allocation16], 3
          %296 = sst [smem:[%s295]] 128
          %s297 = scalar_lea.smem [#allocation16], 4
          %298 = sst [smem:[%s297]] 128
          %s299 = scalar_lea.smem [#allocation16], 5
          %300 = sst [smem:[%s299]] 8
          %302 = dma.general %s270, 1280, %s284, %s258, [#allocation15], [#allocation16], %s282, 0
        $region32: #{conv3dc_forward.1} parent=27 // pred_fallthru
          _
        // Predicated region
        $region33: #{conv3dc_forward.1} parent=27 // pred_check
          %p303 = pneg %p138
        $region34: #{conv3dc_forward.1} parent=27 // pred_check_branch
          %305 = sbr.rel (%p303) target = $region36
        $region35: #{conv3dc_forward.1} parent=27 // pred_region
          #allocation18 [shape = 'u32[6]{0}', space=smem, size = 0x18, scoped, tag = 'DMA stride descriptor']
          %s306 = sand.u32 %s23, 1
          %s307 = scalar_lea.sflag [#allocation12], %s306
          %s308 = sand.u32 %s128, 1
          %s309 = smul.addr %s308, 80
          %s310 = scalar_lea.vmem [#allocation11], %s309
          %s311 = smul.u32 5, %s23
          %s313 = ssub.s32 1280, 1280
          %314 = vsyncadd %s307, %s313
          %s315 = smul.addr %s311, 128
          %s316 = scalar_lea.hbm %s4, %s315
          %s318 = sshll.u32 1, 14
          %s319 = sxor.u32 4294967295, %s318
          %s321 = sld [smem:[#allocation0]]
          %s322 = sadd.s32 2, %s321
          %s324 = sshll.u32 7, 26
          %s325 = sxor.u32 4294967295, %s324
          %s326 = sand.u32 0, %s325
          %s327 = sshll.u32 %s322, 26
          %s328 = sor.u32 %s326, %s327
          %s329 = sshll.u32 %s310, 4
          %s330 = int_to_ptr.vmem [resolvable:$true] %s329
          %336 = sst [smem:[#allocation18]] 1280
          %s337 = scalar_lea.smem [#allocation18], 1
          %338 = sst [smem:[%s337]] 640
          %s339 = scalar_lea.smem [#allocation18], 2
          %340 = sst [smem:[%s339]] 5
          %s341 = scalar_lea.smem [#allocation18], 3
          %342 = sst [smem:[%s341]] 128
          %s343 = scalar_lea.smem [#allocation18], 4
          %344 = sst [smem:[%s343]] 128
          %s345 = scalar_lea.smem [#allocation18], 5
          %346 = sst [smem:[%s345]] 8
          %348 = dma.general %s316, 1280, %s330, %s307, [#allocation17], [#allocation18], %s328, 0
        $region36: #{conv3dc_forward.1} parent=27 // pred_fallthru
          _
        // Predicated region
        $region37: #{conv3dc_forward.1} parent=27 // pred_check
          %p349 = pneg %p170
        $region38: #{conv3dc_forward.1} parent=27 // pred_check_branch
          %351 = sbr.rel (%p349) target = $region40
        $region39: #{conv3dc_forward.1} parent=27 // pred_region
          #allocation20 [shape = 'u32[6]{0}', space=smem, size = 0x18, scoped, tag = 'DMA stride descriptor']
          %s352 = sand.u32 %s23, 1
          %s353 = scalar_lea.sflag [#allocation12], %s352
          %s354 = sand.u32 %s160, 1
          %s355 = smul.addr %s354, 80
          %s356 = scalar_lea.vmem [#allocation13], %s355
          %s357 = sadd.s32 %s23, 1
          %p358 = scmp.lt.s32.totalorder %s357, 1
          %s359 = scalar_select %p358, %s357, 1
          %s360 = smul.u32 5, %s359
          %s362 = ssub.s32 1280, 1280
          %363 = vsyncadd %s353, %s362
          %s364 = smul.addr %s360, 128
          %s365 = scalar_lea.hbm %s5, %s364
          %s367 = sshll.u32 1, 14
          %s368 = sxor.u32 4294967295, %s367
          %s370 = sld [smem:[#allocation0]]
          %s371 = sadd.s32 2, %s370
          %s373 = sshll.u32 7, 26
          %s374 = sxor.u32 4294967295, %s373
          %s375 = sand.u32 0, %s374
          %s376 = sshll.u32 %s371, 26
          %s377 = sor.u32 %s375, %s376
          %s378 = sshll.u32 %s356, 4
          %s379 = int_to_ptr.vmem [resolvable:$true] %s378
          %385 = sst [smem:[#allocation20]] 1280
          %s386 = scalar_lea.smem [#allocation20], 1
          %387 = sst [smem:[%s386]] 640
          %s388 = scalar_lea.smem [#allocation20], 2
          %389 = sst [smem:[%s388]] 5
          %s390 = scalar_lea.smem [#allocation20], 3
          %391 = sst [smem:[%s390]] 128
          %s392 = scalar_lea.smem [#allocation20], 4
          %393 = sst [smem:[%s392]] 128
          %s394 = scalar_lea.smem [#allocation20], 5
          %395 = sst [smem:[%s394]] 8
          %397 = dma.general %s365, 1280, %s379, %s353, [#allocation19], [#allocation20], %s377, 0
        $region40: #{conv3dc_forward.1} parent=27 // pred_fallthru
          _
      $region28: #{conv3dc_forward.1} parent=5 // pred_fallthru
        _
      %p398 = scmp.le.s32.totalorder 1, %s23
      %p399 = scmp.lt.s32.totalorder %s23, 3
      %p400 = pnand %p398, %p399
      %p401 = pneg %p400
      // Predicated region
      $region41: #{conv3dc_forward.1} parent=5 // pred_check
        _
      $region42: #{conv3dc_forward.1} parent=5 // pred_check_branch
        %403 = sbr.rel (%p400) target = $region44
      $region43: #{conv3dc_forward.1} parent=5 // pred_region
        %s404 = ssub.s32 %s23, 1
        // Predicated region
        $region45: #{conv3dc_forward.1} parent=43 // pred_check
          %p405 = pneg %p44
        $region46: #{conv3dc_forward.1} parent=43 // pred_check_branch
          %407 = sbr.rel (%p405) target = $region48
        $region47: #{conv3dc_forward.1} parent=43 // pred_region
          %408 = dma.done [#allocation6], 16
        $region48: #{conv3dc_forward.1} parent=43 // pred_fallthru
          _
        // Predicated region
        $region49: #{conv3dc_forward.1} parent=43 // pred_check
          %p409 = pneg %p65
        $region50: #{conv3dc_forward.1} parent=43 // pred_check_branch
          %411 = sbr.rel (%p409) target = $region52
        $region51: #{conv3dc_forward.1} parent=43 // pred_region
          %412 = dma.done [#allocation8], 16
        $region52: #{conv3dc_forward.1} parent=43 // pred_fallthru
          _
        // Predicated region
        $region53: #{conv3dc_forward.1} parent=43 // pred_check
          %p413 = pneg %p86
        $region54: #{conv3dc_forward.1} parent=43 // pred_check_branch
          %415 = sbr.rel (%p413) target = $region56
        $region55: #{conv3dc_forward.1} parent=43 // pred_region
          %416 = dma.done [#allocation8], 16
        $region56: #{conv3dc_forward.1} parent=43 // pred_fallthru
          _
        %s417 = sand.u32 %s105, 1
        %s418 = scalar_lea.sflag [#allocation4], %s417
        %s419 = sand.u32 %s105, 1
        %s420 = smul.addr %s419, 80
        %s421 = scalar_lea.vmem [#allocation10], %s420
        // Predicated region
        $region57: #{conv3dc_forward.1} parent=43 // pred_check
          %p422 = pneg %p118
        $region58: #{conv3dc_forward.1} parent=43 // pred_check_branch
          %424 = sbr.rel (%p422) target = $region60
        $region59: #{conv3dc_forward.1} parent=43 // pred_region
          %425 = dma.done %s418, 1280
        $region60: #{conv3dc_forward.1} parent=43 // pred_fallthru
          _
        %s426 = sand.u32 %s28, 1
        %s427 = scalar_lea.sflag [#allocation12], %s426
        %s428 = sand.u32 %s131, 1
        %s429 = smul.addr %s428, 80
        %s430 = scalar_lea.vmem [#allocation11], %s429
        // Predicated region
        $region61: #{conv3dc_forward.1} parent=43 // pred_check
          %p431 = pneg %p144
        $region62: #{conv3dc_forward.1} parent=43 // pred_check_branch
          %433 = sbr.rel (%p431) target = $region64
        $region63: #{conv3dc_forward.1} parent=43 // pred_region
          %434 = dma.done %s427, 1280
        $region64: #{conv3dc_forward.1} parent=43 // pred_fallthru
          _
        %s435 = sand.u32 %s28, 1
        %s436 = scalar_lea.sflag [#allocation12], %s435
        %s437 = sand.u32 %s163, 1
        %s438 = smul.addr %s437, 80
        %s439 = scalar_lea.vmem [#allocation13], %s438
        // Predicated region
        $region65: #{conv3dc_forward.1} parent=43 // pred_check
          %p440 = pneg %p176
        $region66: #{conv3dc_forward.1} parent=43 // pred_check_branch
          %442 = sbr.rel (%p440) target = $region68
        $region67: #{conv3dc_forward.1} parent=43 // pred_region
          %443 = dma.done %s436, 1280
        $region68: #{conv3dc_forward.1} parent=43 // pred_fallthru
          _
        %444 = sfence
        %p445 = pneg %p44
        %p446 = pneg %p41
        %p447 = pneg %p65
        %p448 = pneg %p62
        %p449 = pneg %p86
        %p450 = pneg %p83
        %s451 = sand.u32 %s105, 1
        %s452 = scalar_lea.sflag [#allocation4], %s451
        %s453 = sand.u32 %s105, 1
        %s454 = smul.addr %s453, 80
        %s455 = scalar_lea.vmem [#allocation10], %s454
        %p456 = pneg %p118
        %p457 = pneg %p115
        %s458 = sand.u32 %s28, 1
        %s459 = scalar_lea.sflag [#allocation12], %s458
        %s460 = sand.u32 %s131, 1
        %s461 = smul.addr %s460, 80
        %s462 = scalar_lea.vmem [#allocation11], %s461
        %p463 = pneg %p144
        %p464 = pneg %p141
        %s465 = sand.u32 %s28, 1
        %s466 = scalar_lea.sflag [#allocation12], %s465
        %s467 = sand.u32 %s163, 1
        %s468 = smul.addr %s467, 80
        %s469 = scalar_lea.vmem [#allocation13], %s468
        %p470 = pneg %p176
        %p471 = pneg %p173
        %p472 = pneg %p202
        %p473 = pneg %p199
        %s474 = sand.u32 %s189, 1
        %s475 = scalar_lea.sflag [#allocation5], %s474
        %s476 = sand.u32 %s189, 1
        %s477 = smul.addr %s476, 80
        %s478 = scalar_lea.vmem [#allocation14], %s477
        %s479 = ssub.s32 %s28, 1
        %p480 = scmp.gt.s32.totalorder %s479, 0
        %s481 = scalar_select %p480, %s479, 0
        %s482 = smul.u32 5, %s481
        %s483 = smul.u32 5, %s28
        %s484 = sadd.s32 %s28, 1
        %p485 = scmp.lt.s32.totalorder %s484, 1
        %s486 = scalar_select %p485, %s484, 1
        %s487 = smul.u32 5, %s486
        %s488 = smul.u32 5, %s28
        %489 = vst [vmem:[#allocation2] sm:$0xff] 0.0
        %vm490 = vcmask 15360
        %491 = vst.msk [vmem:[#allocation2 + $0x8] sm:$0xff] %vm490, 0.0
        %492 = vst [vmem:[#allocation2 + $0x10] sm:$0x3] 0.0
        %vm493 = vcmask 9216
        %494 = vst.msk [vmem:[#allocation2 + $0x18] sm:$0x3] %vm493, 0.0
        %495 = vst [vmem:[#allocation2 + $0x20] sm:$0xff] 0.0
        %496 = vst.msk [vmem:[#allocation2 + $0x28] sm:$0xff] %vm490, 0.0
        %497 = vst [vmem:[#allocation2 + $0x30] sm:$0x3] 0.0
        %498 = vst.msk [vmem:[#allocation2 + $0x38] sm:$0x3] %vm493, 0.0
        %499 = vst [vmem:[#allocation2 + $0x40] sm:$0xff] 0.0
        %500 = vst.msk [vmem:[#allocation2 + $0x48] sm:$0xff] %vm490, 0.0
        %501 = vst [vmem:[#allocation2 + $0x50] sm:$0x3] 0.0
        %502 = vst.msk [vmem:[#allocation2 + $0x58] sm:$0x3] %vm493, 0.0
        %503 = vst [vmem:[#allocation2 + $0x60] sm:$0xff] 0.0
        %504 = vst.msk [vmem:[#allocation2 + $0x68] sm:$0xff] %vm490, 0.0
        %505 = vst [vmem:[#allocation2 + $0x70] sm:$0x3] 0.0
        %506 = vst.msk [vmem:[#allocation2 + $0x78] sm:$0x3] %vm493, 0.0
        %507 = vst [vmem:[#allocation2 + $0x80] sm:$0xff] 0.0
        %508 = vst.msk [vmem:[#allocation2 + $0x88] sm:$0xff] %vm490, 0.0
        %509 = vst [vmem:[#allocation2 + $0x90] sm:$0x3] 0.0
        %510 = vst.msk [vmem:[#allocation2 + $0x98] sm:$0x3] %vm493, 0.0
        %511 = vst [vmem:[#allocation2 + $0xa0] sm:$0xff] 0.0
        %512 = vst.msk [vmem:[#allocation2 + $0xa8] sm:$0xff] %vm490, 0.0
        %513 = vst [vmem:[#allocation2 + $0xb0] sm:$0x3] 0.0
        %514 = vst.msk [vmem:[#allocation2 + $0xb8] sm:$0x3] %vm493, 0.0
        %515 = vst [vmem:[#allocation2 + $0xc0] sm:$0xff] 0.0
        %516 = vst.msk [vmem:[#allocation2 + $0xc8] sm:$0xff] %vm490, 0.0
        %517 = vst [vmem:[#allocation2 + $0xd0] sm:$0x3] 0.0
        %518 = vst.msk [vmem:[#allocation2 + $0xd8] sm:$0x3] %vm493, 0.0
        %519 = vst [vmem:[#allocation2 + $0xe0] sm:$0xff] 0.0
        %520 = vst.msk [vmem:[#allocation2 + $0xe8] sm:$0xff] %vm490, 0.0
        %521 = vst [vmem:[#allocation2 + $0xf0] sm:$0x3] 0.0
        %522 = vst.msk [vmem:[#allocation2 + $0xf8] sm:$0x3] %vm493, 0.0
        %523 = vst [vmem:[#allocation2 + $0x100] sm:$0xff] 0.0
        %524 = vst.msk [vmem:[#allocation2 + $0x108] sm:$0xff] %vm490, 0.0
        %525 = vst [vmem:[#allocation2 + $0x110] sm:$0x3] 0.0
        %526 = vst.msk [vmem:[#allocation2 + $0x118] sm:$0x3] %vm493, 0.0
        %527 = vst [vmem:[#allocation2 + $0x120] sm:$0xff] 0.0
        %528 = vst.msk [vmem:[#allocation2 + $0x128] sm:$0xff] %vm490, 0.0
        %529 = vst [vmem:[#allocation2 + $0x130] sm:$0x3] 0.0
        %530 = vst.msk [vmem:[#allocation2 + $0x138] sm:$0x3] %vm493, 0.0
        %531 = vst [vmem:[#allocation2 + $0x140] sm:$0xff] 0.0
        %532 = vst.msk [vmem:[#allocation2 + $0x148] sm:$0xff] %vm490, 0.0
        %533 = vst [vmem:[#allocation2 + $0x150] sm:$0x3] 0.0
        %534 = vst.msk [vmem:[#allocation2 + $0x158] sm:$0x3] %vm493, 0.0
        %535 = vst [vmem:[#allocation2 + $0x160] sm:$0xff] 0.0
        %536 = vst.msk [vmem:[#allocation2 + $0x168] sm:$0xff] %vm490, 0.0
        %537 = vst [vmem:[#allocation2 + $0x170] sm:$0x3] 0.0
        %538 = vst.msk [vmem:[#allocation2 + $0x178] sm:$0x3] %vm493, 0.0
        %539 = vst [vmem:[#allocation2 + $0x180] sm:$0xff] 0.0
        %540 = vst.msk [vmem:[#allocation2 + $0x188] sm:$0xff] %vm490, 0.0
        %541 = vst [vmem:[#allocation2 + $0x190] sm:$0x3] 0.0
        %542 = vst.msk [vmem:[#allocation2 + $0x198] sm:$0x3] %vm493, 0.0
        %543 = vst [vmem:[#allocation2 + $0x1a0] sm:$0xff] 0.0
        %544 = vst.msk [vmem:[#allocation2 + $0x1a8] sm:$0xff] %vm490, 0.0
        %545 = vst [vmem:[#allocation2 + $0x1b0] sm:$0x3] 0.0
        %546 = vst.msk [vmem:[#allocation2 + $0x1b8] sm:$0x3] %vm493, 0.0
        %v547 = vld [vmem:[%s430] sm:$0xff]
        %v548 = vld [vmem:[%s430 + $0x8] sm:$0xff]
        %v549 = vld [vmem:[%s430 + $0x10] sm:$0xff]
        %v550 = vld [vmem:[%s430 + $0x18] sm:$0xff]
        %v551 = vld [vmem:[%s430 + $0x20] sm:$0xff]
        %v552 = vld [vmem:[%s430 + $0x28] sm:$0xff]
        %v553 = vld [vmem:[%s430 + $0x30] sm:$0xff]
        %v554 = vld [vmem:[%s430 + $0x38] sm:$0xff]
        %v555 = vld [vmem:[%s430 + $0x40] sm:$0xff]
        %v556 = vld [vmem:[%s430 + $0x48] sm:$0xff]
        %v567 = vrot.slane %v547, 7
        %v568 = vrot.slane %v548, 7
        %v569 = vrot.slane %v549, 7
        %v570 = vrot.slane %v550, 7
        %v571 = vrot.slane %v551, 7
        %v572 = vrot.slane %v552, 7
        %v573 = vrot.slane %v553, 7
        %v574 = vrot.slane %v554, 7
        %v575 = vrot.slane %v555, 7
        %v576 = vrot.slane %v556, 7
        %577 = vrot.lane.b32.xlu0 %v567, 1
        %v578 = vpop.permute.xlu0 %577
        %579 = vrot.lane.b32.xlu0 %v568, 1
        %v580 = vpop.permute.xlu0 %579
        %581 = vrot.lane.b32.xlu0 %v569, 1
        %v582 = vpop.permute.xlu0 %581
        %583 = vrot.lane.b32.xlu0 %v570, 1
        %v584 = vpop.permute.xlu0 %583
        %585 = vrot.lane.b32.xlu0 %v571, 1
        %v586 = vpop.permute.xlu0 %585
        %587 = vrot.lane.b32.xlu0 %v572, 1
        %v588 = vpop.permute.xlu0 %587
        %589 = vrot.lane.b32.xlu0 %v573, 1
        %v590 = vpop.permute.xlu0 %589
        %591 = vrot.lane.b32.xlu0 %v574, 1
        %v592 = vpop.permute.xlu0 %591
        %593 = vrot.lane.b32.xlu0 %v575, 1
        %v594 = vpop.permute.xlu0 %593
        %595 = vrot.lane.b32.xlu0 %v576, 1
        %v596 = vpop.permute.xlu0 %595
        %s607 = scalar_lea.vmem [#allocation2], 32
        %vm608 = vcmask 1047561
        %609 = vst.msk [vmem:[%s607] sm:$0xfe] %vm608, %v578
        %vm610 = vcmask 7169
        %611 = vst.msk [vmem:[%s607 + $0x8] sm:$0xfe] %vm610, %v578
        %vm612 = vcmask 1040392
        %613 = vst.msk [vmem:[%s607 + $0x10] sm:$0x1] %vm612, %v578
        %vm614 = vcmask 0
        %615 = vst.msk [vmem:[%s607 + $0x18] sm:$0x1] %vm614, %v578
        %616 = vst.msk [vmem:[%s607 + $0x20] sm:$0xfe] %vm608, %v580
        %617 = vst.msk [vmem:[%s607 + $0x28] sm:$0xfe] %vm610, %v580
        %618 = vst.msk [vmem:[%s607 + $0x30] sm:$0x1] %vm612, %v580
        %619 = vst.msk [vmem:[%s607 + $0x38] sm:$0x1] %vm614, %v580
        %620 = vst.msk [vmem:[%s607 + $0x40] sm:$0xfe] %vm608, %v582
        %621 = vst.msk [vmem:[%s607 + $0x48] sm:$0xfe] %vm610, %v582
        %622 = vst.msk [vmem:[%s607 + $0x50] sm:$0x1] %vm612, %v582
        %623 = vst.msk [vmem:[%s607 + $0x58] sm:$0x1] %vm614, %v582
        %624 = vst.msk [vmem:[%s607 + $0x60] sm:$0xfe] %vm608, %v584
        %625 = vst.msk [vmem:[%s607 + $0x68] sm:$0xfe] %vm610, %v584
        %626 = vst.msk [vmem:[%s607 + $0x70] sm:$0x1] %vm612, %v584
        %627 = vst.msk [vmem:[%s607 + $0x78] sm:$0x1] %vm614, %v584
        %628 = vst.msk [vmem:[%s607 + $0x80] sm:$0xfe] %vm608, %v586
        %629 = vst.msk [vmem:[%s607 + $0x88] sm:$0xfe] %vm610, %v586
        %630 = vst.msk [vmem:[%s607 + $0x90] sm:$0x1] %vm612, %v586
        %631 = vst.msk [vmem:[%s607 + $0x98] sm:$0x1] %vm614, %v586
        %632 = vst.msk [vmem:[%s607 + $0xe0] sm:$0xfe] %vm608, %v588
        %633 = vst.msk [vmem:[%s607 + $0xe8] sm:$0xfe] %vm610, %v588
        %634 = vst.msk [vmem:[%s607 + $0xf0] sm:$0x1] %vm612, %v588
        %635 = vst.msk [vmem:[%s607 + $0xf8] sm:$0x1] %vm614, %v588
        %636 = vst.msk [vmem:[%s607 + $0x100] sm:$0xfe] %vm608, %v590
        %637 = vst.msk [vmem:[%s607 + $0x108] sm:$0xfe] %vm610, %v590
        %638 = vst.msk [vmem:[%s607 + $0x110] sm:$0x1] %vm612, %v590
        %639 = vst.msk [vmem:[%s607 + $0x118] sm:$0x1] %vm614, %v590
        %640 = vst.msk [vmem:[%s607 + $0x120] sm:$0xfe] %vm608, %v592
        %641 = vst.msk [vmem:[%s607 + $0x128] sm:$0xfe] %vm610, %v592
        %642 = vst.msk [vmem:[%s607 + $0x130] sm:$0x1] %vm612, %v592
        %643 = vst.msk [vmem:[%s607 + $0x138] sm:$0x1] %vm614, %v592
        %644 = vst.msk [vmem:[%s607 + $0x140] sm:$0xfe] %vm608, %v594
        %645 = vst.msk [vmem:[%s607 + $0x148] sm:$0xfe] %vm610, %v594
        %646 = vst.msk [vmem:[%s607 + $0x150] sm:$0x1] %vm612, %v594
        %647 = vst.msk [vmem:[%s607 + $0x158] sm:$0x1] %vm614, %v594
        %648 = vst.msk [vmem:[%s607 + $0x160] sm:$0xfe] %vm608, %v596
        %649 = vst.msk [vmem:[%s607 + $0x168] sm:$0xfe] %vm610, %v596
        %650 = vst.msk [vmem:[%s607 + $0x170] sm:$0x1] %vm612, %v596
        %651 = vst.msk [vmem:[%s607 + $0x178] sm:$0x1] %vm614, %v596
        %p652 = scmp.gt.s32.totalorder %s28, 0
        %s653 = scalar_lea.vmem %s421, 32 [#allocation10]
        %v654 = vld [vmem:[%s653] sm:$0xff]
        %v655 = vld [vmem:[%s653 + $0x28] sm:$0xff]
        %s656 = scalar_select %p652, 1, 0
        %v657 = vstv %s656
        %vm658 = vcmp.eq.s32.totalorder %v657, 1
        %v659 = vsel %vm658, %v654, 0.0
        %v660 = vsel %vm658, %v655, 0.0
        %s661 = sadd.s32 %s28, 1
        %p662 = scmp.lt.s32.totalorder %s661, 2
        %v663 = vld [vmem:[%s439] sm:$0xff]
        %v664 = vld [vmem:[%s439 + $0x28] sm:$0xff]
        %s665 = scalar_select %p662, 1, 0
        %v666 = vstv %s665
        %vm667 = vcmp.eq.s32.totalorder %v666, 1
        %v668 = vsel %vm667, %v663, 0.0
        %v669 = vsel %vm667, %v664, 0.0
        %v672 = vrot.slane %v659, 7
        %v673 = vrot.slane %v660, 7
        %674 = vrot.lane.b32.xlu0 %v672, 1
        %v675 = vpop.permute.xlu0 %674
        %676 = vrot.lane.b32.xlu0 %v673, 1
        %v677 = vpop.permute.xlu0 %676
        %680 = vst.msk [vmem:[#allocation2] sm:$0xfe] %vm608, %v675
        %681 = vst.msk [vmem:[#allocation2 + $0x8] sm:$0xfe] %vm610, %v675
        %682 = vst.msk [vmem:[#allocation2 + $0x10] sm:$0x1] %vm612, %v675
        %683 = vst.msk [vmem:[#allocation2 + $0x18] sm:$0x1] %vm614, %v675
        %684 = vst.msk [vmem:[#allocation2 + $0xe0] sm:$0xfe] %vm608, %v677
        %685 = vst.msk [vmem:[#allocation2 + $0xe8] sm:$0xfe] %vm610, %v677
        %686 = vst.msk [vmem:[#allocation2 + $0xf0] sm:$0x1] %vm612, %v677
        %687 = vst.msk [vmem:[#allocation2 + $0xf8] sm:$0x1] %vm614, %v677
        %v690 = vrot.slane %v668, 7
        %v691 = vrot.slane %v669, 7
        %692 = vrot.lane.b32.xlu0 %v690, 1
        %v693 = vpop.permute.xlu0 %692
        %694 = vrot.lane.b32.xlu0 %v691, 1
        %v695 = vpop.permute.xlu0 %694
        %s698 = scalar_lea.vmem [#allocation2], 192
        %699 = vst.msk [vmem:[%s698] sm:$0xfe] %vm608, %v693
        %700 = vst.msk [vmem:[%s698 + $0x8] sm:$0xfe] %vm610, %v693
        %701 = vst.msk [vmem:[%s698 + $0x10] sm:$0x1] %vm612, %v693
        %702 = vst.msk [vmem:[%s698 + $0x18] sm:$0x1] %vm614, %v693
        %703 = vst.msk [vmem:[%s698 + $0xe0] sm:$0xfe] %vm608, %v695
        %704 = vst.msk [vmem:[%s698 + $0xe8] sm:$0xfe] %vm610, %v695
        %705 = vst.msk [vmem:[%s698 + $0xf0] sm:$0x1] %vm612, %v695
        %706 = vst.msk [vmem:[%s698 + $0xf8] sm:$0x1] %vm614, %v695
        %s707 = sld [smem:[#allocation9]]
        %v708 = vstv %s707
        %s709 = sld [smem:[#allocation9 + $0x1]]
        %v710 = vstv %s709
        %v711 = vld [vmem:[#allocation2] sm:$0xff]
        %v712 = vld [vmem:[#allocation2 + $0x20] sm:$0xff]
        %v713 = vld [vmem:[#allocation2 + $0x40] sm:$0xff]
        %v714 = vld [vmem:[#allocation2 + $0x60] sm:$0xff]
        %v715 = vld [vmem:[#allocation2 + $0x80] sm:$0xff]
        %v716 = vld [vmem:[#allocation2 + $0xa0] sm:$0xff]
        %v717 = vld [vmem:[#allocation2 + $0xc0] sm:$0xff]
        %s718 = scalar_lea.vmem [#allocation2], 224
        %v719 = vld [vmem:[%s718] sm:$0xff]
        %v720 = vld [vmem:[%s718 + $0x20] sm:$0xff]
        %v721 = vld [vmem:[%s718 + $0x40] sm:$0xff]
        %v722 = vld [vmem:[%s718 + $0x60] sm:$0xff]
        %v723 = vld [vmem:[%s718 + $0x80] sm:$0xff]
        %v724 = vld [vmem:[%s718 + $0xa0] sm:$0xff]
        %v725 = vld [vmem:[%s718 + $0xc0] sm:$0xff]
        %s726 = sld [smem:[#allocation3]]
        %s727 = sld [smem:[#allocation7]]
        %v728 = vstv %s726
        %v729 = vmul.f32 %v728, %v711
        %v730 = vmul.f32 %v728, %v712
        %v731 = vmul.f32 %v728, %v713
        %v732 = vmul.f32 %v728, %v714
        %v733 = vmul.f32 %v728, %v715
        %v734 = vstv %s727
        %v735 = vmul.f32 %v734, %v719
        %v736 = vmul.f32 %v734, %v720
        %v737 = vmul.f32 %v734, %v721
        %v738 = vmul.f32 %v734, %v722
        %v739 = vmul.f32 %v734, %v723
        %v740 = vsub.f32 %v729, %v735
        %v741 = vsub.f32 %v730, %v736
        %v742 = vsub.f32 %v731, %v737
        %v743 = vsub.f32 %v732, %v738
        %v744 = vsub.f32 %v733, %v739
        %v745 = vadd.f32 %v708, %v740
        %v746 = vadd.f32 %v708, %v741
        %v747 = vadd.f32 %v708, %v742
        %v748 = vadd.f32 %v708, %v743
        %v749 = vadd.f32 %v708, %v744
        %v750 = vmul.f32 %v728, %v719
        %v751 = vmul.f32 %v728, %v720
        %v752 = vmul.f32 %v728, %v721
        %v753 = vmul.f32 %v728, %v722
        %v754 = vmul.f32 %v728, %v723
        %v755 = vmul.f32 %v734, %v711
        %v756 = vmul.f32 %v734, %v712
        %v757 = vmul.f32 %v734, %v713
        %v758 = vmul.f32 %v734, %v714
        %v759 = vmul.f32 %v734, %v715
        %v760 = vadd.f32 %v750, %v755
        %v761 = vadd.f32 %v751, %v756
        %v762 = vadd.f32 %v752, %v757
        %v763 = vadd.f32 %v753, %v758
        %v764 = vadd.f32 %v754, %v759
        %v765 = vadd.f32 %v710, %v760
        %v766 = vadd.f32 %v710, %v761
        %v767 = vadd.f32 %v710, %v762
        %v768 = vadd.f32 %v710, %v763
        %v769 = vadd.f32 %v710, %v764
        %s770 = sld [smem:[#allocation3 + $0x1]]
        %s771 = sld [smem:[#allocation7 + $0x1]]
        %v772 = vstv %s770
        %v773 = vmul.f32 %v772, %v712
        %v774 = vmul.f32 %v772, %v713
        %v775 = vmul.f32 %v772, %v714
        %v776 = vmul.f32 %v772, %v715
        %v777 = vmul.f32 %v772, %v716
        %v778 = vstv %s771
        %v779 = vmul.f32 %v778, %v720
        %v780 = vmul.f32 %v778, %v721
        %v781 = vmul.f32 %v778, %v722
        %v782 = vmul.f32 %v778, %v723
        %v783 = vmul.f32 %v778, %v724
        %v784 = vsub.f32 %v773, %v779
        %v785 = vsub.f32 %v774, %v780
        %v786 = vsub.f32 %v775, %v781
        %v787 = vsub.f32 %v776, %v782
        %v788 = vsub.f32 %v777, %v783
        %v789 = vadd.f32 %v745, %v784
        %v790 = vadd.f32 %v746, %v785
        %v791 = vadd.f32 %v747, %v786
        %v792 = vadd.f32 %v748, %v787
        %v793 = vadd.f32 %v749, %v788
        %v794 = vmul.f32 %v772, %v720
        %v795 = vmul.f32 %v772, %v721
        %v796 = vmul.f32 %v772, %v722
        %v797 = vmul.f32 %v772, %v723
        %v798 = vmul.f32 %v772, %v724
        %v799 = vmul.f32 %v778, %v712
        %v800 = vmul.f32 %v778, %v713
        %v801 = vmul.f32 %v778, %v714
        %v802 = vmul.f32 %v778, %v715
        %v803 = vmul.f32 %v778, %v716
        %v804 = vadd.f32 %v794, %v799
        %v805 = vadd.f32 %v795, %v800
        %v806 = vadd.f32 %v796, %v801
        %v807 = vadd.f32 %v797, %v802
        %v808 = vadd.f32 %v798, %v803
        %v809 = vadd.f32 %v765, %v804
        %v810 = vadd.f32 %v766, %v805
        %v811 = vadd.f32 %v767, %v806
        %v812 = vadd.f32 %v768, %v807
        %v813 = vadd.f32 %v769, %v808
        %s814 = sld [smem:[#allocation3 + $0x2]]
        %s815 = sld [smem:[#allocation7 + $0x2]]
        %v816 = vstv %s814
        %v817 = vmul.f32 %v816, %v713
        %v818 = vmul.f32 %v816, %v714
        %v819 = vmul.f32 %v816, %v715
        %v820 = vmul.f32 %v816, %v716
        %v821 = vmul.f32 %v816, %v717
        %v822 = vstv %s815
        %v823 = vmul.f32 %v822, %v721
        %v824 = vmul.f32 %v822, %v722
        %v825 = vmul.f32 %v822, %v723
        %v826 = vmul.f32 %v822, %v724
        %v827 = vmul.f32 %v822, %v725
        %v828 = vsub.f32 %v817, %v823
        %v829 = vsub.f32 %v818, %v824
        %v830 = vsub.f32 %v819, %v825
        %v831 = vsub.f32 %v820, %v826
        %v832 = vsub.f32 %v821, %v827
        %v833 = vadd.f32 %v789, %v828
        %v834 = vadd.f32 %v790, %v829
        %v835 = vadd.f32 %v791, %v830
        %v836 = vadd.f32 %v792, %v831
        %v837 = vadd.f32 %v793, %v832
        %v838 = vmul.f32 %v816, %v721
        %v839 = vmul.f32 %v816, %v722
        %v840 = vmul.f32 %v816, %v723
        %v841 = vmul.f32 %v816, %v724
        %v842 = vmul.f32 %v816, %v725
        %v843 = vmul.f32 %v822, %v713
        %v844 = vmul.f32 %v822, %v714
        %v845 = vmul.f32 %v822, %v715
        %v846 = vmul.f32 %v822, %v716
        %v847 = vmul.f32 %v822, %v717
        %v848 = vadd.f32 %v838, %v843
        %v849 = vadd.f32 %v839, %v844
        %v850 = vadd.f32 %v840, %v845
        %v851 = vadd.f32 %v841, %v846
        %v852 = vadd.f32 %v842, %v847
        %v853 = vadd.f32 %v809, %v848
        %v854 = vadd.f32 %v810, %v849
        %v855 = vadd.f32 %v811, %v850
        %v856 = vadd.f32 %v812, %v851
        %v857 = vadd.f32 %v813, %v852
        %v858 = vld [vmem:[#allocation2] sm:$0xff]
        %v859 = vld [vmem:[#allocation2 + $0x8] sm:$0xff]
        %v860 = vld [vmem:[#allocation2 + $0x20] sm:$0xff]
        %v861 = vld [vmem:[#allocation2 + $0x28] sm:$0xff]
        %v862 = vld [vmem:[#allocation2 + $0x40] sm:$0xff]
        %v863 = vld [vmem:[#allocation2 + $0x48] sm:$0xff]
        %v864 = vld [vmem:[#allocation2 + $0x60] sm:$0xff]
        %v865 = vld [vmem:[#allocation2 + $0x68] sm:$0xff]
        %v866 = vld [vmem:[#allocation2 + $0x80] sm:$0xff]
        %v867 = vld [vmem:[#allocation2 + $0x88] sm:$0xff]
        %v868 = vld [vmem:[#allocation2 + $0xa0] sm:$0xff]
        %v869 = vld [vmem:[#allocation2 + $0xa8] sm:$0xff]
        %v870 = vld [vmem:[#allocation2 + $0xc0] sm:$0xff]
        %v871 = vld [vmem:[#allocation2 + $0xc8] sm:$0xff]
        %v872 = vld [vmem:[%s718] sm:$0xff]
        %v873 = vld [vmem:[%s718 + $0x8] sm:$0xff]
        %v874 = vld [vmem:[%s718 + $0x20] sm:$0xff]
        %v875 = vld [vmem:[%s718 + $0x28] sm:$0xff]
        %v876 = vld [vmem:[%s718 + $0x40] sm:$0xff]
        %v877 = vld [vmem:[%s718 + $0x48] sm:$0xff]
        %v878 = vld [vmem:[%s718 + $0x60] sm:$0xff]
        %v879 = vld [vmem:[%s718 + $0x68] sm:$0xff]
        %v880 = vld [vmem:[%s718 + $0x80] sm:$0xff]
        %v881 = vld [vmem:[%s718 + $0x88] sm:$0xff]
        %v882 = vld [vmem:[%s718 + $0xa0] sm:$0xff]
        %v883 = vld [vmem:[%s718 + $0xa8] sm:$0xff]
        %v884 = vld [vmem:[%s718 + $0xc0] sm:$0xff]
        %v885 = vld [vmem:[%s718 + $0xc8] sm:$0xff]
        %s886 = sld [smem:[#allocation3 + $0x3]]
        %s887 = sld [smem:[#allocation7 + $0x3]]
        %v888 = vstv %s886
        %v889 = vmul.f32 %v888, %v858
        %v890 = vmul.f32 %v888, %v859
        %v891 = vmul.f32 %v888, %v860
        %v892 = vmul.f32 %v888, %v861
        %v893 = vmul.f32 %v888, %v862
        %v894 = vmul.f32 %v888, %v863
        %v895 = vmul.f32 %v888, %v864
        %v896 = vmul.f32 %v888, %v865
        %v897 = vmul.f32 %v888, %v866
        %v898 = vmul.f32 %v888, %v867
        %v899 = vstv %s887
        %v900 = vmul.f32 %v899, %v872
        %v901 = vmul.f32 %v899, %v873
        %v902 = vmul.f32 %v899, %v874
        %v903 = vmul.f32 %v899, %v875
        %v904 = vmul.f32 %v899, %v876
        %v905 = vmul.f32 %v899, %v877
        %v906 = vmul.f32 %v899, %v878
        %v907 = vmul.f32 %v899, %v879
        %v908 = vmul.f32 %v899, %v880
        %v909 = vmul.f32 %v899, %v881
        %v910 = vsub.f32 %v889, %v900
        %v911 = vsub.f32 %v890, %v901
        %v912 = vsub.f32 %v891, %v902
        %v913 = vsub.f32 %v892, %v903
        %v914 = vsub.f32 %v893, %v904
        %v915 = vsub.f32 %v894, %v905
        %v916 = vsub.f32 %v895, %v906
        %v917 = vsub.f32 %v896, %v907
        %v918 = vsub.f32 %v897, %v908
        %v919 = vsub.f32 %v898, %v909
        %930 = vrot.lane.b32.xlu0 %v910, 127
        %v931 = vpop.permute.xlu0 %930
        %932 = vrot.lane.b32.xlu0 %v911, 127
        %v933 = vpop.permute.xlu0 %932
        %934 = vrot.lane.b32.xlu0 %v912, 127
        %v935 = vpop.permute.xlu0 %934
        %936 = vrot.lane.b32.xlu0 %v913, 127
        %v937 = vpop.permute.xlu0 %936
        %938 = vrot.lane.b32.xlu0 %v914, 127
        %v939 = vpop.permute.xlu0 %938
        %940 = vrot.lane.b32.xlu0 %v915, 127
        %v941 = vpop.permute.xlu0 %940
        %942 = vrot.lane.b32.xlu0 %v916, 127
        %v943 = vpop.permute.xlu0 %942
        %944 = vrot.lane.b32.xlu0 %v917, 127
        %v945 = vpop.permute.xlu0 %944
        %946 = vrot.lane.b32.xlu0 %v918, 127
        %v947 = vpop.permute.xlu0 %946
        %948 = vrot.lane.b32.xlu0 %v919, 127
        %v949 = vpop.permute.xlu0 %948
        %vm950 = vcmask 1039360
        %v951 = vsel %vm950, %v931, %v933
        %v952 = vsel %vm950, %v935, %v937
        %v953 = vsel %vm950, %v939, %v941
        %v954 = vsel %vm950, %v943, %v945
        %v955 = vsel %vm950, %v947, %v949
        %v961 = vadd.f32 %v833, %v951
        %v962 = vadd.f32 %v834, %v952
        %v963 = vadd.f32 %v835, %v953
        %v964 = vadd.f32 %v836, %v954
        %v965 = vadd.f32 %v837, %v955
        %v966 = vmul.f32 %v888, %v872
        %v967 = vmul.f32 %v888, %v873
        %v968 = vmul.f32 %v888, %v874
        %v969 = vmul.f32 %v888, %v875
        %v970 = vmul.f32 %v888, %v876
        %v971 = vmul.f32 %v888, %v877
        %v972 = vmul.f32 %v888, %v878
        %v973 = vmul.f32 %v888, %v879
        %v974 = vmul.f32 %v888, %v880
        %v975 = vmul.f32 %v888, %v881
        %v976 = vmul.f32 %v899, %v858
        %v977 = vmul.f32 %v899, %v859
        %v978 = vmul.f32 %v899, %v860
        %v979 = vmul.f32 %v899, %v861
        %v980 = vmul.f32 %v899, %v862
        %v981 = vmul.f32 %v899, %v863
        %v982 = vmul.f32 %v899, %v864
        %v983 = vmul.f32 %v899, %v865
        %v984 = vmul.f32 %v899, %v866
        %v985 = vmul.f32 %v899, %v867
        %v986 = vadd.f32 %v966, %v976
        %v987 = vadd.f32 %v967, %v977
        %v988 = vadd.f32 %v968, %v978
        %v989 = vadd.f32 %v969, %v979
        %v990 = vadd.f32 %v970, %v980
        %v991 = vadd.f32 %v971, %v981
        %v992 = vadd.f32 %v972, %v982
        %v993 = vadd.f32 %v973, %v983
        %v994 = vadd.f32 %v974, %v984
        %v995 = vadd.f32 %v975, %v985
        %1006 = vrot.lane.b32.xlu0 %v986, 127
        %v1007 = vpop.permute.xlu0 %1006
        %1008 = vrot.lane.b32.xlu0 %v987, 127
        %v1009 = vpop.permute.xlu0 %1008
        %1010 = vrot.lane.b32.xlu0 %v988, 127
        %v1011 = vpop.permute.xlu0 %1010
        %1012 = vrot.lane.b32.xlu0 %v989, 127
        %v1013 = vpop.permute.xlu0 %1012
        %1014 = vrot.lane.b32.xlu0 %v990, 127
        %v1015 = vpop.permute.xlu0 %1014
        %1016 = vrot.lane.b32.xlu0 %v991, 127
        %v1017 = vpop.permute.xlu0 %1016
        %1018 = vrot.lane.b32.xlu0 %v992, 127
        %v1019 = vpop.permute.xlu0 %1018
        %1020 = vrot.lane.b32.xlu0 %v993, 127
        %v1021 = vpop.permute.xlu0 %1020
        %1022 = vrot.lane.b32.xlu0 %v994, 127
        %v1023 = vpop.permute.xlu0 %1022
        %1024 = vrot.lane.b32.xlu0 %v995, 127
        %v1025 = vpop.permute.xlu0 %1024
        %v1026 = vsel %vm950, %v1007, %v1009
        %v1027 = vsel %vm950, %v1011, %v1013
        %v1028 = vsel %vm950, %v1015, %v1017
        %v1029 = vsel %vm950, %v1019, %v1021
        %v1030 = vsel %vm950, %v1023, %v1025
        %v1036 = vadd.f32 %v853, %v1026
        %v1037 = vadd.f32 %v854, %v1027
        %v1038 = vadd.f32 %v855, %v1028
        %v1039 = vadd.f32 %v856, %v1029
        %v1040 = vadd.f32 %v857, %v1030
        %s1041 = sld [smem:[#allocation3 + $0x4]]
        %s1042 = sld [smem:[#allocation7 + $0x4]]
        %v1043 = vstv %s1041
        %v1044 = vmul.f32 %v1043, %v860
        %v1045 = vmul.f32 %v1043, %v861
        %v1046 = vmul.f32 %v1043, %v862
        %v1047 = vmul.f32 %v1043, %v863
        %v1048 = vmul.f32 %v1043, %v864
        %v1049 = vmul.f32 %v1043, %v865
        %v1050 = vmul.f32 %v1043, %v866
        %v1051 = vmul.f32 %v1043, %v867
        %v1052 = vmul.f32 %v1043, %v868
        %v1053 = vmul.f32 %v1043, %v869
        %v1054 = vstv %s1042
        %v1055 = vmul.f32 %v1054, %v874
        %v1056 = vmul.f32 %v1054, %v875
        %v1057 = vmul.f32 %v1054, %v876
        %v1058 = vmul.f32 %v1054, %v877
        %v1059 = vmul.f32 %v1054, %v878
        %v1060 = vmul.f32 %v1054, %v879
        %v1061 = vmul.f32 %v1054, %v880
        %v1062 = vmul.f32 %v1054, %v881
        %v1063 = vmul.f32 %v1054, %v882
        %v1064 = vmul.f32 %v1054, %v883
        %v1065 = vsub.f32 %v1044, %v1055
        %v1066 = vsub.f32 %v1045, %v1056
        %v1067 = vsub.f32 %v1046, %v1057
        %v1068 = vsub.f32 %v1047, %v1058
        %v1069 = vsub.f32 %v1048, %v1059
        %v1070 = vsub.f32 %v1049, %v1060
        %v1071 = vsub.f32 %v1050, %v1061
        %v1072 = vsub.f32 %v1051, %v1062
        %v1073 = vsub.f32 %v1052, %v1063
        %v1074 = vsub.f32 %v1053, %v1064
        %1085 = vrot.lane.b32.xlu0 %v1065, 127
        %v1086 = vpop.permute.xlu0 %1085
        %1087 = vrot.lane.b32.xlu0 %v1066, 127
        %v1088 = vpop.permute.xlu0 %1087
        %1089 = vrot.lane.b32.xlu0 %v1067, 127
        %v1090 = vpop.permute.xlu0 %1089
        %1091 = vrot.lane.b32.xlu0 %v1068, 127
        %v1092 = vpop.permute.xlu0 %1091
        %1093 = vrot.lane.b32.xlu0 %v1069, 127
        %v1094 = vpop.permute.xlu0 %1093
        %1095 = vrot.lane.b32.xlu0 %v1070, 127
        %v1096 = vpop.permute.xlu0 %1095
        %1097 = vrot.lane.b32.xlu0 %v1071, 127
        %v1098 = vpop.permute.xlu0 %1097
        %1099 = vrot.lane.b32.xlu0 %v1072, 127
        %v1100 = vpop.permute.xlu0 %1099
        %1101 = vrot.lane.b32.xlu0 %v1073, 127
        %v1102 = vpop.permute.xlu0 %1101
        %1103 = vrot.lane.b32.xlu0 %v1074, 127
        %v1104 = vpop.permute.xlu0 %1103
        %v1105 = vsel %vm950, %v1086, %v1088
        %v1106 = vsel %vm950, %v1090, %v1092
        %v1107 = vsel %vm950, %v1094, %v1096
        %v1108 = vsel %vm950, %v1098, %v1100
        %v1109 = vsel %vm950, %v1102, %v1104
        %v1115 = vadd.f32 %v961, %v1105
        %v1116 = vadd.f32 %v962, %v1106
        %v1117 = vadd.f32 %v963, %v1107
        %v1118 = vadd.f32 %v964, %v1108
        %v1119 = vadd.f32 %v965, %v1109
        %v1120 = vmul.f32 %v1043, %v874
        %v1121 = vmul.f32 %v1043, %v875
        %v1122 = vmul.f32 %v1043, %v876
        %v1123 = vmul.f32 %v1043, %v877
        %v1124 = vmul.f32 %v1043, %v878
        %v1125 = vmul.f32 %v1043, %v879
        %v1126 = vmul.f32 %v1043, %v880
        %v1127 = vmul.f32 %v1043, %v881
        %v1128 = vmul.f32 %v1043, %v882
        %v1129 = vmul.f32 %v1043, %v883
        %v1130 = vmul.f32 %v1054, %v860
        %v1131 = vmul.f32 %v1054, %v861
        %v1132 = vmul.f32 %v1054, %v862
        %v1133 = vmul.f32 %v1054, %v863
        %v1134 = vmul.f32 %v1054, %v864
        %v1135 = vmul.f32 %v1054, %v865
        %v1136 = vmul.f32 %v1054, %v866
        %v1137 = vmul.f32 %v1054, %v867
        %v1138 = vmul.f32 %v1054, %v868
        %v1139 = vmul.f32 %v1054, %v869
        %v1140 = vadd.f32 %v1120, %v1130
        %v1141 = vadd.f32 %v1121, %v1131
        %v1142 = vadd.f32 %v1122, %v1132
        %v1143 = vadd.f32 %v1123, %v1133
        %v1144 = vadd.f32 %v1124, %v1134
        %v1145 = vadd.f32 %v1125, %v1135
        %v1146 = vadd.f32 %v1126, %v1136
        %v1147 = vadd.f32 %v1127, %v1137
        %v1148 = vadd.f32 %v1128, %v1138
        %v1149 = vadd.f32 %v1129, %v1139
        %1160 = vrot.lane.b32.xlu0 %v1140, 127
        %v1161 = vpop.permute.xlu0 %1160
        %1162 = vrot.lane.b32.xlu0 %v1141, 127
        %v1163 = vpop.permute.xlu0 %1162
        %1164 = vrot.lane.b32.xlu0 %v1142, 127
        %v1165 = vpop.permute.xlu0 %1164
        %1166 = vrot.lane.b32.xlu0 %v1143, 127
        %v1167 = vpop.permute.xlu0 %1166
        %1168 = vrot.lane.b32.xlu0 %v1144, 127
        %v1169 = vpop.permute.xlu0 %1168
        %1170 = vrot.lane.b32.xlu0 %v1145, 127
        %v1171 = vpop.permute.xlu0 %1170
        %1172 = vrot.lane.b32.xlu0 %v1146, 127
        %v1173 = vpop.permute.xlu0 %1172
        %1174 = vrot.lane.b32.xlu0 %v1147, 127
        %v1175 = vpop.permute.xlu0 %1174
        %1176 = vrot.lane.b32.xlu0 %v1148, 127
        %v1177 = vpop.permute.xlu0 %1176
        %1178 = vrot.lane.b32.xlu0 %v1149, 127
        %v1179 = vpop.permute.xlu0 %1178
        %v1180 = vsel %vm950, %v1161, %v1163
        %v1181 = vsel %vm950, %v1165, %v1167
        %v1182 = vsel %vm950, %v1169, %v1171
        %v1183 = vsel %vm950, %v1173, %v1175
        %v1184 = vsel %vm950, %v1177, %v1179
        %v1190 = vadd.f32 %v1036, %v1180
        %v1191 = vadd.f32 %v1037, %v1181
        %v1192 = vadd.f32 %v1038, %v1182
        %v1193 = vadd.f32 %v1039, %v1183
        %v1194 = vadd.f32 %v1040, %v1184
        %s1195 = sld [smem:[#allocation3 + $0x5]]
        %s1196 = sld [smem:[#allocation7 + $0x5]]
        %v1197 = vstv %s1195
        %v1198 = vmul.f32 %v1197, %v862
        %v1199 = vmul.f32 %v1197, %v863
        %v1200 = vmul.f32 %v1197, %v864
        %v1201 = vmul.f32 %v1197, %v865
        %v1202 = vmul.f32 %v1197, %v866
        %v1203 = vmul.f32 %v1197, %v867
        %v1204 = vmul.f32 %v1197, %v868
        %v1205 = vmul.f32 %v1197, %v869
        %v1206 = vmul.f32 %v1197, %v870
        %v1207 = vmul.f32 %v1197, %v871
        %v1208 = vstv %s1196
        %v1209 = vmul.f32 %v1208, %v876
        %v1210 = vmul.f32 %v1208, %v877
        %v1211 = vmul.f32 %v1208, %v878
        %v1212 = vmul.f32 %v1208, %v879
        %v1213 = vmul.f32 %v1208, %v880
        %v1214 = vmul.f32 %v1208, %v881
        %v1215 = vmul.f32 %v1208, %v882
        %v1216 = vmul.f32 %v1208, %v883
        %v1217 = vmul.f32 %v1208, %v884
        %v1218 = vmul.f32 %v1208, %v885
        %v1219 = vsub.f32 %v1198, %v1209
        %v1220 = vsub.f32 %v1199, %v1210
        %v1221 = vsub.f32 %v1200, %v1211
        %v1222 = vsub.f32 %v1201, %v1212
        %v1223 = vsub.f32 %v1202, %v1213
        %v1224 = vsub.f32 %v1203, %v1214
        %v1225 = vsub.f32 %v1204, %v1215
        %v1226 = vsub.f32 %v1205, %v1216
        %v1227 = vsub.f32 %v1206, %v1217
        %v1228 = vsub.f32 %v1207, %v1218
        %1239 = vrot.lane.b32.xlu0 %v1219, 127
        %v1240 = vpop.permute.xlu0 %1239
        %1241 = vrot.lane.b32.xlu0 %v1220, 127
        %v1242 = vpop.permute.xlu0 %1241
        %1243 = vrot.lane.b32.xlu0 %v1221, 127
        %v1244 = vpop.permute.xlu0 %1243
        %1245 = vrot.lane.b32.xlu0 %v1222, 127
        %v1246 = vpop.permute.xlu0 %1245
        %1247 = vrot.lane.b32.xlu0 %v1223, 127
        %v1248 = vpop.permute.xlu0 %1247
        %1249 = vrot.lane.b32.xlu0 %v1224, 127
        %v1250 = vpop.permute.xlu0 %1249
        %1251 = vrot.lane.b32.xlu0 %v1225, 127
        %v1252 = vpop.permute.xlu0 %1251
        %1253 = vrot.lane.b32.xlu0 %v1226, 127
        %v1254 = vpop.permute.xlu0 %1253
        %1255 = vrot.lane.b32.xlu0 %v1227, 127
        %v1256 = vpop.permute.xlu0 %1255
        %1257 = vrot.lane.b32.xlu0 %v1228, 127
        %v1258 = vpop.permute.xlu0 %1257
        %v1259 = vsel %vm950, %v1240, %v1242
        %v1260 = vsel %vm950, %v1244, %v1246
        %v1261 = vsel %vm950, %v1248, %v1250
        %v1262 = vsel %vm950, %v1252, %v1254
        %v1263 = vsel %vm950, %v1256, %v1258
        %v1269 = vadd.f32 %v1115, %v1259
        %v1270 = vadd.f32 %v1116, %v1260
        %v1271 = vadd.f32 %v1117, %v1261
        %v1272 = vadd.f32 %v1118, %v1262
        %v1273 = vadd.f32 %v1119, %v1263
        %v1274 = vmul.f32 %v1197, %v876
        %v1275 = vmul.f32 %v1197, %v877
        %v1276 = vmul.f32 %v1197, %v878
        %v1277 = vmul.f32 %v1197, %v879
        %v1278 = vmul.f32 %v1197, %v880
        %v1279 = vmul.f32 %v1197, %v881
        %v1280 = vmul.f32 %v1197, %v882
        %v1281 = vmul.f32 %v1197, %v883
        %v1282 = vmul.f32 %v1197, %v884
        %v1283 = vmul.f32 %v1197, %v885
        %v1284 = vmul.f32 %v1208, %v862
        %v1285 = vmul.f32 %v1208, %v863
        %v1286 = vmul.f32 %v1208, %v864
        %v1287 = vmul.f32 %v1208, %v865
        %v1288 = vmul.f32 %v1208, %v866
        %v1289 = vmul.f32 %v1208, %v867
        %v1290 = vmul.f32 %v1208, %v868
        %v1291 = vmul.f32 %v1208, %v869
        %v1292 = vmul.f32 %v1208, %v870
        %v1293 = vmul.f32 %v1208, %v871
        %v1294 = vadd.f32 %v1274, %v1284
        %v1295 = vadd.f32 %v1275, %v1285
        %v1296 = vadd.f32 %v1276, %v1286
        %v1297 = vadd.f32 %v1277, %v1287
        %v1298 = vadd.f32 %v1278, %v1288
        %v1299 = vadd.f32 %v1279, %v1289
        %v1300 = vadd.f32 %v1280, %v1290
        %v1301 = vadd.f32 %v1281, %v1291
        %v1302 = vadd.f32 %v1282, %v1292
        %v1303 = vadd.f32 %v1283, %v1293
        %1314 = vrot.lane.b32.xlu0 %v1294, 127
        %v1315 = vpop.permute.xlu0 %1314
        %1316 = vrot.lane.b32.xlu0 %v1295, 127
        %v1317 = vpop.permute.xlu0 %1316
        %1318 = vrot.lane.b32.xlu0 %v1296, 127
        %v1319 = vpop.permute.xlu0 %1318
        %1320 = vrot.lane.b32.xlu0 %v1297, 127
        %v1321 = vpop.permute.xlu0 %1320
        %1322 = vrot.lane.b32.xlu0 %v1298, 127
        %v1323 = vpop.permute.xlu0 %1322
        %1324 = vrot.lane.b32.xlu0 %v1299, 127
        %v1325 = vpop.permute.xlu0 %1324
        %1326 = vrot.lane.b32.xlu0 %v1300, 127
        %v1327 = vpop.permute.xlu0 %1326
        %1328 = vrot.lane.b32.xlu0 %v1301, 127
        %v1329 = vpop.permute.xlu0 %1328
        %1330 = vrot.lane.b32.xlu0 %v1302, 127
        %v1331 = vpop.permute.xlu0 %1330
        %1332 = vrot.lane.b32.xlu0 %v1303, 127
        %v1333 = vpop.permute.xlu0 %1332
        %v1334 = vsel %vm950, %v1315, %v1317
        %v1335 = vsel %vm950, %v1319, %v1321
        %v1336 = vsel %vm950, %v1323, %v1325
        %v1337 = vsel %vm950, %v1327, %v1329
        %v1338 = vsel %vm950, %v1331, %v1333
        %v1344 = vadd.f32 %v1190, %v1334
        %v1345 = vadd.f32 %v1191, %v1335
        %v1346 = vadd.f32 %v1192, %v1336
        %v1347 = vadd.f32 %v1193, %v1337
        %v1348 = vadd.f32 %v1194, %v1338
        %s1349 = sld [smem:[#allocation3 + $0x6]]
        %s1350 = sld [smem:[#allocation7 + $0x6]]
        %v1351 = vstv %s1349
        %v1352 = vmul.f32 %v1351, %v858
        %v1353 = vmul.f32 %v1351, %v859
        %v1354 = vmul.f32 %v1351, %v860
        %v1355 = vmul.f32 %v1351, %v861
        %v1356 = vmul.f32 %v1351, %v862
        %v1357 = vmul.f32 %v1351, %v863
        %v1358 = vmul.f32 %v1351, %v864
        %v1359 = vmul.f32 %v1351, %v865
        %v1360 = vmul.f32 %v1351, %v866
        %v1361 = vmul.f32 %v1351, %v867
        %v1362 = vstv %s1350
        %v1363 = vmul.f32 %v1362, %v872
        %v1364 = vmul.f32 %v1362, %v873
        %v1365 = vmul.f32 %v1362, %v874
        %v1366 = vmul.f32 %v1362, %v875
        %v1367 = vmul.f32 %v1362, %v876
        %v1368 = vmul.f32 %v1362, %v877
        %v1369 = vmul.f32 %v1362, %v878
        %v1370 = vmul.f32 %v1362, %v879
        %v1371 = vmul.f32 %v1362, %v880
        %v1372 = vmul.f32 %v1362, %v881
        %v1373 = vsub.f32 %v1352, %v1363
        %v1374 = vsub.f32 %v1353, %v1364
        %v1375 = vsub.f32 %v1354, %v1365
        %v1376 = vsub.f32 %v1355, %v1366
        %v1377 = vsub.f32 %v1356, %v1367
        %v1378 = vsub.f32 %v1357, %v1368
        %v1379 = vsub.f32 %v1358, %v1369
        %v1380 = vsub.f32 %v1359, %v1370
        %v1381 = vsub.f32 %v1360, %v1371
        %v1382 = vsub.f32 %v1361, %v1372
        %1393 = vrot.lane.b32.xlu0 %v1373, 126
        %v1394 = vpop.permute.xlu0 %1393
        %1395 = vrot.lane.b32.xlu0 %v1374, 126
        %v1396 = vpop.permute.xlu0 %1395
        %1397 = vrot.lane.b32.xlu0 %v1375, 126
        %v1398 = vpop.permute.xlu0 %1397
        %1399 = vrot.lane.b32.xlu0 %v1376, 126
        %v1400 = vpop.permute.xlu0 %1399
        %1401 = vrot.lane.b32.xlu0 %v1377, 126
        %v1402 = vpop.permute.xlu0 %1401
        %1403 = vrot.lane.b32.xlu0 %v1378, 126
        %v1404 = vpop.permute.xlu0 %1403
        %1405 = vrot.lane.b32.xlu0 %v1379, 126
        %v1406 = vpop.permute.xlu0 %1405
        %1407 = vrot.lane.b32.xlu0 %v1380, 126
        %v1408 = vpop.permute.xlu0 %1407
        %1409 = vrot.lane.b32.xlu0 %v1381, 126
        %v1410 = vpop.permute.xlu0 %1409
        %1411 = vrot.lane.b32.xlu0 %v1382, 126
        %v1412 = vpop.permute.xlu0 %1411
        %vm1413 = vcmask 1031168
        %v1414 = vsel %vm1413, %v1394, %v1396
        %v1415 = vsel %vm1413, %v1398, %v1400
        %v1416 = vsel %vm1413, %v1402, %v1404
        %v1417 = vsel %vm1413, %v1406, %v1408
        %v1418 = vsel %vm1413, %v1410, %v1412
        %v1424 = vadd.f32 %v1269, %v1414
        %v1425 = vadd.f32 %v1270, %v1415
        %v1426 = vadd.f32 %v1271, %v1416
        %v1427 = vadd.f32 %v1272, %v1417
        %v1428 = vadd.f32 %v1273, %v1418
        %v1429 = vmul.f32 %v1351, %v872
        %v1430 = vmul.f32 %v1351, %v873
        %v1431 = vmul.f32 %v1351, %v874
        %v1432 = vmul.f32 %v1351, %v875
        %v1433 = vmul.f32 %v1351, %v876
        %v1434 = vmul.f32 %v1351, %v877
        %v1435 = vmul.f32 %v1351, %v878
        %v1436 = vmul.f32 %v1351, %v879
        %v1437 = vmul.f32 %v1351, %v880
        %v1438 = vmul.f32 %v1351, %v881
        %v1439 = vmul.f32 %v1362, %v858
        %v1440 = vmul.f32 %v1362, %v859
        %v1441 = vmul.f32 %v1362, %v860
        %v1442 = vmul.f32 %v1362, %v861
        %v1443 = vmul.f32 %v1362, %v862
        %v1444 = vmul.f32 %v1362, %v863
        %v1445 = vmul.f32 %v1362, %v864
        %v1446 = vmul.f32 %v1362, %v865
        %v1447 = vmul.f32 %v1362, %v866
        %v1448 = vmul.f32 %v1362, %v867
        %v1449 = vadd.f32 %v1429, %v1439
        %v1450 = vadd.f32 %v1430, %v1440
        %v1451 = vadd.f32 %v1431, %v1441
        %v1452 = vadd.f32 %v1432, %v1442
        %v1453 = vadd.f32 %v1433, %v1443
        %v1454 = vadd.f32 %v1434, %v1444
        %v1455 = vadd.f32 %v1435, %v1445
        %v1456 = vadd.f32 %v1436, %v1446
        %v1457 = vadd.f32 %v1437, %v1447
        %v1458 = vadd.f32 %v1438, %v1448
        %1469 = vrot.lane.b32.xlu0 %v1449, 126
        %v1470 = vpop.permute.xlu0 %1469
        %1471 = vrot.lane.b32.xlu0 %v1450, 126
        %v1472 = vpop.permute.xlu0 %1471
        %1473 = vrot.lane.b32.xlu0 %v1451, 126
        %v1474 = vpop.permute.xlu0 %1473
        %1475 = vrot.lane.b32.xlu0 %v1452, 126
        %v1476 = vpop.permute.xlu0 %1475
        %1477 = vrot.lane.b32.xlu0 %v1453, 126
        %v1478 = vpop.permute.xlu0 %1477
        %1479 = vrot.lane.b32.xlu0 %v1454, 126
        %v1480 = vpop.permute.xlu0 %1479
        %1481 = vrot.lane.b32.xlu0 %v1455, 126
        %v1482 = vpop.permute.xlu0 %1481
        %1483 = vrot.lane.b32.xlu0 %v1456, 126
        %v1484 = vpop.permute.xlu0 %1483
        %1485 = vrot.lane.b32.xlu0 %v1457, 126
        %v1486 = vpop.permute.xlu0 %1485
        %1487 = vrot.lane.b32.xlu0 %v1458, 126
        %v1488 = vpop.permute.xlu0 %1487
        %v1489 = vsel %vm1413, %v1470, %v1472
        %v1490 = vsel %vm1413, %v1474, %v1476
        %v1491 = vsel %vm1413, %v1478, %v1480
        %v1492 = vsel %vm1413, %v1482, %v1484
        %v1493 = vsel %vm1413, %v1486, %v1488
        %v1499 = vadd.f32 %v1344, %v1489
        %v1500 = vadd.f32 %v1345, %v1490
        %v1501 = vadd.f32 %v1346, %v1491
        %v1502 = vadd.f32 %v1347, %v1492
        %v1503 = vadd.f32 %v1348, %v1493
        %s1504 = sld [smem:[#allocation3 + $0x7]]
        %s1505 = sld [smem:[#allocation7 + $0x7]]
        %v1506 = vstv %s1504
        %v1507 = vmul.f32 %v1506, %v860
        %v1508 = vmul.f32 %v1506, %v861
        %v1509 = vmul.f32 %v1506, %v862
        %v1510 = vmul.f32 %v1506, %v863
        %v1511 = vmul.f32 %v1506, %v864
        %v1512 = vmul.f32 %v1506, %v865
        %v1513 = vmul.f32 %v1506, %v866
        %v1514 = vmul.f32 %v1506, %v867
        %v1515 = vmul.f32 %v1506, %v868
        %v1516 = vmul.f32 %v1506, %v869
        %v1517 = vstv %s1505
        %v1518 = vmul.f32 %v1517, %v874
        %v1519 = vmul.f32 %v1517, %v875
        %v1520 = vmul.f32 %v1517, %v876
        %v1521 = vmul.f32 %v1517, %v877
        %v1522 = vmul.f32 %v1517, %v878
        %v1523 = vmul.f32 %v1517, %v879
        %v1524 = vmul.f32 %v1517, %v880
        %v1525 = vmul.f32 %v1517, %v881
        %v1526 = vmul.f32 %v1517, %v882
        %v1527 = vmul.f32 %v1517, %v883
        %v1528 = vsub.f32 %v1507, %v1518
        %v1529 = vsub.f32 %v1508, %v1519
        %v1530 = vsub.f32 %v1509, %v1520
        %v1531 = vsub.f32 %v1510, %v1521
        %v1532 = vsub.f32 %v1511, %v1522
        %v1533 = vsub.f32 %v1512, %v1523
        %v1534 = vsub.f32 %v1513, %v1524
        %v1535 = vsub.f32 %v1514, %v1525
        %v1536 = vsub.f32 %v1515, %v1526
        %v1537 = vsub.f32 %v1516, %v1527
        %1548 = vrot.lane.b32.xlu0 %v1528, 126
        %v1549 = vpop.permute.xlu0 %1548
        %1550 = vrot.lane.b32.xlu0 %v1529, 126
        %v1551 = vpop.permute.xlu0 %1550
        %1552 = vrot.lane.b32.xlu0 %v1530, 126
        %v1553 = vpop.permute.xlu0 %1552
        %1554 = vrot.lane.b32.xlu0 %v1531, 126
        %v1555 = vpop.permute.xlu0 %1554
        %1556 = vrot.lane.b32.xlu0 %v1532, 126
        %v1557 = vpop.permute.xlu0 %1556
        %1558 = vrot.lane.b32.xlu0 %v1533, 126
        %v1559 = vpop.permute.xlu0 %1558
        %1560 = vrot.lane.b32.xlu0 %v1534, 126
        %v1561 = vpop.permute.xlu0 %1560
        %1562 = vrot.lane.b32.xlu0 %v1535, 126
        %v1563 = vpop.permute.xlu0 %1562
        %1564 = vrot.lane.b32.xlu0 %v1536, 126
        %v1565 = vpop.permute.xlu0 %1564
        %1566 = vrot.lane.b32.xlu0 %v1537, 126
        %v1567 = vpop.permute.xlu0 %1566
        %v1568 = vsel %vm1413, %v1549, %v1551
        %v1569 = vsel %vm1413, %v1553, %v1555
        %v1570 = vsel %vm1413, %v1557, %v1559
        %v1571 = vsel %vm1413, %v1561, %v1563
        %v1572 = vsel %vm1413, %v1565, %v1567
        %v1578 = vadd.f32 %v1424, %v1568
        %v1579 = vadd.f32 %v1425, %v1569
        %v1580 = vadd.f32 %v1426, %v1570
        %v1581 = vadd.f32 %v1427, %v1571
        %v1582 = vadd.f32 %v1428, %v1572
        %v1583 = vmul.f32 %v1506, %v874
        %v1584 = vmul.f32 %v1506, %v875
        %v1585 = vmul.f32 %v1506, %v876
        %v1586 = vmul.f32 %v1506, %v877
        %v1587 = vmul.f32 %v1506, %v878
        %v1588 = vmul.f32 %v1506, %v879
        %v1589 = vmul.f32 %v1506, %v880
        %v1590 = vmul.f32 %v1506, %v881
        %v1591 = vmul.f32 %v1506, %v882
        %v1592 = vmul.f32 %v1506, %v883
        %v1593 = vmul.f32 %v1517, %v860
        %v1594 = vmul.f32 %v1517, %v861
        %v1595 = vmul.f32 %v1517, %v862
        %v1596 = vmul.f32 %v1517, %v863
        %v1597 = vmul.f32 %v1517, %v864
        %v1598 = vmul.f32 %v1517, %v865
        %v1599 = vmul.f32 %v1517, %v866
        %v1600 = vmul.f32 %v1517, %v867
        %v1601 = vmul.f32 %v1517, %v868
        %v1602 = vmul.f32 %v1517, %v869
        %v1603 = vadd.f32 %v1583, %v1593
        %v1604 = vadd.f32 %v1584, %v1594
        %v1605 = vadd.f32 %v1585, %v1595
        %v1606 = vadd.f32 %v1586, %v1596
        %v1607 = vadd.f32 %v1587, %v1597
        %v1608 = vadd.f32 %v1588, %v1598
        %v1609 = vadd.f32 %v1589, %v1599
        %v1610 = vadd.f32 %v1590, %v1600
        %v1611 = vadd.f32 %v1591, %v1601
        %v1612 = vadd.f32 %v1592, %v1602
        %1623 = vrot.lane.b32.xlu0 %v1603, 126
        %v1624 = vpop.permute.xlu0 %1623
        %1625 = vrot.lane.b32.xlu0 %v1604, 126
        %v1626 = vpop.permute.xlu0 %1625
        %1627 = vrot.lane.b32.xlu0 %v1605, 126
        %v1628 = vpop.permute.xlu0 %1627
        %1629 = vrot.lane.b32.xlu0 %v1606, 126
        %v1630 = vpop.permute.xlu0 %1629
        %1631 = vrot.lane.b32.xlu0 %v1607, 126
        %v1632 = vpop.permute.xlu0 %1631
        %1633 = vrot.lane.b32.xlu0 %v1608, 126
        %v1634 = vpop.permute.xlu0 %1633
        %1635 = vrot.lane.b32.xlu0 %v1609, 126
        %v1636 = vpop.permute.xlu0 %1635
        %1637 = vrot.lane.b32.xlu0 %v1610, 126
        %v1638 = vpop.permute.xlu0 %1637
        %1639 = vrot.lane.b32.xlu0 %v1611, 126
        %v1640 = vpop.permute.xlu0 %1639
        %1641 = vrot.lane.b32.xlu0 %v1612, 126
        %v1642 = vpop.permute.xlu0 %1641
        %v1643 = vsel %vm1413, %v1624, %v1626
        %v1644 = vsel %vm1413, %v1628, %v1630
        %v1645 = vsel %vm1413, %v1632, %v1634
        %v1646 = vsel %vm1413, %v1636, %v1638
        %v1647 = vsel %vm1413, %v1640, %v1642
        %v1653 = vadd.f32 %v1499, %v1643
        %v1654 = vadd.f32 %v1500, %v1644
        %v1655 = vadd.f32 %v1501, %v1645
        %v1656 = vadd.f32 %v1502, %v1646
        %v1657 = vadd.f32 %v1503, %v1647
        %s1658 = sld [smem:[#allocation3 + $0x8]]
        %s1659 = sld [smem:[#allocation7 + $0x8]]
        %v1660 = vstv %s1658
        %v1661 = vmul.f32 %v1660, %v862
        %v1662 = vmul.f32 %v1660, %v863
        %v1663 = vmul.f32 %v1660, %v864
        %v1664 = vmul.f32 %v1660, %v865
        %v1665 = vmul.f32 %v1660, %v866
        %v1666 = vmul.f32 %v1660, %v867
        %v1667 = vmul.f32 %v1660, %v868
        %v1668 = vmul.f32 %v1660, %v869
        %v1669 = vmul.f32 %v1660, %v870
        %v1670 = vmul.f32 %v1660, %v871
        %v1671 = vstv %s1659
        %v1672 = vmul.f32 %v1671, %v876
        %v1673 = vmul.f32 %v1671, %v877
        %v1674 = vmul.f32 %v1671, %v878
        %v1675 = vmul.f32 %v1671, %v879
        %v1676 = vmul.f32 %v1671, %v880
        %v1677 = vmul.f32 %v1671, %v881
        %v1678 = vmul.f32 %v1671, %v882
        %v1679 = vmul.f32 %v1671, %v883
        %v1680 = vmul.f32 %v1671, %v884
        %v1681 = vmul.f32 %v1671, %v885
        %v1682 = vsub.f32 %v1661, %v1672
        %v1683 = vsub.f32 %v1662, %v1673
        %v1684 = vsub.f32 %v1663, %v1674
        %v1685 = vsub.f32 %v1664, %v1675
        %v1686 = vsub.f32 %v1665, %v1676
        %v1687 = vsub.f32 %v1666, %v1677
        %v1688 = vsub.f32 %v1667, %v1678
        %v1689 = vsub.f32 %v1668, %v1679
        %v1690 = vsub.f32 %v1669, %v1680
        %v1691 = vsub.f32 %v1670, %v1681
        %1702 = vrot.lane.b32.xlu0 %v1682, 126
        %v1703 = vpop.permute.xlu0 %1702
        %1704 = vrot.lane.b32.xlu0 %v1683, 126
        %v1705 = vpop.permute.xlu0 %1704
        %1706 = vrot.lane.b32.xlu0 %v1684, 126
        %v1707 = vpop.permute.xlu0 %1706
        %1708 = vrot.lane.b32.xlu0 %v1685, 126
        %v1709 = vpop.permute.xlu0 %1708
        %1710 = vrot.lane.b32.xlu0 %v1686, 126
        %v1711 = vpop.permute.xlu0 %1710
        %1712 = vrot.lane.b32.xlu0 %v1687, 126
        %v1713 = vpop.permute.xlu0 %1712
        %1714 = vrot.lane.b32.xlu0 %v1688, 126
        %v1715 = vpop.permute.xlu0 %1714
        %1716 = vrot.lane.b32.xlu0 %v1689, 126
        %v1717 = vpop.permute.xlu0 %1716
        %1718 = vrot.lane.b32.xlu0 %v1690, 126
        %v1719 = vpop.permute.xlu0 %1718
        %1720 = vrot.lane.b32.xlu0 %v1691, 126
        %v1721 = vpop.permute.xlu0 %1720
        %v1722 = vsel %vm1413, %v1703, %v1705
        %v1723 = vsel %vm1413, %v1707, %v1709
        %v1724 = vsel %vm1413, %v1711, %v1713
        %v1725 = vsel %vm1413, %v1715, %v1717
        %v1726 = vsel %vm1413, %v1719, %v1721
        %v1732 = vadd.f32 %v1578, %v1722
        %v1733 = vadd.f32 %v1579, %v1723
        %v1734 = vadd.f32 %v1580, %v1724
        %v1735 = vadd.f32 %v1581, %v1725
        %v1736 = vadd.f32 %v1582, %v1726
        %v1737 = vmul.f32 %v1660, %v876
        %v1738 = vmul.f32 %v1660, %v877
        %v1739 = vmul.f32 %v1660, %v878
        %v1740 = vmul.f32 %v1660, %v879
        %v1741 = vmul.f32 %v1660, %v880
        %v1742 = vmul.f32 %v1660, %v881
        %v1743 = vmul.f32 %v1660, %v882
        %v1744 = vmul.f32 %v1660, %v883
        %v1745 = vmul.f32 %v1660, %v884
        %v1746 = vmul.f32 %v1660, %v885
        %v1747 = vmul.f32 %v1671, %v862
        %v1748 = vmul.f32 %v1671, %v863
        %v1749 = vmul.f32 %v1671, %v864
        %v1750 = vmul.f32 %v1671, %v865
        %v1751 = vmul.f32 %v1671, %v866
        %v1752 = vmul.f32 %v1671, %v867
        %v1753 = vmul.f32 %v1671, %v868
        %v1754 = vmul.f32 %v1671, %v869
        %v1755 = vmul.f32 %v1671, %v870
        %v1756 = vmul.f32 %v1671, %v871
        %v1757 = vadd.f32 %v1737, %v1747
        %v1758 = vadd.f32 %v1738, %v1748
        %v1759 = vadd.f32 %v1739, %v1749
        %v1760 = vadd.f32 %v1740, %v1750
        %v1761 = vadd.f32 %v1741, %v1751
        %v1762 = vadd.f32 %v1742, %v1752
        %v1763 = vadd.f32 %v1743, %v1753
        %v1764 = vadd.f32 %v1744, %v1754
        %v1765 = vadd.f32 %v1745, %v1755
        %v1766 = vadd.f32 %v1746, %v1756
        %1777 = vrot.lane.b32.xlu0 %v1757, 126
        %v1778 = vpop.permute.xlu0 %1777
        %1779 = vrot.lane.b32.xlu0 %v1758, 126
        %v1780 = vpop.permute.xlu0 %1779
        %1781 = vrot.lane.b32.xlu0 %v1759, 126
        %v1782 = vpop.permute.xlu0 %1781
        %1783 = vrot.lane.b32.xlu0 %v1760, 126
        %v1784 = vpop.permute.xlu0 %1783
        %1785 = vrot.lane.b32.xlu0 %v1761, 126
        %v1786 = vpop.permute.xlu0 %1785
        %1787 = vrot.lane.b32.xlu0 %v1762, 126
        %v1788 = vpop.permute.xlu0 %1787
        %1789 = vrot.lane.b32.xlu0 %v1763, 126
        %v1790 = vpop.permute.xlu0 %1789
        %1791 = vrot.lane.b32.xlu0 %v1764, 126
        %v1792 = vpop.permute.xlu0 %1791
        %1793 = vrot.lane.b32.xlu0 %v1765, 126
        %v1794 = vpop.permute.xlu0 %1793
        %1795 = vrot.lane.b32.xlu0 %v1766, 126
        %v1796 = vpop.permute.xlu0 %1795
        %v1797 = vsel %vm1413, %v1778, %v1780
        %v1798 = vsel %vm1413, %v1782, %v1784
        %v1799 = vsel %vm1413, %v1786, %v1788
        %v1800 = vsel %vm1413, %v1790, %v1792
        %v1801 = vsel %vm1413, %v1794, %v1796
        %v1807 = vadd.f32 %v1653, %v1797
        %v1808 = vadd.f32 %v1654, %v1798
        %v1809 = vadd.f32 %v1655, %v1799
        %v1810 = vadd.f32 %v1656, %v1800
        %v1811 = vadd.f32 %v1657, %v1801
        %v1812 = vld [vmem:[#allocation2] sm:$0xfe]
        %v1813 = vld [vmem:[#allocation2 + $0x10] sm:$0x1]
        %v1814 = vld [vmem:[#allocation2 + $0x20] sm:$0xfe]
        %v1815 = vld [vmem:[#allocation2 + $0x30] sm:$0x1]
        %v1816 = vld [vmem:[#allocation2 + $0x40] sm:$0xfe]
        %v1817 = vld [vmem:[#allocation2 + $0x50] sm:$0x1]
        %v1818 = vld [vmem:[#allocation2 + $0x60] sm:$0xfe]
        %v1819 = vld [vmem:[#allocation2 + $0x70] sm:$0x1]
        %v1820 = vld [vmem:[#allocation2 + $0x80] sm:$0xfe]
        %v1821 = vld [vmem:[#allocation2 + $0x90] sm:$0x1]
        %v1822 = vld [vmem:[#allocation2 + $0xa0] sm:$0xfe]
        %v1823 = vld [vmem:[#allocation2 + $0xb0] sm:$0x1]
        %v1824 = vld [vmem:[#allocation2 + $0xc0] sm:$0xfe]
        %v1825 = vld [vmem:[#allocation2 + $0xd0] sm:$0x1]
        %v1826 = vld [vmem:[%s718] sm:$0xfe]
        %v1827 = vld [vmem:[%s718 + $0x10] sm:$0x1]
        %v1828 = vld [vmem:[%s718 + $0x20] sm:$0xfe]
        %v1829 = vld [vmem:[%s718 + $0x30] sm:$0x1]
        %v1830 = vld [vmem:[%s718 + $0x40] sm:$0xfe]
        %v1831 = vld [vmem:[%s718 + $0x50] sm:$0x1]
        %v1832 = vld [vmem:[%s718 + $0x60] sm:$0xfe]
        %v1833 = vld [vmem:[%s718 + $0x70] sm:$0x1]
        %v1834 = vld [vmem:[%s718 + $0x80] sm:$0xfe]
        %v1835 = vld [vmem:[%s718 + $0x90] sm:$0x1]
        %v1836 = vld [vmem:[%s718 + $0xa0] sm:$0xfe]
        %v1837 = vld [vmem:[%s718 + $0xb0] sm:$0x1]
        %v1838 = vld [vmem:[%s718 + $0xc0] sm:$0xfe]
        %v1839 = vld [vmem:[%s718 + $0xd0] sm:$0x1]
        %s1840 = sld [smem:[#allocation3 + $0x9]]
        %s1841 = sld [smem:[#allocation7 + $0x9]]
        %v1842 = vstv %s1840
        %v1843 = vmul.f32 %v1842, %v1812
        %v1844 = vmul.f32 %v1842, %v1813
        %v1845 = vmul.f32 %v1842, %v1814
        %v1846 = vmul.f32 %v1842, %v1815
        %v1847 = vmul.f32 %v1842, %v1816
        %v1848 = vmul.f32 %v1842, %v1817
        %v1849 = vmul.f32 %v1842, %v1818
        %v1850 = vmul.f32 %v1842, %v1819
        %v1851 = vmul.f32 %v1842, %v1820
        %v1852 = vmul.f32 %v1842, %v1821
        %v1853 = vstv %s1841
        %v1854 = vmul.f32 %v1853, %v1826
        %v1855 = vmul.f32 %v1853, %v1827
        %v1856 = vmul.f32 %v1853, %v1828
        %v1857 = vmul.f32 %v1853, %v1829
        %v1858 = vmul.f32 %v1853, %v1830
        %v1859 = vmul.f32 %v1853, %v1831
        %v1860 = vmul.f32 %v1853, %v1832
        %v1861 = vmul.f32 %v1853, %v1833
        %v1862 = vmul.f32 %v1853, %v1834
        %v1863 = vmul.f32 %v1853, %v1835
        %v1864 = vsub.f32 %v1843, %v1854
        %v1865 = vsub.f32 %v1844, %v1855
        %v1866 = vsub.f32 %v1845, %v1856
        %v1867 = vsub.f32 %v1846, %v1857
        %v1868 = vsub.f32 %v1847, %v1858
        %v1869 = vsub.f32 %v1848, %v1859
        %v1870 = vsub.f32 %v1849, %v1860
        %v1871 = vsub.f32 %v1850, %v1861
        %v1872 = vsub.f32 %v1851, %v1862
        %v1873 = vsub.f32 %v1852, %v1863
        %vm1884 = vcmask 1046528
        %v1885 = vrot.slane %v1864, 1
        %v1886 = vrot.slane %v1865, 1
        %v1887 = vsel %vm1884, %v1885, %v1886
        %v1888 = vrot.slane %v1866, 1
        %v1889 = vrot.slane %v1867, 1
        %v1890 = vsel %vm1884, %v1888, %v1889
        %v1891 = vrot.slane %v1868, 1
        %v1892 = vrot.slane %v1869, 1
        %v1893 = vsel %vm1884, %v1891, %v1892
        %v1894 = vrot.slane %v1870, 1
        %v1895 = vrot.slane %v1871, 1
        %v1896 = vsel %vm1884, %v1894, %v1895
        %v1897 = vrot.slane %v1872, 1
        %v1898 = vrot.slane %v1873, 1
        %v1899 = vsel %vm1884, %v1897, %v1898
        %v1905 = vadd.f32 %v1732, %v1887
        %v1906 = vadd.f32 %v1733, %v1890
        %v1907 = vadd.f32 %v1734, %v1893
        %v1908 = vadd.f32 %v1735, %v1896
        %v1909 = vadd.f32 %v1736, %v1899
        %v1910 = vmul.f32 %v1842, %v1826
        %v1911 = vmul.f32 %v1842, %v1827
        %v1912 = vmul.f32 %v1842, %v1828
        %v1913 = vmul.f32 %v1842, %v1829
        %v1914 = vmul.f32 %v1842, %v1830
        %v1915 = vmul.f32 %v1842, %v1831
        %v1916 = vmul.f32 %v1842, %v1832
        %v1917 = vmul.f32 %v1842, %v1833
        %v1918 = vmul.f32 %v1842, %v1834
        %v1919 = vmul.f32 %v1842, %v1835
        %v1920 = vmul.f32 %v1853, %v1812
        %v1921 = vmul.f32 %v1853, %v1813
        %v1922 = vmul.f32 %v1853, %v1814
        %v1923 = vmul.f32 %v1853, %v1815
        %v1924 = vmul.f32 %v1853, %v1816
        %v1925 = vmul.f32 %v1853, %v1817
        %v1926 = vmul.f32 %v1853, %v1818
        %v1927 = vmul.f32 %v1853, %v1819
        %v1928 = vmul.f32 %v1853, %v1820
        %v1929 = vmul.f32 %v1853, %v1821
        %v1930 = vadd.f32 %v1910, %v1920
        %v1931 = vadd.f32 %v1911, %v1921
        %v1932 = vadd.f32 %v1912, %v1922
        %v1933 = vadd.f32 %v1913, %v1923
        %v1934 = vadd.f32 %v1914, %v1924
        %v1935 = vadd.f32 %v1915, %v1925
        %v1936 = vadd.f32 %v1916, %v1926
        %v1937 = vadd.f32 %v1917, %v1927
        %v1938 = vadd.f32 %v1918, %v1928
        %v1939 = vadd.f32 %v1919, %v1929
        %v1950 = vrot.slane %v1930, 1
        %v1951 = vrot.slane %v1931, 1
        %v1952 = vsel %vm1884, %v1950, %v1951
        %v1953 = vrot.slane %v1932, 1
        %v1954 = vrot.slane %v1933, 1
        %v1955 = vsel %vm1884, %v1953, %v1954
        %v1956 = vrot.slane %v1934, 1
        %v1957 = vrot.slane %v1935, 1
        %v1958 = vsel %vm1884, %v1956, %v1957
        %v1959 = vrot.slane %v1936, 1
        %v1960 = vrot.slane %v1937, 1
        %v1961 = vsel %vm1884, %v1959, %v1960
        %v1962 = vrot.slane %v1938, 1
        %v1963 = vrot.slane %v1939, 1
        %v1964 = vsel %vm1884, %v1962, %v1963
        %v1970 = vadd.f32 %v1807, %v1952
        %v1971 = vadd.f32 %v1808, %v1955
        %v1972 = vadd.f32 %v1809, %v1958
        %v1973 = vadd.f32 %v1810, %v1961
        %v1974 = vadd.f32 %v1811, %v1964
        %s1975 = sld [smem:[#allocation3 + $0xa]]
        %s1976 = sld [smem:[#allocation7 + $0xa]]
        %v1977 = vstv %s1975
        %v1978 = vmul.f32 %v1977, %v1814
        %v1979 = vmul.f32 %v1977, %v1815
        %v1980 = vmul.f32 %v1977, %v1816
        %v1981 = vmul.f32 %v1977, %v1817
        %v1982 = vmul.f32 %v1977, %v1818
        %v1983 = vmul.f32 %v1977, %v1819
        %v1984 = vmul.f32 %v1977, %v1820
        %v1985 = vmul.f32 %v1977, %v1821
        %v1986 = vmul.f32 %v1977, %v1822
        %v1987 = vmul.f32 %v1977, %v1823
        %v1988 = vstv %s1976
        %v1989 = vmul.f32 %v1988, %v1828
        %v1990 = vmul.f32 %v1988, %v1829
        %v1991 = vmul.f32 %v1988, %v1830
        %v1992 = vmul.f32 %v1988, %v1831
        %v1993 = vmul.f32 %v1988, %v1832
        %v1994 = vmul.f32 %v1988, %v1833
        %v1995 = vmul.f32 %v1988, %v1834
        %v1996 = vmul.f32 %v1988, %v1835
        %v1997 = vmul.f32 %v1988, %v1836
        %v1998 = vmul.f32 %v1988, %v1837
        %v1999 = vsub.f32 %v1978, %v1989
        %v2000 = vsub.f32 %v1979, %v1990
        %v2001 = vsub.f32 %v1980, %v1991
        %v2002 = vsub.f32 %v1981, %v1992
        %v2003 = vsub.f32 %v1982, %v1993
        %v2004 = vsub.f32 %v1983, %v1994
        %v2005 = vsub.f32 %v1984, %v1995
        %v2006 = vsub.f32 %v1985, %v1996
        %v2007 = vsub.f32 %v1986, %v1997
        %v2008 = vsub.f32 %v1987, %v1998
        %v2019 = vrot.slane %v1999, 1
        %v2020 = vrot.slane %v2000, 1
        %v2021 = vsel %vm1884, %v2019, %v2020
        %v2022 = vrot.slane %v2001, 1
        %v2023 = vrot.slane %v2002, 1
        %v2024 = vsel %vm1884, %v2022, %v2023
        %v2025 = vrot.slane %v2003, 1
        %v2026 = vrot.slane %v2004, 1
        %v2027 = vsel %vm1884, %v2025, %v2026
        %v2028 = vrot.slane %v2005, 1
        %v2029 = vrot.slane %v2006, 1
        %v2030 = vsel %vm1884, %v2028, %v2029
        %v2031 = vrot.slane %v2007, 1
        %v2032 = vrot.slane %v2008, 1
        %v2033 = vsel %vm1884, %v2031, %v2032
        %v2039 = vadd.f32 %v1905, %v2021
        %v2040 = vadd.f32 %v1906, %v2024
        %v2041 = vadd.f32 %v1907, %v2027
        %v2042 = vadd.f32 %v1908, %v2030
        %v2043 = vadd.f32 %v1909, %v2033
        %v2044 = vmul.f32 %v1977, %v1828
        %v2045 = vmul.f32 %v1977, %v1829
        %v2046 = vmul.f32 %v1977, %v1830
        %v2047 = vmul.f32 %v1977, %v1831
        %v2048 = vmul.f32 %v1977, %v1832
        %v2049 = vmul.f32 %v1977, %v1833
        %v2050 = vmul.f32 %v1977, %v1834
        %v2051 = vmul.f32 %v1977, %v1835
        %v2052 = vmul.f32 %v1977, %v1836
        %v2053 = vmul.f32 %v1977, %v1837
        %v2054 = vmul.f32 %v1988, %v1814
        %v2055 = vmul.f32 %v1988, %v1815
        %v2056 = vmul.f32 %v1988, %v1816
        %v2057 = vmul.f32 %v1988, %v1817
        %v2058 = vmul.f32 %v1988, %v1818
        %v2059 = vmul.f32 %v1988, %v1819
        %v2060 = vmul.f32 %v1988, %v1820
        %v2061 = vmul.f32 %v1988, %v1821
        %v2062 = vmul.f32 %v1988, %v1822
        %v2063 = vmul.f32 %v1988, %v1823
        %v2064 = vadd.f32 %v2044, %v2054
        %v2065 = vadd.f32 %v2045, %v2055
        %v2066 = vadd.f32 %v2046, %v2056
        %v2067 = vadd.f32 %v2047, %v2057
        %v2068 = vadd.f32 %v2048, %v2058
        %v2069 = vadd.f32 %v2049, %v2059
        %v2070 = vadd.f32 %v2050, %v2060
        %v2071 = vadd.f32 %v2051, %v2061
        %v2072 = vadd.f32 %v2052, %v2062
        %v2073 = vadd.f32 %v2053, %v2063
        %v2084 = vrot.slane %v2064, 1
        %v2085 = vrot.slane %v2065, 1
        %v2086 = vsel %vm1884, %v2084, %v2085
        %v2087 = vrot.slane %v2066, 1
        %v2088 = vrot.slane %v2067, 1
        %v2089 = vsel %vm1884, %v2087, %v2088
        %v2090 = vrot.slane %v2068, 1
        %v2091 = vrot.slane %v2069, 1
        %v2092 = vsel %vm1884, %v2090, %v2091
        %v2093 = vrot.slane %v2070, 1
        %v2094 = vrot.slane %v2071, 1
        %v2095 = vsel %vm1884, %v2093, %v2094
        %v2096 = vrot.slane %v2072, 1
        %v2097 = vrot.slane %v2073, 1
        %v2098 = vsel %vm1884, %v2096, %v2097
        %v2104 = vadd.f32 %v1970, %v2086
        %v2105 = vadd.f32 %v1971, %v2089
        %v2106 = vadd.f32 %v1972, %v2092
        %v2107 = vadd.f32 %v1973, %v2095
        %v2108 = vadd.f32 %v1974, %v2098
        %s2109 = sld [smem:[#allocation3 + $0xb]]
        %s2110 = sld [smem:[#allocation7 + $0xb]]
        %v2111 = vstv %s2109
        %v2112 = vmul.f32 %v2111, %v1816
        %v2113 = vmul.f32 %v2111, %v1817
        %v2114 = vmul.f32 %v2111, %v1818
        %v2115 = vmul.f32 %v2111, %v1819
        %v2116 = vmul.f32 %v2111, %v1820
        %v2117 = vmul.f32 %v2111, %v1821
        %v2118 = vmul.f32 %v2111, %v1822
        %v2119 = vmul.f32 %v2111, %v1823
        %v2120 = vmul.f32 %v2111, %v1824
        %v2121 = vmul.f32 %v2111, %v1825
        %v2122 = vstv %s2110
        %v2123 = vmul.f32 %v2122, %v1830
        %v2124 = vmul.f32 %v2122, %v1831
        %v2125 = vmul.f32 %v2122, %v1832
        %v2126 = vmul.f32 %v2122, %v1833
        %v2127 = vmul.f32 %v2122, %v1834
        %v2128 = vmul.f32 %v2122, %v1835
        %v2129 = vmul.f32 %v2122, %v1836
        %v2130 = vmul.f32 %v2122, %v1837
        %v2131 = vmul.f32 %v2122, %v1838
        %v2132 = vmul.f32 %v2122, %v1839
        %v2133 = vsub.f32 %v2112, %v2123
        %v2134 = vsub.f32 %v2113, %v2124
        %v2135 = vsub.f32 %v2114, %v2125
        %v2136 = vsub.f32 %v2115, %v2126
        %v2137 = vsub.f32 %v2116, %v2127
        %v2138 = vsub.f32 %v2117, %v2128
        %v2139 = vsub.f32 %v2118, %v2129
        %v2140 = vsub.f32 %v2119, %v2130
        %v2141 = vsub.f32 %v2120, %v2131
        %v2142 = vsub.f32 %v2121, %v2132
        %v2153 = vrot.slane %v2133, 1
        %v2154 = vrot.slane %v2134, 1
        %v2155 = vsel %vm1884, %v2153, %v2154
        %v2156 = vrot.slane %v2135, 1
        %v2157 = vrot.slane %v2136, 1
        %v2158 = vsel %vm1884, %v2156, %v2157
        %v2159 = vrot.slane %v2137, 1
        %v2160 = vrot.slane %v2138, 1
        %v2161 = vsel %vm1884, %v2159, %v2160
        %v2162 = vrot.slane %v2139, 1
        %v2163 = vrot.slane %v2140, 1
        %v2164 = vsel %vm1884, %v2162, %v2163
        %v2165 = vrot.slane %v2141, 1
        %v2166 = vrot.slane %v2142, 1
        %v2167 = vsel %vm1884, %v2165, %v2166
        %v2173 = vadd.f32 %v2039, %v2155
        %v2174 = vadd.f32 %v2040, %v2158
        %v2175 = vadd.f32 %v2041, %v2161
        %v2176 = vadd.f32 %v2042, %v2164
        %v2177 = vadd.f32 %v2043, %v2167
        %v2178 = vmul.f32 %v2111, %v1830
        %v2179 = vmul.f32 %v2111, %v1831
        %v2180 = vmul.f32 %v2111, %v1832
        %v2181 = vmul.f32 %v2111, %v1833
        %v2182 = vmul.f32 %v2111, %v1834
        %v2183 = vmul.f32 %v2111, %v1835
        %v2184 = vmul.f32 %v2111, %v1836
        %v2185 = vmul.f32 %v2111, %v1837
        %v2186 = vmul.f32 %v2111, %v1838
        %v2187 = vmul.f32 %v2111, %v1839
        %v2188 = vmul.f32 %v2122, %v1816
        %v2189 = vmul.f32 %v2122, %v1817
        %v2190 = vmul.f32 %v2122, %v1818
        %v2191 = vmul.f32 %v2122, %v1819
        %v2192 = vmul.f32 %v2122, %v1820
        %v2193 = vmul.f32 %v2122, %v1821
        %v2194 = vmul.f32 %v2122, %v1822
        %v2195 = vmul.f32 %v2122, %v1823
        %v2196 = vmul.f32 %v2122, %v1824
        %v2197 = vmul.f32 %v2122, %v1825
        %v2198 = vadd.f32 %v2178, %v2188
        %v2199 = vadd.f32 %v2179, %v2189
        %v2200 = vadd.f32 %v2180, %v2190
        %v2201 = vadd.f32 %v2181, %v2191
        %v2202 = vadd.f32 %v2182, %v2192
        %v2203 = vadd.f32 %v2183, %v2193
        %v2204 = vadd.f32 %v2184, %v2194
        %v2205 = vadd.f32 %v2185, %v2195
        %v2206 = vadd.f32 %v2186, %v2196
        %v2207 = vadd.f32 %v2187, %v2197
        %v2218 = vrot.slane %v2198, 1
        %v2219 = vrot.slane %v2199, 1
        %v2220 = vsel %vm1884, %v2218, %v2219
        %v2221 = vrot.slane %v2200, 1
        %v2222 = vrot.slane %v2201, 1
        %v2223 = vsel %vm1884, %v2221, %v2222
        %v2224 = vrot.slane %v2202, 1
        %v2225 = vrot.slane %v2203, 1
        %v2226 = vsel %vm1884, %v2224, %v2225
        %v2227 = vrot.slane %v2204, 1
        %v2228 = vrot.slane %v2205, 1
        %v2229 = vsel %vm1884, %v2227, %v2228
        %v2230 = vrot.slane %v2206, 1
        %v2231 = vrot.slane %v2207, 1
        %v2232 = vsel %vm1884, %v2230, %v2231
        %v2238 = vadd.f32 %v2104, %v2220
        %v2239 = vadd.f32 %v2105, %v2223
        %v2240 = vadd.f32 %v2106, %v2226
        %v2241 = vadd.f32 %v2107, %v2229
        %v2242 = vadd.f32 %v2108, %v2232
        %v2243 = vld [vmem:[#allocation2] sm:$0xfe]
        %v2244 = vld [vmem:[#allocation2 + $0x8] sm:$0xfe]
        %v2245 = vld [vmem:[#allocation2 + $0x10] sm:$0x1]
        %v2246 = vld [vmem:[#allocation2 + $0x18] sm:$0x1]
        %v2247 = vld [vmem:[#allocation2 + $0x20] sm:$0xfe]
        %v2248 = vld [vmem:[#allocation2 + $0x28] sm:$0xfe]
        %v2249 = vld [vmem:[#allocation2 + $0x30] sm:$0x1]
        %v2250 = vld [vmem:[#allocation2 + $0x38] sm:$0x1]
        %v2251 = vld [vmem:[#allocation2 + $0x40] sm:$0xfe]
        %v2252 = vld [vmem:[#allocation2 + $0x48] sm:$0xfe]
        %v2253 = vld [vmem:[#allocation2 + $0x50] sm:$0x1]
        %v2254 = vld [vmem:[#allocation2 + $0x58] sm:$0x1]
        %v2255 = vld [vmem:[#allocation2 + $0x60] sm:$0xfe]
        %v2256 = vld [vmem:[#allocation2 + $0x68] sm:$0xfe]
        %v2257 = vld [vmem:[#allocation2 + $0x70] sm:$0x1]
        %v2258 = vld [vmem:[#allocation2 + $0x78] sm:$0x1]
        %v2259 = vld [vmem:[#allocation2 + $0x80] sm:$0xfe]
        %v2260 = vld [vmem:[#allocation2 + $0x88] sm:$0xfe]
        %v2261 = vld [vmem:[#allocation2 + $0x90] sm:$0x1]
        %v2262 = vld [vmem:[#allocation2 + $0x98] sm:$0x1]
        %v2263 = vld [vmem:[#allocation2 + $0xa0] sm:$0xfe]
        %v2264 = vld [vmem:[#allocation2 + $0xa8] sm:$0xfe]
        %v2265 = vld [vmem:[#allocation2 + $0xb0] sm:$0x1]
        %v2266 = vld [vmem:[#allocation2 + $0xb8] sm:$0x1]
        %v2267 = vld [vmem:[#allocation2 + $0xc0] sm:$0xfe]
        %v2268 = vld [vmem:[#allocation2 + $0xc8] sm:$0xfe]
        %v2269 = vld [vmem:[#allocation2 + $0xd0] sm:$0x1]
        %v2270 = vld [vmem:[#allocation2 + $0xd8] sm:$0x1]
        %v2271 = vld [vmem:[%s718] sm:$0xfe]
        %v2272 = vld [vmem:[%s718 + $0x8] sm:$0xfe]
        %v2273 = vld [vmem:[%s718 + $0x10] sm:$0x1]
        %v2274 = vld [vmem:[%s718 + $0x18] sm:$0x1]
        %v2275 = vld [vmem:[%s718 + $0x20] sm:$0xfe]
        %v2276 = vld [vmem:[%s718 + $0x28] sm:$0xfe]
        %v2277 = vld [vmem:[%s718 + $0x30] sm:$0x1]
        %v2278 = vld [vmem:[%s718 + $0x38] sm:$0x1]
        %v2279 = vld [vmem:[%s718 + $0x40] sm:$0xfe]
        %v2280 = vld [vmem:[%s718 + $0x48] sm:$0xfe]
        %v2281 = vld [vmem:[%s718 + $0x50] sm:$0x1]
        %v2282 = vld [vmem:[%s718 + $0x58] sm:$0x1]
        %v2283 = vld [vmem:[%s718 + $0x60] sm:$0xfe]
        %v2284 = vld [vmem:[%s718 + $0x68] sm:$0xfe]
        %v2285 = vld [vmem:[%s718 + $0x70] sm:$0x1]
        %v2286 = vld [vmem:[%s718 + $0x78] sm:$0x1]
        %v2287 = vld [vmem:[%s718 + $0x80] sm:$0xfe]
        %v2288 = vld [vmem:[%s718 + $0x88] sm:$0xfe]
        %v2289 = vld [vmem:[%s718 + $0x90] sm:$0x1]
        %v2290 = vld [vmem:[%s718 + $0x98] sm:$0x1]
        %v2291 = vld [vmem:[%s718 + $0xa0] sm:$0xfe]
        %v2292 = vld [vmem:[%s718 + $0xa8] sm:$0xfe]
        %v2293 = vld [vmem:[%s718 + $0xb0] sm:$0x1]
        %v2294 = vld [vmem:[%s718 + $0xb8] sm:$0x1]
        %v2295 = vld [vmem:[%s718 + $0xc0] sm:$0xfe]
        %v2296 = vld [vmem:[%s718 + $0xc8] sm:$0xfe]
        %v2297 = vld [vmem:[%s718 + $0xd0] sm:$0x1]
        %v2298 = vld [vmem:[%s718 + $0xd8] sm:$0x1]
        %s2299 = sld [smem:[#allocation3 + $0xc]]
        %s2300 = sld [smem:[#allocation7 + $0xc]]
        %v2301 = vstv %s2299
        %v2302 = vmul.f32 %v2301, %v2243
        %v2303 = vmul.f32 %v2301, %v2244
        %v2304 = vmul.f32 %v2301, %v2245
        %v2305 = vmul.f32 %v2301, %v2246
        %v2306 = vmul.f32 %v2301, %v2247
        %v2307 = vmul.f32 %v2301, %v2248
        %v2308 = vmul.f32 %v2301, %v2249
        %v2309 = vmul.f32 %v2301, %v2250
        %v2310 = vmul.f32 %v2301, %v2251
        %v2311 = vmul.f32 %v2301, %v2252
        %v2312 = vmul.f32 %v2301, %v2253
        %v2313 = vmul.f32 %v2301, %v2254
        %v2314 = vmul.f32 %v2301, %v2255
        %v2315 = vmul.f32 %v2301, %v2256
        %v2316 = vmul.f32 %v2301, %v2257
        %v2317 = vmul.f32 %v2301, %v2258
        %v2318 = vmul.f32 %v2301, %v2259
        %v2319 = vmul.f32 %v2301, %v2260
        %v2320 = vmul.f32 %v2301, %v2261
        %v2321 = vmul.f32 %v2301, %v2262
        %v2322 = vstv %s2300
        %v2323 = vmul.f32 %v2322, %v2271
        %v2324 = vmul.f32 %v2322, %v2272
        %v2325 = vmul.f32 %v2322, %v2273
        %v2326 = vmul.f32 %v2322, %v2274
        %v2327 = vmul.f32 %v2322, %v2275
        %v2328 = vmul.f32 %v2322, %v2276
        %v2329 = vmul.f32 %v2322, %v2277
        %v2330 = vmul.f32 %v2322, %v2278
        %v2331 = vmul.f32 %v2322, %v2279
        %v2332 = vmul.f32 %v2322, %v2280
        %v2333 = vmul.f32 %v2322, %v2281
        %v2334 = vmul.f32 %v2322, %v2282
        %v2335 = vmul.f32 %v2322, %v2283
        %v2336 = vmul.f32 %v2322, %v2284
        %v2337 = vmul.f32 %v2322, %v2285
        %v2338 = vmul.f32 %v2322, %v2286
        %v2339 = vmul.f32 %v2322, %v2287
        %v2340 = vmul.f32 %v2322, %v2288
        %v2341 = vmul.f32 %v2322, %v2289
        %v2342 = vmul.f32 %v2322, %v2290
        %v2343 = vsub.f32 %v2302, %v2323
        %v2344 = vsub.f32 %v2303, %v2324
        %v2345 = vsub.f32 %v2304, %v2325
        %v2346 = vsub.f32 %v2305, %v2326
        %v2347 = vsub.f32 %v2306, %v2327
        %v2348 = vsub.f32 %v2307, %v2328
        %v2349 = vsub.f32 %v2308, %v2329
        %v2350 = vsub.f32 %v2309, %v2330
        %v2351 = vsub.f32 %v2310, %v2331
        %v2352 = vsub.f32 %v2311, %v2332
        %v2353 = vsub.f32 %v2312, %v2333
        %v2354 = vsub.f32 %v2313, %v2334
        %v2355 = vsub.f32 %v2314, %v2335
        %v2356 = vsub.f32 %v2315, %v2336
        %v2357 = vsub.f32 %v2316, %v2337
        %v2358 = vsub.f32 %v2317, %v2338
        %v2359 = vsub.f32 %v2318, %v2339
        %v2360 = vsub.f32 %v2319, %v2340
        %v2361 = vsub.f32 %v2320, %v2341
        %v2362 = vsub.f32 %v2321, %v2342
        %v2383 = vrot.slane %v2343, 1
        %v2384 = vrot.slane %v2345, 1
        %v2385 = vsel %vm1884, %v2383, %v2384
        %v2386 = vrot.slane %v2344, 1
        %v2387 = vrot.slane %v2346, 1
        %v2388 = vsel %vm1884, %v2386, %v2387
        %v2389 = vrot.slane %v2347, 1
        %v2390 = vrot.slane %v2349, 1
        %v2391 = vsel %vm1884, %v2389, %v2390
        %v2392 = vrot.slane %v2348, 1
        %v2393 = vrot.slane %v2350, 1
        %v2394 = vsel %vm1884, %v2392, %v2393
        %v2395 = vrot.slane %v2351, 1
        %v2396 = vrot.slane %v2353, 1
        %v2397 = vsel %vm1884, %v2395, %v2396
        %v2398 = vrot.slane %v2352, 1
        %v2399 = vrot.slane %v2354, 1
        %v2400 = vsel %vm1884, %v2398, %v2399
        %v2401 = vrot.slane %v2355, 1
        %v2402 = vrot.slane %v2357, 1
        %v2403 = vsel %vm1884, %v2401, %v2402
        %v2404 = vrot.slane %v2356, 1
        %v2405 = vrot.slane %v2358, 1
        %v2406 = vsel %vm1884, %v2404, %v2405
        %v2407 = vrot.slane %v2359, 1
        %v2408 = vrot.slane %v2361, 1
        %v2409 = vsel %vm1884, %v2407, %v2408
        %v2410 = vrot.slane %v2360, 1
        %v2411 = vrot.slane %v2362, 1
        %v2412 = vsel %vm1884, %v2410, %v2411
        %2413 = vrot.lane.b32.xlu0 %v2385, 127
        %v2414 = vpop.permute.xlu0 %2413
        %2415 = vrot.lane.b32.xlu0 %v2388, 127
        %v2416 = vpop.permute.xlu0 %2415
        %2417 = vrot.lane.b32.xlu0 %v2391, 127
        %v2418 = vpop.permute.xlu0 %2417
        %2419 = vrot.lane.b32.xlu0 %v2394, 127
        %v2420 = vpop.permute.xlu0 %2419
        %2421 = vrot.lane.b32.xlu0 %v2397, 127
        %v2422 = vpop.permute.xlu0 %2421
        %2423 = vrot.lane.b32.xlu0 %v2400, 127
        %v2424 = vpop.permute.xlu0 %2423
        %2425 = vrot.lane.b32.xlu0 %v2403, 127
        %v2426 = vpop.permute.xlu0 %2425
        %2427 = vrot.lane.b32.xlu0 %v2406, 127
        %v2428 = vpop.permute.xlu0 %2427
        %2429 = vrot.lane.b32.xlu0 %v2409, 127
        %v2430 = vpop.permute.xlu0 %2429
        %2431 = vrot.lane.b32.xlu0 %v2412, 127
        %v2432 = vpop.permute.xlu0 %2431
        %v2433 = vsel %vm950, %v2414, %v2416
        %v2434 = vsel %vm950, %v2418, %v2420
        %v2435 = vsel %vm950, %v2422, %v2424
        %v2436 = vsel %vm950, %v2426, %v2428
        %v2437 = vsel %vm950, %v2430, %v2432
        %v2443 = vadd.f32 %v2173, %v2433
        %v2444 = vadd.f32 %v2174, %v2434
        %v2445 = vadd.f32 %v2175, %v2435
        %v2446 = vadd.f32 %v2176, %v2436
        %v2447 = vadd.f32 %v2177, %v2437
        %v2448 = vmul.f32 %v2301, %v2271
        %v2449 = vmul.f32 %v2301, %v2272
        %v2450 = vmul.f32 %v2301, %v2273
        %v2451 = vmul.f32 %v2301, %v2274
        %v2452 = vmul.f32 %v2301, %v2275
        %v2453 = vmul.f32 %v2301, %v2276
        %v2454 = vmul.f32 %v2301, %v2277
        %v2455 = vmul.f32 %v2301, %v2278
        %v2456 = vmul.f32 %v2301, %v2279
        %v2457 = vmul.f32 %v2301, %v2280
        %v2458 = vmul.f32 %v2301, %v2281
        %v2459 = vmul.f32 %v2301, %v2282
        %v2460 = vmul.f32 %v2301, %v2283
        %v2461 = vmul.f32 %v2301, %v2284
        %v2462 = vmul.f32 %v2301, %v2285
        %v2463 = vmul.f32 %v2301, %v2286
        %v2464 = vmul.f32 %v2301, %v2287
        %v2465 = vmul.f32 %v2301, %v2288
        %v2466 = vmul.f32 %v2301, %v2289
        %v2467 = vmul.f32 %v2301, %v2290
        %v2468 = vmul.f32 %v2322, %v2243
        %v2469 = vmul.f32 %v2322, %v2244
        %v2470 = vmul.f32 %v2322, %v2245
        %v2471 = vmul.f32 %v2322, %v2246
        %v2472 = vmul.f32 %v2322, %v2247
        %v2473 = vmul.f32 %v2322, %v2248
        %v2474 = vmul.f32 %v2322, %v2249
        %v2475 = vmul.f32 %v2322, %v2250
        %v2476 = vmul.f32 %v2322, %v2251
        %v2477 = vmul.f32 %v2322, %v2252
        %v2478 = vmul.f32 %v2322, %v2253
        %v2479 = vmul.f32 %v2322, %v2254
        %v2480 = vmul.f32 %v2322, %v2255
        %v2481 = vmul.f32 %v2322, %v2256
        %v2482 = vmul.f32 %v2322, %v2257
        %v2483 = vmul.f32 %v2322, %v2258
        %v2484 = vmul.f32 %v2322, %v2259
        %v2485 = vmul.f32 %v2322, %v2260
        %v2486 = vmul.f32 %v2322, %v2261
        %v2487 = vmul.f32 %v2322, %v2262
        %v2488 = vadd.f32 %v2448, %v2468
        %v2489 = vadd.f32 %v2449, %v2469
        %v2490 = vadd.f32 %v2450, %v2470
        %v2491 = vadd.f32 %v2451, %v2471
        %v2492 = vadd.f32 %v2452, %v2472
        %v2493 = vadd.f32 %v2453, %v2473
        %v2494 = vadd.f32 %v2454, %v2474
        %v2495 = vadd.f32 %v2455, %v2475
        %v2496 = vadd.f32 %v2456, %v2476
        %v2497 = vadd.f32 %v2457, %v2477
        %v2498 = vadd.f32 %v2458, %v2478
        %v2499 = vadd.f32 %v2459, %v2479
        %v2500 = vadd.f32 %v2460, %v2480
        %v2501 = vadd.f32 %v2461, %v2481
        %v2502 = vadd.f32 %v2462, %v2482
        %v2503 = vadd.f32 %v2463, %v2483
        %v2504 = vadd.f32 %v2464, %v2484
        %v2505 = vadd.f32 %v2465, %v2485
        %v2506 = vadd.f32 %v2466, %v2486
        %v2507 = vadd.f32 %v2467, %v2487
        %v2528 = vrot.slane %v2488, 1
        %v2529 = vrot.slane %v2490, 1
        %v2530 = vsel %vm1884, %v2528, %v2529
        %v2531 = vrot.slane %v2489, 1
        %v2532 = vrot.slane %v2491, 1
        %v2533 = vsel %vm1884, %v2531, %v2532
        %v2534 = vrot.slane %v2492, 1
        %v2535 = vrot.slane %v2494, 1
        %v2536 = vsel %vm1884, %v2534, %v2535
        %v2537 = vrot.slane %v2493, 1
        %v2538 = vrot.slane %v2495, 1
        %v2539 = vsel %vm1884, %v2537, %v2538
        %v2540 = vrot.slane %v2496, 1
        %v2541 = vrot.slane %v2498, 1
        %v2542 = vsel %vm1884, %v2540, %v2541
        %v2543 = vrot.slane %v2497, 1
        %v2544 = vrot.slane %v2499, 1
        %v2545 = vsel %vm1884, %v2543, %v2544
        %v2546 = vrot.slane %v2500, 1
        %v2547 = vrot.slane %v2502, 1
        %v2548 = vsel %vm1884, %v2546, %v2547
        %v2549 = vrot.slane %v2501, 1
        %v2550 = vrot.slane %v2503, 1
        %v2551 = vsel %vm1884, %v2549, %v2550
        %v2552 = vrot.slane %v2504, 1
        %v2553 = vrot.slane %v2506, 1
        %v2554 = vsel %vm1884, %v2552, %v2553
        %v2555 = vrot.slane %v2505, 1
        %v2556 = vrot.slane %v2507, 1
        %v2557 = vsel %vm1884, %v2555, %v2556
        %2558 = vrot.lane.b32.xlu0 %v2530, 127
        %v2559 = vpop.permute.xlu0 %2558
        %2560 = vrot.lane.b32.xlu0 %v2533, 127
        %v2561 = vpop.permute.xlu0 %2560
        %2562 = vrot.lane.b32.xlu0 %v2536, 127
        %v2563 = vpop.permute.xlu0 %2562
        %2564 = vrot.lane.b32.xlu0 %v2539, 127
        %v2565 = vpop.permute.xlu0 %2564
        %2566 = vrot.lane.b32.xlu0 %v2542, 127
        %v2567 = vpop.permute.xlu0 %2566
        %2568 = vrot.lane.b32.xlu0 %v2545, 127
        %v2569 = vpop.permute.xlu0 %2568
        %2570 = vrot.lane.b32.xlu0 %v2548, 127
        %v2571 = vpop.permute.xlu0 %2570
        %2572 = vrot.lane.b32.xlu0 %v2551, 127
        %v2573 = vpop.permute.xlu0 %2572
        %2574 = vrot.lane.b32.xlu0 %v2554, 127
        %v2575 = vpop.permute.xlu0 %2574
        %2576 = vrot.lane.b32.xlu0 %v2557, 127
        %v2577 = vpop.permute.xlu0 %2576
        %v2578 = vsel %vm950, %v2559, %v2561
        %v2579 = vsel %vm950, %v2563, %v2565
        %v2580 = vsel %vm950, %v2567, %v2569
        %v2581 = vsel %vm950, %v2571, %v2573
        %v2582 = vsel %vm950, %v2575, %v2577
        %v2588 = vadd.f32 %v2238, %v2578
        %v2589 = vadd.f32 %v2239, %v2579
        %v2590 = vadd.f32 %v2240, %v2580
        %v2591 = vadd.f32 %v2241, %v2581
        %v2592 = vadd.f32 %v2242, %v2582
        %s2593 = sld [smem:[#allocation3 + $0xd]]
        %s2594 = sld [smem:[#allocation7 + $0xd]]
        %v2595 = vstv %s2593
        %v2596 = vmul.f32 %v2595, %v2247
        %v2597 = vmul.f32 %v2595, %v2248
        %v2598 = vmul.f32 %v2595, %v2249
        %v2599 = vmul.f32 %v2595, %v2250
        %v2600 = vmul.f32 %v2595, %v2251
        %v2601 = vmul.f32 %v2595, %v2252
        %v2602 = vmul.f32 %v2595, %v2253
        %v2603 = vmul.f32 %v2595, %v2254
        %v2604 = vmul.f32 %v2595, %v2255
        %v2605 = vmul.f32 %v2595, %v2256
        %v2606 = vmul.f32 %v2595, %v2257
        %v2607 = vmul.f32 %v2595, %v2258
        %v2608 = vmul.f32 %v2595, %v2259
        %v2609 = vmul.f32 %v2595, %v2260
        %v2610 = vmul.f32 %v2595, %v2261
        %v2611 = vmul.f32 %v2595, %v2262
        %v2612 = vmul.f32 %v2595, %v2263
        %v2613 = vmul.f32 %v2595, %v2264
        %v2614 = vmul.f32 %v2595, %v2265
        %v2615 = vmul.f32 %v2595, %v2266
        %v2616 = vstv %s2594
        %v2617 = vmul.f32 %v2616, %v2275
        %v2618 = vmul.f32 %v2616, %v2276
        %v2619 = vmul.f32 %v2616, %v2277
        %v2620 = vmul.f32 %v2616, %v2278
        %v2621 = vmul.f32 %v2616, %v2279
        %v2622 = vmul.f32 %v2616, %v2280
        %v2623 = vmul.f32 %v2616, %v2281
        %v2624 = vmul.f32 %v2616, %v2282
        %v2625 = vmul.f32 %v2616, %v2283
        %v2626 = vmul.f32 %v2616, %v2284
        %v2627 = vmul.f32 %v2616, %v2285
        %v2628 = vmul.f32 %v2616, %v2286
        %v2629 = vmul.f32 %v2616, %v2287
        %v2630 = vmul.f32 %v2616, %v2288
        %v2631 = vmul.f32 %v2616, %v2289
        %v2632 = vmul.f32 %v2616, %v2290
        %v2633 = vmul.f32 %v2616, %v2291
        %v2634 = vmul.f32 %v2616, %v2292
        %v2635 = vmul.f32 %v2616, %v2293
        %v2636 = vmul.f32 %v2616, %v2294
        %v2637 = vsub.f32 %v2596, %v2617
        %v2638 = vsub.f32 %v2597, %v2618
        %v2639 = vsub.f32 %v2598, %v2619
        %v2640 = vsub.f32 %v2599, %v2620
        %v2641 = vsub.f32 %v2600, %v2621
        %v2642 = vsub.f32 %v2601, %v2622
        %v2643 = vsub.f32 %v2602, %v2623
        %v2644 = vsub.f32 %v2603, %v2624
        %v2645 = vsub.f32 %v2604, %v2625
        %v2646 = vsub.f32 %v2605, %v2626
        %v2647 = vsub.f32 %v2606, %v2627
        %v2648 = vsub.f32 %v2607, %v2628
        %v2649 = vsub.f32 %v2608, %v2629
        %v2650 = vsub.f32 %v2609, %v2630
        %v2651 = vsub.f32 %v2610, %v2631
        %v2652 = vsub.f32 %v2611, %v2632
        %v2653 = vsub.f32 %v2612, %v2633
        %v2654 = vsub.f32 %v2613, %v2634
        %v2655 = vsub.f32 %v2614, %v2635
        %v2656 = vsub.f32 %v2615, %v2636
        %v2677 = vrot.slane %v2637, 1
        %v2678 = vrot.slane %v2639, 1
        %v2679 = vsel %vm1884, %v2677, %v2678
        %v2680 = vrot.slane %v2638, 1
        %v2681 = vrot.slane %v2640, 1
        %v2682 = vsel %vm1884, %v2680, %v2681
        %v2683 = vrot.slane %v2641, 1
        %v2684 = vrot.slane %v2643, 1
        %v2685 = vsel %vm1884, %v2683, %v2684
        %v2686 = vrot.slane %v2642, 1
        %v2687 = vrot.slane %v2644, 1
        %v2688 = vsel %vm1884, %v2686, %v2687
        %v2689 = vrot.slane %v2645, 1
        %v2690 = vrot.slane %v2647, 1
        %v2691 = vsel %vm1884, %v2689, %v2690
        %v2692 = vrot.slane %v2646, 1
        %v2693 = vrot.slane %v2648, 1
        %v2694 = vsel %vm1884, %v2692, %v2693
        %v2695 = vrot.slane %v2649, 1
        %v2696 = vrot.slane %v2651, 1
        %v2697 = vsel %vm1884, %v2695, %v2696
        %v2698 = vrot.slane %v2650, 1
        %v2699 = vrot.slane %v2652, 1
        %v2700 = vsel %vm1884, %v2698, %v2699
        %v2701 = vrot.slane %v2653, 1
        %v2702 = vrot.slane %v2655, 1
        %v2703 = vsel %vm1884, %v2701, %v2702
        %v2704 = vrot.slane %v2654, 1
        %v2705 = vrot.slane %v2656, 1
        %v2706 = vsel %vm1884, %v2704, %v2705
        %2707 = vrot.lane.b32.xlu0 %v2679, 127
        %v2708 = vpop.permute.xlu0 %2707
        %2709 = vrot.lane.b32.xlu0 %v2682, 127
        %v2710 = vpop.permute.xlu0 %2709
        %2711 = vrot.lane.b32.xlu0 %v2685, 127
        %v2712 = vpop.permute.xlu0 %2711
        %2713 = vrot.lane.b32.xlu0 %v2688, 127
        %v2714 = vpop.permute.xlu0 %2713
        %2715 = vrot.lane.b32.xlu0 %v2691, 127
        %v2716 = vpop.permute.xlu0 %2715
        %2717 = vrot.lane.b32.xlu0 %v2694, 127
        %v2718 = vpop.permute.xlu0 %2717
        %2719 = vrot.lane.b32.xlu0 %v2697, 127
        %v2720 = vpop.permute.xlu0 %2719
        %2721 = vrot.lane.b32.xlu0 %v2700, 127
        %v2722 = vpop.permute.xlu0 %2721
        %2723 = vrot.lane.b32.xlu0 %v2703, 127
        %v2724 = vpop.permute.xlu0 %2723
        %2725 = vrot.lane.b32.xlu0 %v2706, 127
        %v2726 = vpop.permute.xlu0 %2725
        %v2727 = vsel %vm950, %v2708, %v2710
        %v2728 = vsel %vm950, %v2712, %v2714
        %v2729 = vsel %vm950, %v2716, %v2718
        %v2730 = vsel %vm950, %v2720, %v2722
        %v2731 = vsel %vm950, %v2724, %v2726
        %v2737 = vadd.f32 %v2443, %v2727
        %v2738 = vadd.f32 %v2444, %v2728
        %v2739 = vadd.f32 %v2445, %v2729
        %v2740 = vadd.f32 %v2446, %v2730
        %v2741 = vadd.f32 %v2447, %v2731
        %v2742 = vmul.f32 %v2595, %v2275
        %v2743 = vmul.f32 %v2595, %v2276
        %v2744 = vmul.f32 %v2595, %v2277
        %v2745 = vmul.f32 %v2595, %v2278
        %v2746 = vmul.f32 %v2595, %v2279
        %v2747 = vmul.f32 %v2595, %v2280
        %v2748 = vmul.f32 %v2595, %v2281
        %v2749 = vmul.f32 %v2595, %v2282
        %v2750 = vmul.f32 %v2595, %v2283
        %v2751 = vmul.f32 %v2595, %v2284
        %v2752 = vmul.f32 %v2595, %v2285
        %v2753 = vmul.f32 %v2595, %v2286
        %v2754 = vmul.f32 %v2595, %v2287
        %v2755 = vmul.f32 %v2595, %v2288
        %v2756 = vmul.f32 %v2595, %v2289
        %v2757 = vmul.f32 %v2595, %v2290
        %v2758 = vmul.f32 %v2595, %v2291
        %v2759 = vmul.f32 %v2595, %v2292
        %v2760 = vmul.f32 %v2595, %v2293
        %v2761 = vmul.f32 %v2595, %v2294
        %v2762 = vmul.f32 %v2616, %v2247
        %v2763 = vmul.f32 %v2616, %v2248
        %v2764 = vmul.f32 %v2616, %v2249
        %v2765 = vmul.f32 %v2616, %v2250
        %v2766 = vmul.f32 %v2616, %v2251
        %v2767 = vmul.f32 %v2616, %v2252
        %v2768 = vmul.f32 %v2616, %v2253
        %v2769 = vmul.f32 %v2616, %v2254
        %v2770 = vmul.f32 %v2616, %v2255
        %v2771 = vmul.f32 %v2616, %v2256
        %v2772 = vmul.f32 %v2616, %v2257
        %v2773 = vmul.f32 %v2616, %v2258
        %v2774 = vmul.f32 %v2616, %v2259
        %v2775 = vmul.f32 %v2616, %v2260
        %v2776 = vmul.f32 %v2616, %v2261
        %v2777 = vmul.f32 %v2616, %v2262
        %v2778 = vmul.f32 %v2616, %v2263
        %v2779 = vmul.f32 %v2616, %v2264
        %v2780 = vmul.f32 %v2616, %v2265
        %v2781 = vmul.f32 %v2616, %v2266
        %v2782 = vadd.f32 %v2742, %v2762
        %v2783 = vadd.f32 %v2743, %v2763
        %v2784 = vadd.f32 %v2744, %v2764
        %v2785 = vadd.f32 %v2745, %v2765
        %v2786 = vadd.f32 %v2746, %v2766
        %v2787 = vadd.f32 %v2747, %v2767
        %v2788 = vadd.f32 %v2748, %v2768
        %v2789 = vadd.f32 %v2749, %v2769
        %v2790 = vadd.f32 %v2750, %v2770
        %v2791 = vadd.f32 %v2751, %v2771
        %v2792 = vadd.f32 %v2752, %v2772
        %v2793 = vadd.f32 %v2753, %v2773
        %v2794 = vadd.f32 %v2754, %v2774
        %v2795 = vadd.f32 %v2755, %v2775
        %v2796 = vadd.f32 %v2756, %v2776
        %v2797 = vadd.f32 %v2757, %v2777
        %v2798 = vadd.f32 %v2758, %v2778
        %v2799 = vadd.f32 %v2759, %v2779
        %v2800 = vadd.f32 %v2760, %v2780
        %v2801 = vadd.f32 %v2761, %v2781
        %v2822 = vrot.slane %v2782, 1
        %v2823 = vrot.slane %v2784, 1
        %v2824 = vsel %vm1884, %v2822, %v2823
        %v2825 = vrot.slane %v2783, 1
        %v2826 = vrot.slane %v2785, 1
        %v2827 = vsel %vm1884, %v2825, %v2826
        %v2828 = vrot.slane %v2786, 1
        %v2829 = vrot.slane %v2788, 1
        %v2830 = vsel %vm1884, %v2828, %v2829
        %v2831 = vrot.slane %v2787, 1
        %v2832 = vrot.slane %v2789, 1
        %v2833 = vsel %vm1884, %v2831, %v2832
        %v2834 = vrot.slane %v2790, 1
        %v2835 = vrot.slane %v2792, 1
        %v2836 = vsel %vm1884, %v2834, %v2835
        %v2837 = vrot.slane %v2791, 1
        %v2838 = vrot.slane %v2793, 1
        %v2839 = vsel %vm1884, %v2837, %v2838
        %v2840 = vrot.slane %v2794, 1
        %v2841 = vrot.slane %v2796, 1
        %v2842 = vsel %vm1884, %v2840, %v2841
        %v2843 = vrot.slane %v2795, 1
        %v2844 = vrot.slane %v2797, 1
        %v2845 = vsel %vm1884, %v2843, %v2844
        %v2846 = vrot.slane %v2798, 1
        %v2847 = vrot.slane %v2800, 1
        %v2848 = vsel %vm1884, %v2846, %v2847
        %v2849 = vrot.slane %v2799, 1
        %v2850 = vrot.slane %v2801, 1
        %v2851 = vsel %vm1884, %v2849, %v2850
        %2852 = vrot.lane.b32.xlu0 %v2824, 127
        %v2853 = vpop.permute.xlu0 %2852
        %2854 = vrot.lane.b32.xlu0 %v2827, 127
        %v2855 = vpop.permute.xlu0 %2854
        %2856 = vrot.lane.b32.xlu0 %v2830, 127
        %v2857 = vpop.permute.xlu0 %2856
        %2858 = vrot.lane.b32.xlu0 %v2833, 127
        %v2859 = vpop.permute.xlu0 %2858
        %2860 = vrot.lane.b32.xlu0 %v2836, 127
        %v2861 = vpop.permute.xlu0 %2860
        %2862 = vrot.lane.b32.xlu0 %v2839, 127
        %v2863 = vpop.permute.xlu0 %2862
        %2864 = vrot.lane.b32.xlu0 %v2842, 127
        %v2865 = vpop.permute.xlu0 %2864
        %2866 = vrot.lane.b32.xlu0 %v2845, 127
        %v2867 = vpop.permute.xlu0 %2866
        %2868 = vrot.lane.b32.xlu0 %v2848, 127
        %v2869 = vpop.permute.xlu0 %2868
        %2870 = vrot.lane.b32.xlu0 %v2851, 127
        %v2871 = vpop.permute.xlu0 %2870
        %v2872 = vsel %vm950, %v2853, %v2855
        %v2873 = vsel %vm950, %v2857, %v2859
        %v2874 = vsel %vm950, %v2861, %v2863
        %v2875 = vsel %vm950, %v2865, %v2867
        %v2876 = vsel %vm950, %v2869, %v2871
        %v2882 = vadd.f32 %v2588, %v2872
        %v2883 = vadd.f32 %v2589, %v2873
        %v2884 = vadd.f32 %v2590, %v2874
        %v2885 = vadd.f32 %v2591, %v2875
        %v2886 = vadd.f32 %v2592, %v2876
        %s2887 = sld [smem:[#allocation3 + $0xe]]
        %s2888 = sld [smem:[#allocation7 + $0xe]]
        %v2889 = vstv %s2887
        %v2890 = vmul.f32 %v2889, %v2251
        %v2891 = vmul.f32 %v2889, %v2252
        %v2892 = vmul.f32 %v2889, %v2253
        %v2893 = vmul.f32 %v2889, %v2254
        %v2894 = vmul.f32 %v2889, %v2255
        %v2895 = vmul.f32 %v2889, %v2256
        %v2896 = vmul.f32 %v2889, %v2257
        %v2897 = vmul.f32 %v2889, %v2258
        %v2898 = vmul.f32 %v2889, %v2259
        %v2899 = vmul.f32 %v2889, %v2260
        %v2900 = vmul.f32 %v2889, %v2261
        %v2901 = vmul.f32 %v2889, %v2262
        %v2902 = vmul.f32 %v2889, %v2263
        %v2903 = vmul.f32 %v2889, %v2264
        %v2904 = vmul.f32 %v2889, %v2265
        %v2905 = vmul.f32 %v2889, %v2266
        %v2906 = vmul.f32 %v2889, %v2267
        %v2907 = vmul.f32 %v2889, %v2268
        %v2908 = vmul.f32 %v2889, %v2269
        %v2909 = vmul.f32 %v2889, %v2270
        %v2910 = vstv %s2888
        %v2911 = vmul.f32 %v2910, %v2279
        %v2912 = vmul.f32 %v2910, %v2280
        %v2913 = vmul.f32 %v2910, %v2281
        %v2914 = vmul.f32 %v2910, %v2282
        %v2915 = vmul.f32 %v2910, %v2283
        %v2916 = vmul.f32 %v2910, %v2284
        %v2917 = vmul.f32 %v2910, %v2285
        %v2918 = vmul.f32 %v2910, %v2286
        %v2919 = vmul.f32 %v2910, %v2287
        %v2920 = vmul.f32 %v2910, %v2288
        %v2921 = vmul.f32 %v2910, %v2289
        %v2922 = vmul.f32 %v2910, %v2290
        %v2923 = vmul.f32 %v2910, %v2291
        %v2924 = vmul.f32 %v2910, %v2292
        %v2925 = vmul.f32 %v2910, %v2293
        %v2926 = vmul.f32 %v2910, %v2294
        %v2927 = vmul.f32 %v2910, %v2295
        %v2928 = vmul.f32 %v2910, %v2296
        %v2929 = vmul.f32 %v2910, %v2297
        %v2930 = vmul.f32 %v2910, %v2298
        %v2931 = vsub.f32 %v2890, %v2911
        %v2932 = vsub.f32 %v2891, %v2912
        %v2933 = vsub.f32 %v2892, %v2913
        %v2934 = vsub.f32 %v2893, %v2914
        %v2935 = vsub.f32 %v2894, %v2915
        %v2936 = vsub.f32 %v2895, %v2916
        %v2937 = vsub.f32 %v2896, %v2917
        %v2938 = vsub.f32 %v2897, %v2918
        %v2939 = vsub.f32 %v2898, %v2919
        %v2940 = vsub.f32 %v2899, %v2920
        %v2941 = vsub.f32 %v2900, %v2921
        %v2942 = vsub.f32 %v2901, %v2922
        %v2943 = vsub.f32 %v2902, %v2923
        %v2944 = vsub.f32 %v2903, %v2924
        %v2945 = vsub.f32 %v2904, %v2925
        %v2946 = vsub.f32 %v2905, %v2926
        %v2947 = vsub.f32 %v2906, %v2927
        %v2948 = vsub.f32 %v2907, %v2928
        %v2949 = vsub.f32 %v2908, %v2929
        %v2950 = vsub.f32 %v2909, %v2930
        %v2971 = vrot.slane %v2931, 1
        %v2972 = vrot.slane %v2933, 1
        %v2973 = vsel %vm1884, %v2971, %v2972
        %v2974 = vrot.slane %v2932, 1
        %v2975 = vrot.slane %v2934, 1
        %v2976 = vsel %vm1884, %v2974, %v2975
        %v2977 = vrot.slane %v2935, 1
        %v2978 = vrot.slane %v2937, 1
        %v2979 = vsel %vm1884, %v2977, %v2978
        %v2980 = vrot.slane %v2936, 1
        %v2981 = vrot.slane %v2938, 1
        %v2982 = vsel %vm1884, %v2980, %v2981
        %v2983 = vrot.slane %v2939, 1
        %v2984 = vrot.slane %v2941, 1
        %v2985 = vsel %vm1884, %v2983, %v2984
        %v2986 = vrot.slane %v2940, 1
        %v2987 = vrot.slane %v2942, 1
        %v2988 = vsel %vm1884, %v2986, %v2987
        %v2989 = vrot.slane %v2943, 1
        %v2990 = vrot.slane %v2945, 1
        %v2991 = vsel %vm1884, %v2989, %v2990
        %v2992 = vrot.slane %v2944, 1
        %v2993 = vrot.slane %v2946, 1
        %v2994 = vsel %vm1884, %v2992, %v2993
        %v2995 = vrot.slane %v2947, 1
        %v2996 = vrot.slane %v2949, 1
        %v2997 = vsel %vm1884, %v2995, %v2996
        %v2998 = vrot.slane %v2948, 1
        %v2999 = vrot.slane %v2950, 1
        %v3000 = vsel %vm1884, %v2998, %v2999
        %3001 = vrot.lane.b32.xlu0 %v2973, 127
        %v3002 = vpop.permute.xlu0 %3001
        %3003 = vrot.lane.b32.xlu0 %v2976, 127
        %v3004 = vpop.permute.xlu0 %3003
        %3005 = vrot.lane.b32.xlu0 %v2979, 127
        %v3006 = vpop.permute.xlu0 %3005
        %3007 = vrot.lane.b32.xlu0 %v2982, 127
        %v3008 = vpop.permute.xlu0 %3007
        %3009 = vrot.lane.b32.xlu0 %v2985, 127
        %v3010 = vpop.permute.xlu0 %3009
        %3011 = vrot.lane.b32.xlu0 %v2988, 127
        %v3012 = vpop.permute.xlu0 %3011
        %3013 = vrot.lane.b32.xlu0 %v2991, 127
        %v3014 = vpop.permute.xlu0 %3013
        %3015 = vrot.lane.b32.xlu0 %v2994, 127
        %v3016 = vpop.permute.xlu0 %3015
        %3017 = vrot.lane.b32.xlu0 %v2997, 127
        %v3018 = vpop.permute.xlu0 %3017
        %3019 = vrot.lane.b32.xlu0 %v3000, 127
        %v3020 = vpop.permute.xlu0 %3019
        %v3021 = vsel %vm950, %v3002, %v3004
        %v3022 = vsel %vm950, %v3006, %v3008
        %v3023 = vsel %vm950, %v3010, %v3012
        %v3024 = vsel %vm950, %v3014, %v3016
        %v3025 = vsel %vm950, %v3018, %v3020
        %v3031 = vadd.f32 %v2737, %v3021
        %v3032 = vadd.f32 %v2738, %v3022
        %v3033 = vadd.f32 %v2739, %v3023
        %v3034 = vadd.f32 %v2740, %v3024
        %v3035 = vadd.f32 %v2741, %v3025
        %v3036 = vmul.f32 %v2889, %v2279
        %v3037 = vmul.f32 %v2889, %v2280
        %v3038 = vmul.f32 %v2889, %v2281
        %v3039 = vmul.f32 %v2889, %v2282
        %v3040 = vmul.f32 %v2889, %v2283
        %v3041 = vmul.f32 %v2889, %v2284
        %v3042 = vmul.f32 %v2889, %v2285
        %v3043 = vmul.f32 %v2889, %v2286
        %v3044 = vmul.f32 %v2889, %v2287
        %v3045 = vmul.f32 %v2889, %v2288
        %v3046 = vmul.f32 %v2889, %v2289
        %v3047 = vmul.f32 %v2889, %v2290
        %v3048 = vmul.f32 %v2889, %v2291
        %v3049 = vmul.f32 %v2889, %v2292
        %v3050 = vmul.f32 %v2889, %v2293
        %v3051 = vmul.f32 %v2889, %v2294
        %v3052 = vmul.f32 %v2889, %v2295
        %v3053 = vmul.f32 %v2889, %v2296
        %v3054 = vmul.f32 %v2889, %v2297
        %v3055 = vmul.f32 %v2889, %v2298
        %v3056 = vmul.f32 %v2910, %v2251
        %v3057 = vmul.f32 %v2910, %v2252
        %v3058 = vmul.f32 %v2910, %v2253
        %v3059 = vmul.f32 %v2910, %v2254
        %v3060 = vmul.f32 %v2910, %v2255
        %v3061 = vmul.f32 %v2910, %v2256
        %v3062 = vmul.f32 %v2910, %v2257
        %v3063 = vmul.f32 %v2910, %v2258
        %v3064 = vmul.f32 %v2910, %v2259
        %v3065 = vmul.f32 %v2910, %v2260
        %v3066 = vmul.f32 %v2910, %v2261
        %v3067 = vmul.f32 %v2910, %v2262
        %v3068 = vmul.f32 %v2910, %v2263
        %v3069 = vmul.f32 %v2910, %v2264
        %v3070 = vmul.f32 %v2910, %v2265
        %v3071 = vmul.f32 %v2910, %v2266
        %v3072 = vmul.f32 %v2910, %v2267
        %v3073 = vmul.f32 %v2910, %v2268
        %v3074 = vmul.f32 %v2910, %v2269
        %v3075 = vmul.f32 %v2910, %v2270
        %v3076 = vadd.f32 %v3036, %v3056
        %v3077 = vadd.f32 %v3037, %v3057
        %v3078 = vadd.f32 %v3038, %v3058
        %v3079 = vadd.f32 %v3039, %v3059
        %v3080 = vadd.f32 %v3040, %v3060
        %v3081 = vadd.f32 %v3041, %v3061
        %v3082 = vadd.f32 %v3042, %v3062
        %v3083 = vadd.f32 %v3043, %v3063
        %v3084 = vadd.f32 %v3044, %v3064
        %v3085 = vadd.f32 %v3045, %v3065
        %v3086 = vadd.f32 %v3046, %v3066
        %v3087 = vadd.f32 %v3047, %v3067
        %v3088 = vadd.f32 %v3048, %v3068
        %v3089 = vadd.f32 %v3049, %v3069
        %v3090 = vadd.f32 %v3050, %v3070
        %v3091 = vadd.f32 %v3051, %v3071
        %v3092 = vadd.f32 %v3052, %v3072
        %v3093 = vadd.f32 %v3053, %v3073
        %v3094 = vadd.f32 %v3054, %v3074
        %v3095 = vadd.f32 %v3055, %v3075
        %v3116 = vrot.slane %v3076, 1
        %v3117 = vrot.slane %v3078, 1
        %v3118 = vsel %vm1884, %v3116, %v3117
        %v3119 = vrot.slane %v3077, 1
        %v3120 = vrot.slane %v3079, 1
        %v3121 = vsel %vm1884, %v3119, %v3120
        %v3122 = vrot.slane %v3080, 1
        %v3123 = vrot.slane %v3082, 1
        %v3124 = vsel %vm1884, %v3122, %v3123
        %v3125 = vrot.slane %v3081, 1
        %v3126 = vrot.slane %v3083, 1
        %v3127 = vsel %vm1884, %v3125, %v3126
        %v3128 = vrot.slane %v3084, 1
        %v3129 = vrot.slane %v3086, 1
        %v3130 = vsel %vm1884, %v3128, %v3129
        %v3131 = vrot.slane %v3085, 1
        %v3132 = vrot.slane %v3087, 1
        %v3133 = vsel %vm1884, %v3131, %v3132
        %v3134 = vrot.slane %v3088, 1
        %v3135 = vrot.slane %v3090, 1
        %v3136 = vsel %vm1884, %v3134, %v3135
        %v3137 = vrot.slane %v3089, 1
        %v3138 = vrot.slane %v3091, 1
        %v3139 = vsel %vm1884, %v3137, %v3138
        %v3140 = vrot.slane %v3092, 1
        %v3141 = vrot.slane %v3094, 1
        %v3142 = vsel %vm1884, %v3140, %v3141
        %v3143 = vrot.slane %v3093, 1
        %v3144 = vrot.slane %v3095, 1
        %v3145 = vsel %vm1884, %v3143, %v3144
        %3146 = vrot.lane.b32.xlu0 %v3118, 127
        %v3147 = vpop.permute.xlu0 %3146
        %3148 = vrot.lane.b32.xlu0 %v3121, 127
        %v3149 = vpop.permute.xlu0 %3148
        %3150 = vrot.lane.b32.xlu0 %v3124, 127
        %v3151 = vpop.permute.xlu0 %3150
        %3152 = vrot.lane.b32.xlu0 %v3127, 127
        %v3153 = vpop.permute.xlu0 %3152
        %3154 = vrot.lane.b32.xlu0 %v3130, 127
        %v3155 = vpop.permute.xlu0 %3154
        %3156 = vrot.lane.b32.xlu0 %v3133, 127
        %v3157 = vpop.permute.xlu0 %3156
        %3158 = vrot.lane.b32.xlu0 %v3136, 127
        %v3159 = vpop.permute.xlu0 %3158
        %3160 = vrot.lane.b32.xlu0 %v3139, 127
        %v3161 = vpop.permute.xlu0 %3160
        %3162 = vrot.lane.b32.xlu0 %v3142, 127
        %v3163 = vpop.permute.xlu0 %3162
        %3164 = vrot.lane.b32.xlu0 %v3145, 127
        %v3165 = vpop.permute.xlu0 %3164
        %v3166 = vsel %vm950, %v3147, %v3149
        %v3167 = vsel %vm950, %v3151, %v3153
        %v3168 = vsel %vm950, %v3155, %v3157
        %v3169 = vsel %vm950, %v3159, %v3161
        %v3170 = vsel %vm950, %v3163, %v3165
        %v3176 = vadd.f32 %v2882, %v3166
        %v3177 = vadd.f32 %v2883, %v3167
        %v3178 = vadd.f32 %v2884, %v3168
        %v3179 = vadd.f32 %v2885, %v3169
        %v3180 = vadd.f32 %v2886, %v3170
        %s3181 = sld [smem:[#allocation3 + $0xf]]
        %s3182 = sld [smem:[#allocation7 + $0xf]]
        %v3183 = vstv %s3181
        %v3184 = vmul.f32 %v3183, %v2243
        %v3185 = vmul.f32 %v3183, %v2244
        %v3186 = vmul.f32 %v3183, %v2245
        %v3187 = vmul.f32 %v3183, %v2246
        %v3188 = vmul.f32 %v3183, %v2247
        %v3189 = vmul.f32 %v3183, %v2248
        %v3190 = vmul.f32 %v3183, %v2249
        %v3191 = vmul.f32 %v3183, %v2250
        %v3192 = vmul.f32 %v3183, %v2251
        %v3193 = vmul.f32 %v3183, %v2252
        %v3194 = vmul.f32 %v3183, %v2253
        %v3195 = vmul.f32 %v3183, %v2254
        %v3196 = vmul.f32 %v3183, %v2255
        %v3197 = vmul.f32 %v3183, %v2256
        %v3198 = vmul.f32 %v3183, %v2257
        %v3199 = vmul.f32 %v3183, %v2258
        %v3200 = vmul.f32 %v3183, %v2259
        %v3201 = vmul.f32 %v3183, %v2260
        %v3202 = vmul.f32 %v3183, %v2261
        %v3203 = vmul.f32 %v3183, %v2262
        %v3204 = vstv %s3182
        %v3205 = vmul.f32 %v3204, %v2271
        %v3206 = vmul.f32 %v3204, %v2272
        %v3207 = vmul.f32 %v3204, %v2273
        %v3208 = vmul.f32 %v3204, %v2274
        %v3209 = vmul.f32 %v3204, %v2275
        %v3210 = vmul.f32 %v3204, %v2276
        %v3211 = vmul.f32 %v3204, %v2277
        %v3212 = vmul.f32 %v3204, %v2278
        %v3213 = vmul.f32 %v3204, %v2279
        %v3214 = vmul.f32 %v3204, %v2280
        %v3215 = vmul.f32 %v3204, %v2281
        %v3216 = vmul.f32 %v3204, %v2282
        %v3217 = vmul.f32 %v3204, %v2283
        %v3218 = vmul.f32 %v3204, %v2284
        %v3219 = vmul.f32 %v3204, %v2285
        %v3220 = vmul.f32 %v3204, %v2286
        %v3221 = vmul.f32 %v3204, %v2287
        %v3222 = vmul.f32 %v3204, %v2288
        %v3223 = vmul.f32 %v3204, %v2289
        %v3224 = vmul.f32 %v3204, %v2290
        %v3225 = vsub.f32 %v3184, %v3205
        %v3226 = vsub.f32 %v3185, %v3206
        %v3227 = vsub.f32 %v3186, %v3207
        %v3228 = vsub.f32 %v3187, %v3208
        %v3229 = vsub.f32 %v3188, %v3209
        %v3230 = vsub.f32 %v3189, %v3210
        %v3231 = vsub.f32 %v3190, %v3211
        %v3232 = vsub.f32 %v3191, %v3212
        %v3233 = vsub.f32 %v3192, %v3213
        %v3234 = vsub.f32 %v3193, %v3214
        %v3235 = vsub.f32 %v3194, %v3215
        %v3236 = vsub.f32 %v3195, %v3216
        %v3237 = vsub.f32 %v3196, %v3217
        %v3238 = vsub.f32 %v3197, %v3218
        %v3239 = vsub.f32 %v3198, %v3219
        %v3240 = vsub.f32 %v3199, %v3220
        %v3241 = vsub.f32 %v3200, %v3221
        %v3242 = vsub.f32 %v3201, %v3222
        %v3243 = vsub.f32 %v3202, %v3223
        %v3244 = vsub.f32 %v3203, %v3224
        %v3265 = vrot.slane %v3225, 1
        %v3266 = vrot.slane %v3227, 1
        %v3267 = vsel %vm1884, %v3265, %v3266
        %v3268 = vrot.slane %v3226, 1
        %v3269 = vrot.slane %v3228, 1
        %v3270 = vsel %vm1884, %v3268, %v3269
        %v3271 = vrot.slane %v3229, 1
        %v3272 = vrot.slane %v3231, 1
        %v3273 = vsel %vm1884, %v3271, %v3272
        %v3274 = vrot.slane %v3230, 1
        %v3275 = vrot.slane %v3232, 1
        %v3276 = vsel %vm1884, %v3274, %v3275
        %v3277 = vrot.slane %v3233, 1
        %v3278 = vrot.slane %v3235, 1
        %v3279 = vsel %vm1884, %v3277, %v3278
        %v3280 = vrot.slane %v3234, 1
        %v3281 = vrot.slane %v3236, 1
        %v3282 = vsel %vm1884, %v3280, %v3281
        %v3283 = vrot.slane %v3237, 1
        %v3284 = vrot.slane %v3239, 1
        %v3285 = vsel %vm1884, %v3283, %v3284
        %v3286 = vrot.slane %v3238, 1
        %v3287 = vrot.slane %v3240, 1
        %v3288 = vsel %vm1884, %v3286, %v3287
        %v3289 = vrot.slane %v3241, 1
        %v3290 = vrot.slane %v3243, 1
        %v3291 = vsel %vm1884, %v3289, %v3290
        %v3292 = vrot.slane %v3242, 1
        %v3293 = vrot.slane %v3244, 1
        %v3294 = vsel %vm1884, %v3292, %v3293
        %3295 = vrot.lane.b32.xlu0 %v3267, 126
        %v3296 = vpop.permute.xlu0 %3295
        %3297 = vrot.lane.b32.xlu0 %v3270, 126
        %v3298 = vpop.permute.xlu0 %3297
        %3299 = vrot.lane.b32.xlu0 %v3273, 126
        %v3300 = vpop.permute.xlu0 %3299
        %3301 = vrot.lane.b32.xlu0 %v3276, 126
        %v3302 = vpop.permute.xlu0 %3301
        %3303 = vrot.lane.b32.xlu0 %v3279, 126
        %v3304 = vpop.permute.xlu0 %3303
        %3305 = vrot.lane.b32.xlu0 %v3282, 126
        %v3306 = vpop.permute.xlu0 %3305
        %3307 = vrot.lane.b32.xlu0 %v3285, 126
        %v3308 = vpop.permute.xlu0 %3307
        %3309 = vrot.lane.b32.xlu0 %v3288, 126
        %v3310 = vpop.permute.xlu0 %3309
        %3311 = vrot.lane.b32.xlu0 %v3291, 126
        %v3312 = vpop.permute.xlu0 %3311
        %3313 = vrot.lane.b32.xlu0 %v3294, 126
        %v3314 = vpop.permute.xlu0 %3313
        %v3315 = vsel %vm1413, %v3296, %v3298
        %v3316 = vsel %vm1413, %v3300, %v3302
        %v3317 = vsel %vm1413, %v3304, %v3306
        %v3318 = vsel %vm1413, %v3308, %v3310
        %v3319 = vsel %vm1413, %v3312, %v3314
        %v3325 = vadd.f32 %v3031, %v3315
        %v3326 = vadd.f32 %v3032, %v3316
        %v3327 = vadd.f32 %v3033, %v3317
        %v3328 = vadd.f32 %v3034, %v3318
        %v3329 = vadd.f32 %v3035, %v3319
        %v3330 = vmul.f32 %v3183, %v2271
        %v3331 = vmul.f32 %v3183, %v2272
        %v3332 = vmul.f32 %v3183, %v2273
        %v3333 = vmul.f32 %v3183, %v2274
        %v3334 = vmul.f32 %v3183, %v2275
        %v3335 = vmul.f32 %v3183, %v2276
        %v3336 = vmul.f32 %v3183, %v2277
        %v3337 = vmul.f32 %v3183, %v2278
        %v3338 = vmul.f32 %v3183, %v2279
        %v3339 = vmul.f32 %v3183, %v2280
        %v3340 = vmul.f32 %v3183, %v2281
        %v3341 = vmul.f32 %v3183, %v2282
        %v3342 = vmul.f32 %v3183, %v2283
        %v3343 = vmul.f32 %v3183, %v2284
        %v3344 = vmul.f32 %v3183, %v2285
        %v3345 = vmul.f32 %v3183, %v2286
        %v3346 = vmul.f32 %v3183, %v2287
        %v3347 = vmul.f32 %v3183, %v2288
        %v3348 = vmul.f32 %v3183, %v2289
        %v3349 = vmul.f32 %v3183, %v2290
        %v3350 = vmul.f32 %v3204, %v2243
        %v3351 = vmul.f32 %v3204, %v2244
        %v3352 = vmul.f32 %v3204, %v2245
        %v3353 = vmul.f32 %v3204, %v2246
        %v3354 = vmul.f32 %v3204, %v2247
        %v3355 = vmul.f32 %v3204, %v2248
        %v3356 = vmul.f32 %v3204, %v2249
        %v3357 = vmul.f32 %v3204, %v2250
        %v3358 = vmul.f32 %v3204, %v2251
        %v3359 = vmul.f32 %v3204, %v2252
        %v3360 = vmul.f32 %v3204, %v2253
        %v3361 = vmul.f32 %v3204, %v2254
        %v3362 = vmul.f32 %v3204, %v2255
        %v3363 = vmul.f32 %v3204, %v2256
        %v3364 = vmul.f32 %v3204, %v2257
        %v3365 = vmul.f32 %v3204, %v2258
        %v3366 = vmul.f32 %v3204, %v2259
        %v3367 = vmul.f32 %v3204, %v2260
        %v3368 = vmul.f32 %v3204, %v2261
        %v3369 = vmul.f32 %v3204, %v2262
        %v3370 = vadd.f32 %v3330, %v3350
        %v3371 = vadd.f32 %v3331, %v3351
        %v3372 = vadd.f32 %v3332, %v3352
        %v3373 = vadd.f32 %v3333, %v3353
        %v3374 = vadd.f32 %v3334, %v3354
        %v3375 = vadd.f32 %v3335, %v3355
        %v3376 = vadd.f32 %v3336, %v3356
        %v3377 = vadd.f32 %v3337, %v3357
        %v3378 = vadd.f32 %v3338, %v3358
        %v3379 = vadd.f32 %v3339, %v3359
        %v3380 = vadd.f32 %v3340, %v3360
        %v3381 = vadd.f32 %v3341, %v3361
        %v3382 = vadd.f32 %v3342, %v3362
        %v3383 = vadd.f32 %v3343, %v3363
        %v3384 = vadd.f32 %v3344, %v3364
        %v3385 = vadd.f32 %v3345, %v3365
        %v3386 = vadd.f32 %v3346, %v3366
        %v3387 = vadd.f32 %v3347, %v3367
        %v3388 = vadd.f32 %v3348, %v3368
        %v3389 = vadd.f32 %v3349, %v3369
        %v3410 = vrot.slane %v3370, 1
        %v3411 = vrot.slane %v3372, 1
        %v3412 = vsel %vm1884, %v3410, %v3411
        %v3413 = vrot.slane %v3371, 1
        %v3414 = vrot.slane %v3373, 1
        %v3415 = vsel %vm1884, %v3413, %v3414
        %v3416 = vrot.slane %v3374, 1
        %v3417 = vrot.slane %v3376, 1
        %v3418 = vsel %vm1884, %v3416, %v3417
        %v3419 = vrot.slane %v3375, 1
        %v3420 = vrot.slane %v3377, 1
        %v3421 = vsel %vm1884, %v3419, %v3420
        %v3422 = vrot.slane %v3378, 1
        %v3423 = vrot.slane %v3380, 1
        %v3424 = vsel %vm1884, %v3422, %v3423
        %v3425 = vrot.slane %v3379, 1
        %v3426 = vrot.slane %v3381, 1
        %v3427 = vsel %vm1884, %v3425, %v3426
        %v3428 = vrot.slane %v3382, 1
        %v3429 = vrot.slane %v3384, 1
        %v3430 = vsel %vm1884, %v3428, %v3429
        %v3431 = vrot.slane %v3383, 1
        %v3432 = vrot.slane %v3385, 1
        %v3433 = vsel %vm1884, %v3431, %v3432
        %v3434 = vrot.slane %v3386, 1
        %v3435 = vrot.slane %v3388, 1
        %v3436 = vsel %vm1884, %v3434, %v3435
        %v3437 = vrot.slane %v3387, 1
        %v3438 = vrot.slane %v3389, 1
        %v3439 = vsel %vm1884, %v3437, %v3438
        %3440 = vrot.lane.b32.xlu0 %v3412, 126
        %v3441 = vpop.permute.xlu0 %3440
        %3442 = vrot.lane.b32.xlu0 %v3415, 126
        %v3443 = vpop.permute.xlu0 %3442
        %3444 = vrot.lane.b32.xlu0 %v3418, 126
        %v3445 = vpop.permute.xlu0 %3444
        %3446 = vrot.lane.b32.xlu0 %v3421, 126
        %v3447 = vpop.permute.xlu0 %3446
        %3448 = vrot.lane.b32.xlu0 %v3424, 126
        %v3449 = vpop.permute.xlu0 %3448
        %3450 = vrot.lane.b32.xlu0 %v3427, 126
        %v3451 = vpop.permute.xlu0 %3450
        %3452 = vrot.lane.b32.xlu0 %v3430, 126
        %v3453 = vpop.permute.xlu0 %3452
        %3454 = vrot.lane.b32.xlu0 %v3433, 126
        %v3455 = vpop.permute.xlu0 %3454
        %3456 = vrot.lane.b32.xlu0 %v3436, 126
        %v3457 = vpop.permute.xlu0 %3456
        %3458 = vrot.lane.b32.xlu0 %v3439, 126
        %v3459 = vpop.permute.xlu0 %3458
        %v3460 = vsel %vm1413, %v3441, %v3443
        %v3461 = vsel %vm1413, %v3445, %v3447
        %v3462 = vsel %vm1413, %v3449, %v3451
        %v3463 = vsel %vm1413, %v3453, %v3455
        %v3464 = vsel %vm1413, %v3457, %v3459
        %v3470 = vadd.f32 %v3176, %v3460
        %v3471 = vadd.f32 %v3177, %v3461
        %v3472 = vadd.f32 %v3178, %v3462
        %v3473 = vadd.f32 %v3179, %v3463
        %v3474 = vadd.f32 %v3180, %v3464
        %s3475 = sld [smem:[#allocation3 + $0x10]]
        %s3476 = sld [smem:[#allocation7 + $0x10]]
        %v3477 = vstv %s3475
        %v3478 = vmul.f32 %v3477, %v2247
        %v3479 = vmul.f32 %v3477, %v2248
        %v3480 = vmul.f32 %v3477, %v2249
        %v3481 = vmul.f32 %v3477, %v2250
        %v3482 = vmul.f32 %v3477, %v2251
        %v3483 = vmul.f32 %v3477, %v2252
        %v3484 = vmul.f32 %v3477, %v2253
        %v3485 = vmul.f32 %v3477, %v2254
        %v3486 = vmul.f32 %v3477, %v2255
        %v3487 = vmul.f32 %v3477, %v2256
        %v3488 = vmul.f32 %v3477, %v2257
        %v3489 = vmul.f32 %v3477, %v2258
        %v3490 = vmul.f32 %v3477, %v2259
        %v3491 = vmul.f32 %v3477, %v2260
        %v3492 = vmul.f32 %v3477, %v2261
        %v3493 = vmul.f32 %v3477, %v2262
        %v3494 = vmul.f32 %v3477, %v2263
        %v3495 = vmul.f32 %v3477, %v2264
        %v3496 = vmul.f32 %v3477, %v2265
        %v3497 = vmul.f32 %v3477, %v2266
        %v3498 = vstv %s3476
        %v3499 = vmul.f32 %v3498, %v2275
        %v3500 = vmul.f32 %v3498, %v2276
        %v3501 = vmul.f32 %v3498, %v2277
        %v3502 = vmul.f32 %v3498, %v2278
        %v3503 = vmul.f32 %v3498, %v2279
        %v3504 = vmul.f32 %v3498, %v2280
        %v3505 = vmul.f32 %v3498, %v2281
        %v3506 = vmul.f32 %v3498, %v2282
        %v3507 = vmul.f32 %v3498, %v2283
        %v3508 = vmul.f32 %v3498, %v2284
        %v3509 = vmul.f32 %v3498, %v2285
        %v3510 = vmul.f32 %v3498, %v2286
        %v3511 = vmul.f32 %v3498, %v2287
        %v3512 = vmul.f32 %v3498, %v2288
        %v3513 = vmul.f32 %v3498, %v2289
        %v3514 = vmul.f32 %v3498, %v2290
        %v3515 = vmul.f32 %v3498, %v2291
        %v3516 = vmul.f32 %v3498, %v2292
        %v3517 = vmul.f32 %v3498, %v2293
        %v3518 = vmul.f32 %v3498, %v2294
        %v3519 = vsub.f32 %v3478, %v3499
        %v3520 = vsub.f32 %v3479, %v3500
        %v3521 = vsub.f32 %v3480, %v3501
        %v3522 = vsub.f32 %v3481, %v3502
        %v3523 = vsub.f32 %v3482, %v3503
        %v3524 = vsub.f32 %v3483, %v3504
        %v3525 = vsub.f32 %v3484, %v3505
        %v3526 = vsub.f32 %v3485, %v3506
        %v3527 = vsub.f32 %v3486, %v3507
        %v3528 = vsub.f32 %v3487, %v3508
        %v3529 = vsub.f32 %v3488, %v3509
        %v3530 = vsub.f32 %v3489, %v3510
        %v3531 = vsub.f32 %v3490, %v3511
        %v3532 = vsub.f32 %v3491, %v3512
        %v3533 = vsub.f32 %v3492, %v3513
        %v3534 = vsub.f32 %v3493, %v3514
        %v3535 = vsub.f32 %v3494, %v3515
        %v3536 = vsub.f32 %v3495, %v3516
        %v3537 = vsub.f32 %v3496, %v3517
        %v3538 = vsub.f32 %v3497, %v3518
        %v3559 = vrot.slane %v3519, 1
        %v3560 = vrot.slane %v3521, 1
        %v3561 = vsel %vm1884, %v3559, %v3560
        %v3562 = vrot.slane %v3520, 1
        %v3563 = vrot.slane %v3522, 1
        %v3564 = vsel %vm1884, %v3562, %v3563
        %v3565 = vrot.slane %v3523, 1
        %v3566 = vrot.slane %v3525, 1
        %v3567 = vsel %vm1884, %v3565, %v3566
        %v3568 = vrot.slane %v3524, 1
        %v3569 = vrot.slane %v3526, 1
        %v3570 = vsel %vm1884, %v3568, %v3569
        %v3571 = vrot.slane %v3527, 1
        %v3572 = vrot.slane %v3529, 1
        %v3573 = vsel %vm1884, %v3571, %v3572
        %v3574 = vrot.slane %v3528, 1
        %v3575 = vrot.slane %v3530, 1
        %v3576 = vsel %vm1884, %v3574, %v3575
        %v3577 = vrot.slane %v3531, 1
        %v3578 = vrot.slane %v3533, 1
        %v3579 = vsel %vm1884, %v3577, %v3578
        %v3580 = vrot.slane %v3532, 1
        %v3581 = vrot.slane %v3534, 1
        %v3582 = vsel %vm1884, %v3580, %v3581
        %v3583 = vrot.slane %v3535, 1
        %v3584 = vrot.slane %v3537, 1
        %v3585 = vsel %vm1884, %v3583, %v3584
        %v3586 = vrot.slane %v3536, 1
        %v3587 = vrot.slane %v3538, 1
        %v3588 = vsel %vm1884, %v3586, %v3587
        %3589 = vrot.lane.b32.xlu0 %v3561, 126
        %v3590 = vpop.permute.xlu0 %3589
        %3591 = vrot.lane.b32.xlu0 %v3564, 126
        %v3592 = vpop.permute.xlu0 %3591
        %3593 = vrot.lane.b32.xlu0 %v3567, 126
        %v3594 = vpop.permute.xlu0 %3593
        %3595 = vrot.lane.b32.xlu0 %v3570, 126
        %v3596 = vpop.permute.xlu0 %3595
        %3597 = vrot.lane.b32.xlu0 %v3573, 126
        %v3598 = vpop.permute.xlu0 %3597
        %3599 = vrot.lane.b32.xlu0 %v3576, 126
        %v3600 = vpop.permute.xlu0 %3599
        %3601 = vrot.lane.b32.xlu0 %v3579, 126
        %v3602 = vpop.permute.xlu0 %3601
        %3603 = vrot.lane.b32.xlu0 %v3582, 126
        %v3604 = vpop.permute.xlu0 %3603
        %3605 = vrot.lane.b32.xlu0 %v3585, 126
        %v3606 = vpop.permute.xlu0 %3605
        %3607 = vrot.lane.b32.xlu0 %v3588, 126
        %v3608 = vpop.permute.xlu0 %3607
        %v3609 = vsel %vm1413, %v3590, %v3592
        %v3610 = vsel %vm1413, %v3594, %v3596
        %v3611 = vsel %vm1413, %v3598, %v3600
        %v3612 = vsel %vm1413, %v3602, %v3604
        %v3613 = vsel %vm1413, %v3606, %v3608
        %v3619 = vadd.f32 %v3325, %v3609
        %v3620 = vadd.f32 %v3326, %v3610
        %v3621 = vadd.f32 %v3327, %v3611
        %v3622 = vadd.f32 %v3328, %v3612
        %v3623 = vadd.f32 %v3329, %v3613
        %v3624 = vmul.f32 %v3477, %v2275
        %v3625 = vmul.f32 %v3477, %v2276
        %v3626 = vmul.f32 %v3477, %v2277
        %v3627 = vmul.f32 %v3477, %v2278
        %v3628 = vmul.f32 %v3477, %v2279
        %v3629 = vmul.f32 %v3477, %v2280
        %v3630 = vmul.f32 %v3477, %v2281
        %v3631 = vmul.f32 %v3477, %v2282
        %v3632 = vmul.f32 %v3477, %v2283
        %v3633 = vmul.f32 %v3477, %v2284
        %v3634 = vmul.f32 %v3477, %v2285
        %v3635 = vmul.f32 %v3477, %v2286
        %v3636 = vmul.f32 %v3477, %v2287
        %v3637 = vmul.f32 %v3477, %v2288
        %v3638 = vmul.f32 %v3477, %v2289
        %v3639 = vmul.f32 %v3477, %v2290
        %v3640 = vmul.f32 %v3477, %v2291
        %v3641 = vmul.f32 %v3477, %v2292
        %v3642 = vmul.f32 %v3477, %v2293
        %v3643 = vmul.f32 %v3477, %v2294
        %v3644 = vmul.f32 %v3498, %v2247
        %v3645 = vmul.f32 %v3498, %v2248
        %v3646 = vmul.f32 %v3498, %v2249
        %v3647 = vmul.f32 %v3498, %v2250
        %v3648 = vmul.f32 %v3498, %v2251
        %v3649 = vmul.f32 %v3498, %v2252
        %v3650 = vmul.f32 %v3498, %v2253
        %v3651 = vmul.f32 %v3498, %v2254
        %v3652 = vmul.f32 %v3498, %v2255
        %v3653 = vmul.f32 %v3498, %v2256
        %v3654 = vmul.f32 %v3498, %v2257
        %v3655 = vmul.f32 %v3498, %v2258
        %v3656 = vmul.f32 %v3498, %v2259
        %v3657 = vmul.f32 %v3498, %v2260
        %v3658 = vmul.f32 %v3498, %v2261
        %v3659 = vmul.f32 %v3498, %v2262
        %v3660 = vmul.f32 %v3498, %v2263
        %v3661 = vmul.f32 %v3498, %v2264
        %v3662 = vmul.f32 %v3498, %v2265
        %v3663 = vmul.f32 %v3498, %v2266
        %v3664 = vadd.f32 %v3624, %v3644
        %v3665 = vadd.f32 %v3625, %v3645
        %v3666 = vadd.f32 %v3626, %v3646
        %v3667 = vadd.f32 %v3627, %v3647
        %v3668 = vadd.f32 %v3628, %v3648
        %v3669 = vadd.f32 %v3629, %v3649
        %v3670 = vadd.f32 %v3630, %v3650
        %v3671 = vadd.f32 %v3631, %v3651
        %v3672 = vadd.f32 %v3632, %v3652
        %v3673 = vadd.f32 %v3633, %v3653
        %v3674 = vadd.f32 %v3634, %v3654
        %v3675 = vadd.f32 %v3635, %v3655
        %v3676 = vadd.f32 %v3636, %v3656
        %v3677 = vadd.f32 %v3637, %v3657
        %v3678 = vadd.f32 %v3638, %v3658
        %v3679 = vadd.f32 %v3639, %v3659
        %v3680 = vadd.f32 %v3640, %v3660
        %v3681 = vadd.f32 %v3641, %v3661
        %v3682 = vadd.f32 %v3642, %v3662
        %v3683 = vadd.f32 %v3643, %v3663
        %v3704 = vrot.slane %v3664, 1
        %v3705 = vrot.slane %v3666, 1
        %v3706 = vsel %vm1884, %v3704, %v3705
        %v3707 = vrot.slane %v3665, 1
        %v3708 = vrot.slane %v3667, 1
        %v3709 = vsel %vm1884, %v3707, %v3708
        %v3710 = vrot.slane %v3668, 1
        %v3711 = vrot.slane %v3670, 1
        %v3712 = vsel %vm1884, %v3710, %v3711
        %v3713 = vrot.slane %v3669, 1
        %v3714 = vrot.slane %v3671, 1
        %v3715 = vsel %vm1884, %v3713, %v3714
        %v3716 = vrot.slane %v3672, 1
        %v3717 = vrot.slane %v3674, 1
        %v3718 = vsel %vm1884, %v3716, %v3717
        %v3719 = vrot.slane %v3673, 1
        %v3720 = vrot.slane %v3675, 1
        %v3721 = vsel %vm1884, %v3719, %v3720
        %v3722 = vrot.slane %v3676, 1
        %v3723 = vrot.slane %v3678, 1
        %v3724 = vsel %vm1884, %v3722, %v3723
        %v3725 = vrot.slane %v3677, 1
        %v3726 = vrot.slane %v3679, 1
        %v3727 = vsel %vm1884, %v3725, %v3726
        %v3728 = vrot.slane %v3680, 1
        %v3729 = vrot.slane %v3682, 1
        %v3730 = vsel %vm1884, %v3728, %v3729
        %v3731 = vrot.slane %v3681, 1
        %v3732 = vrot.slane %v3683, 1
        %v3733 = vsel %vm1884, %v3731, %v3732
        %3734 = vrot.lane.b32.xlu0 %v3706, 126
        %v3735 = vpop.permute.xlu0 %3734
        %3736 = vrot.lane.b32.xlu0 %v3709, 126
        %v3737 = vpop.permute.xlu0 %3736
        %3738 = vrot.lane.b32.xlu0 %v3712, 126
        %v3739 = vpop.permute.xlu0 %3738
        %3740 = vrot.lane.b32.xlu0 %v3715, 126
        %v3741 = vpop.permute.xlu0 %3740
        %3742 = vrot.lane.b32.xlu0 %v3718, 126
        %v3743 = vpop.permute.xlu0 %3742
        %3744 = vrot.lane.b32.xlu0 %v3721, 126
        %v3745 = vpop.permute.xlu0 %3744
        %3746 = vrot.lane.b32.xlu0 %v3724, 126
        %v3747 = vpop.permute.xlu0 %3746
        %3748 = vrot.lane.b32.xlu0 %v3727, 126
        %v3749 = vpop.permute.xlu0 %3748
        %3750 = vrot.lane.b32.xlu0 %v3730, 126
        %v3751 = vpop.permute.xlu0 %3750
        %3752 = vrot.lane.b32.xlu0 %v3733, 126
        %v3753 = vpop.permute.xlu0 %3752
        %v3754 = vsel %vm1413, %v3735, %v3737
        %v3755 = vsel %vm1413, %v3739, %v3741
        %v3756 = vsel %vm1413, %v3743, %v3745
        %v3757 = vsel %vm1413, %v3747, %v3749
        %v3758 = vsel %vm1413, %v3751, %v3753
        %v3764 = vadd.f32 %v3470, %v3754
        %v3765 = vadd.f32 %v3471, %v3755
        %v3766 = vadd.f32 %v3472, %v3756
        %v3767 = vadd.f32 %v3473, %v3757
        %v3768 = vadd.f32 %v3474, %v3758
        %s3769 = sld [smem:[#allocation3 + $0x11]]
        %s3770 = sld [smem:[#allocation7 + $0x11]]
        %v3771 = vstv %s3769
        %v3772 = vmul.f32 %v3771, %v2251
        %v3773 = vmul.f32 %v3771, %v2252
        %v3774 = vmul.f32 %v3771, %v2253
        %v3775 = vmul.f32 %v3771, %v2254
        %v3776 = vmul.f32 %v3771, %v2255
        %v3777 = vmul.f32 %v3771, %v2256
        %v3778 = vmul.f32 %v3771, %v2257
        %v3779 = vmul.f32 %v3771, %v2258
        %v3780 = vmul.f32 %v3771, %v2259
        %v3781 = vmul.f32 %v3771, %v2260
        %v3782 = vmul.f32 %v3771, %v2261
        %v3783 = vmul.f32 %v3771, %v2262
        %v3784 = vmul.f32 %v3771, %v2263
        %v3785 = vmul.f32 %v3771, %v2264
        %v3786 = vmul.f32 %v3771, %v2265
        %v3787 = vmul.f32 %v3771, %v2266
        %v3788 = vmul.f32 %v3771, %v2267
        %v3789 = vmul.f32 %v3771, %v2268
        %v3790 = vmul.f32 %v3771, %v2269
        %v3791 = vmul.f32 %v3771, %v2270
        %v3792 = vstv %s3770
        %v3793 = vmul.f32 %v3792, %v2279
        %v3794 = vmul.f32 %v3792, %v2280
        %v3795 = vmul.f32 %v3792, %v2281
        %v3796 = vmul.f32 %v3792, %v2282
        %v3797 = vmul.f32 %v3792, %v2283
        %v3798 = vmul.f32 %v3792, %v2284
        %v3799 = vmul.f32 %v3792, %v2285
        %v3800 = vmul.f32 %v3792, %v2286
        %v3801 = vmul.f32 %v3792, %v2287
        %v3802 = vmul.f32 %v3792, %v2288
        %v3803 = vmul.f32 %v3792, %v2289
        %v3804 = vmul.f32 %v3792, %v2290
        %v3805 = vmul.f32 %v3792, %v2291
        %v3806 = vmul.f32 %v3792, %v2292
        %v3807 = vmul.f32 %v3792, %v2293
        %v3808 = vmul.f32 %v3792, %v2294
        %v3809 = vmul.f32 %v3792, %v2295
        %v3810 = vmul.f32 %v3792, %v2296
        %v3811 = vmul.f32 %v3792, %v2297
        %v3812 = vmul.f32 %v3792, %v2298
        %v3813 = vsub.f32 %v3772, %v3793
        %v3814 = vsub.f32 %v3773, %v3794
        %v3815 = vsub.f32 %v3774, %v3795
        %v3816 = vsub.f32 %v3775, %v3796
        %v3817 = vsub.f32 %v3776, %v3797
        %v3818 = vsub.f32 %v3777, %v3798
        %v3819 = vsub.f32 %v3778, %v3799
        %v3820 = vsub.f32 %v3779, %v3800
        %v3821 = vsub.f32 %v3780, %v3801
        %v3822 = vsub.f32 %v3781, %v3802
        %v3823 = vsub.f32 %v3782, %v3803
        %v3824 = vsub.f32 %v3783, %v3804
        %v3825 = vsub.f32 %v3784, %v3805
        %v3826 = vsub.f32 %v3785, %v3806
        %v3827 = vsub.f32 %v3786, %v3807
        %v3828 = vsub.f32 %v3787, %v3808
        %v3829 = vsub.f32 %v3788, %v3809
        %v3830 = vsub.f32 %v3789, %v3810
        %v3831 = vsub.f32 %v3790, %v3811
        %v3832 = vsub.f32 %v3791, %v3812
        %v3853 = vrot.slane %v3813, 1
        %v3854 = vrot.slane %v3815, 1
        %v3855 = vsel %vm1884, %v3853, %v3854
        %v3856 = vrot.slane %v3814, 1
        %v3857 = vrot.slane %v3816, 1
        %v3858 = vsel %vm1884, %v3856, %v3857
        %v3859 = vrot.slane %v3817, 1
        %v3860 = vrot.slane %v3819, 1
        %v3861 = vsel %vm1884, %v3859, %v3860
        %v3862 = vrot.slane %v3818, 1
        %v3863 = vrot.slane %v3820, 1
        %v3864 = vsel %vm1884, %v3862, %v3863
        %v3865 = vrot.slane %v3821, 1
        %v3866 = vrot.slane %v3823, 1
        %v3867 = vsel %vm1884, %v3865, %v3866
        %v3868 = vrot.slane %v3822, 1
        %v3869 = vrot.slane %v3824, 1
        %v3870 = vsel %vm1884, %v3868, %v3869
        %v3871 = vrot.slane %v3825, 1
        %v3872 = vrot.slane %v3827, 1
        %v3873 = vsel %vm1884, %v3871, %v3872
        %v3874 = vrot.slane %v3826, 1
        %v3875 = vrot.slane %v3828, 1
        %v3876 = vsel %vm1884, %v3874, %v3875
        %v3877 = vrot.slane %v3829, 1
        %v3878 = vrot.slane %v3831, 1
        %v3879 = vsel %vm1884, %v3877, %v3878
        %v3880 = vrot.slane %v3830, 1
        %v3881 = vrot.slane %v3832, 1
        %v3882 = vsel %vm1884, %v3880, %v3881
        %3883 = vrot.lane.b32.xlu0 %v3855, 126
        %v3884 = vpop.permute.xlu0 %3883
        %3885 = vrot.lane.b32.xlu0 %v3858, 126
        %v3886 = vpop.permute.xlu0 %3885
        %3887 = vrot.lane.b32.xlu0 %v3861, 126
        %v3888 = vpop.permute.xlu0 %3887
        %3889 = vrot.lane.b32.xlu0 %v3864, 126
        %v3890 = vpop.permute.xlu0 %3889
        %3891 = vrot.lane.b32.xlu0 %v3867, 126
        %v3892 = vpop.permute.xlu0 %3891
        %3893 = vrot.lane.b32.xlu0 %v3870, 126
        %v3894 = vpop.permute.xlu0 %3893
        %3895 = vrot.lane.b32.xlu0 %v3873, 126
        %v3896 = vpop.permute.xlu0 %3895
        %3897 = vrot.lane.b32.xlu0 %v3876, 126
        %v3898 = vpop.permute.xlu0 %3897
        %3899 = vrot.lane.b32.xlu0 %v3879, 126
        %v3900 = vpop.permute.xlu0 %3899
        %3901 = vrot.lane.b32.xlu0 %v3882, 126
        %v3902 = vpop.permute.xlu0 %3901
        %v3903 = vsel %vm1413, %v3884, %v3886
        %v3904 = vsel %vm1413, %v3888, %v3890
        %v3905 = vsel %vm1413, %v3892, %v3894
        %v3906 = vsel %vm1413, %v3896, %v3898
        %v3907 = vsel %vm1413, %v3900, %v3902
        %v3913 = vadd.f32 %v3619, %v3903
        %v3914 = vadd.f32 %v3620, %v3904
        %v3915 = vadd.f32 %v3621, %v3905
        %v3916 = vadd.f32 %v3622, %v3906
        %v3917 = vadd.f32 %v3623, %v3907
        %v3918 = vmul.f32 %v3771, %v2279
        %v3919 = vmul.f32 %v3771, %v2280
        %v3920 = vmul.f32 %v3771, %v2281
        %v3921 = vmul.f32 %v3771, %v2282
        %v3922 = vmul.f32 %v3771, %v2283
        %v3923 = vmul.f32 %v3771, %v2284
        %v3924 = vmul.f32 %v3771, %v2285
        %v3925 = vmul.f32 %v3771, %v2286
        %v3926 = vmul.f32 %v3771, %v2287
        %v3927 = vmul.f32 %v3771, %v2288
        %v3928 = vmul.f32 %v3771, %v2289
        %v3929 = vmul.f32 %v3771, %v2290
        %v3930 = vmul.f32 %v3771, %v2291
        %v3931 = vmul.f32 %v3771, %v2292
        %v3932 = vmul.f32 %v3771, %v2293
        %v3933 = vmul.f32 %v3771, %v2294
        %v3934 = vmul.f32 %v3771, %v2295
        %v3935 = vmul.f32 %v3771, %v2296
        %v3936 = vmul.f32 %v3771, %v2297
        %v3937 = vmul.f32 %v3771, %v2298
        %v3938 = vmul.f32 %v3792, %v2251
        %v3939 = vmul.f32 %v3792, %v2252
        %v3940 = vmul.f32 %v3792, %v2253
        %v3941 = vmul.f32 %v3792, %v2254
        %v3942 = vmul.f32 %v3792, %v2255
        %v3943 = vmul.f32 %v3792, %v2256
        %v3944 = vmul.f32 %v3792, %v2257
        %v3945 = vmul.f32 %v3792, %v2258
        %v3946 = vmul.f32 %v3792, %v2259
        %v3947 = vmul.f32 %v3792, %v2260
        %v3948 = vmul.f32 %v3792, %v2261
        %v3949 = vmul.f32 %v3792, %v2262
        %v3950 = vmul.f32 %v3792, %v2263
        %v3951 = vmul.f32 %v3792, %v2264
        %v3952 = vmul.f32 %v3792, %v2265
        %v3953 = vmul.f32 %v3792, %v2266
        %v3954 = vmul.f32 %v3792, %v2267
        %v3955 = vmul.f32 %v3792, %v2268
        %v3956 = vmul.f32 %v3792, %v2269
        %v3957 = vmul.f32 %v3792, %v2270
        %v3958 = vadd.f32 %v3918, %v3938
        %v3959 = vadd.f32 %v3919, %v3939
        %v3960 = vadd.f32 %v3920, %v3940
        %v3961 = vadd.f32 %v3921, %v3941
        %v3962 = vadd.f32 %v3922, %v3942
        %v3963 = vadd.f32 %v3923, %v3943
        %v3964 = vadd.f32 %v3924, %v3944
        %v3965 = vadd.f32 %v3925, %v3945
        %v3966 = vadd.f32 %v3926, %v3946
        %v3967 = vadd.f32 %v3927, %v3947
        %v3968 = vadd.f32 %v3928, %v3948
        %v3969 = vadd.f32 %v3929, %v3949
        %v3970 = vadd.f32 %v3930, %v3950
        %v3971 = vadd.f32 %v3931, %v3951
        %v3972 = vadd.f32 %v3932, %v3952
        %v3973 = vadd.f32 %v3933, %v3953
        %v3974 = vadd.f32 %v3934, %v3954
        %v3975 = vadd.f32 %v3935, %v3955
        %v3976 = vadd.f32 %v3936, %v3956
        %v3977 = vadd.f32 %v3937, %v3957
        %v3998 = vrot.slane %v3958, 1
        %v3999 = vrot.slane %v3960, 1
        %v4000 = vsel %vm1884, %v3998, %v3999
        %v4001 = vrot.slane %v3959, 1
        %v4002 = vrot.slane %v3961, 1
        %v4003 = vsel %vm1884, %v4001, %v4002
        %v4004 = vrot.slane %v3962, 1
        %v4005 = vrot.slane %v3964, 1
        %v4006 = vsel %vm1884, %v4004, %v4005
        %v4007 = vrot.slane %v3963, 1
        %v4008 = vrot.slane %v3965, 1
        %v4009 = vsel %vm1884, %v4007, %v4008
        %v4010 = vrot.slane %v3966, 1
        %v4011 = vrot.slane %v3968, 1
        %v4012 = vsel %vm1884, %v4010, %v4011
        %v4013 = vrot.slane %v3967, 1
        %v4014 = vrot.slane %v3969, 1
        %v4015 = vsel %vm1884, %v4013, %v4014
        %v4016 = vrot.slane %v3970, 1
        %v4017 = vrot.slane %v3972, 1
        %v4018 = vsel %vm1884, %v4016, %v4017
        %v4019 = vrot.slane %v3971, 1
        %v4020 = vrot.slane %v3973, 1
        %v4021 = vsel %vm1884, %v4019, %v4020
        %v4022 = vrot.slane %v3974, 1
        %v4023 = vrot.slane %v3976, 1
        %v4024 = vsel %vm1884, %v4022, %v4023
        %v4025 = vrot.slane %v3975, 1
        %v4026 = vrot.slane %v3977, 1
        %v4027 = vsel %vm1884, %v4025, %v4026
        %4028 = vrot.lane.b32.xlu0 %v4000, 126
        %v4029 = vpop.permute.xlu0 %4028
        %4030 = vrot.lane.b32.xlu0 %v4003, 126
        %v4031 = vpop.permute.xlu0 %4030
        %4032 = vrot.lane.b32.xlu0 %v4006, 126
        %v4033 = vpop.permute.xlu0 %4032
        %4034 = vrot.lane.b32.xlu0 %v4009, 126
        %v4035 = vpop.permute.xlu0 %4034
        %4036 = vrot.lane.b32.xlu0 %v4012, 126
        %v4037 = vpop.permute.xlu0 %4036
        %4038 = vrot.lane.b32.xlu0 %v4015, 126
        %v4039 = vpop.permute.xlu0 %4038
        %4040 = vrot.lane.b32.xlu0 %v4018, 126
        %v4041 = vpop.permute.xlu0 %4040
        %4042 = vrot.lane.b32.xlu0 %v4021, 126
        %v4043 = vpop.permute.xlu0 %4042
        %4044 = vrot.lane.b32.xlu0 %v4024, 126
        %v4045 = vpop.permute.xlu0 %4044
        %4046 = vrot.lane.b32.xlu0 %v4027, 126
        %v4047 = vpop.permute.xlu0 %4046
        %v4048 = vsel %vm1413, %v4029, %v4031
        %v4049 = vsel %vm1413, %v4033, %v4035
        %v4050 = vsel %vm1413, %v4037, %v4039
        %v4051 = vsel %vm1413, %v4041, %v4043
        %v4052 = vsel %vm1413, %v4045, %v4047
        %v4058 = vadd.f32 %v3764, %v4048
        %v4059 = vadd.f32 %v3765, %v4049
        %v4060 = vadd.f32 %v3766, %v4050
        %v4061 = vadd.f32 %v3767, %v4051
        %v4062 = vadd.f32 %v3768, %v4052
        %v4063 = vld [vmem:[#allocation2] sm:$0xfc]
        %v4064 = vld [vmem:[#allocation2 + $0x10] sm:$0x3]
        %v4065 = vld [vmem:[#allocation2 + $0x20] sm:$0xfc]
        %v4066 = vld [vmem:[#allocation2 + $0x30] sm:$0x3]
        %v4067 = vld [vmem:[#allocation2 + $0x40] sm:$0xfc]
        %v4068 = vld [vmem:[#allocation2 + $0x50] sm:$0x3]
        %v4069 = vld [vmem:[#allocation2 + $0x60] sm:$0xfc]
        %v4070 = vld [vmem:[#allocation2 + $0x70] sm:$0x3]
        %v4071 = vld [vmem:[#allocation2 + $0x80] sm:$0xfc]
        %v4072 = vld [vmem:[#allocation2 + $0x90] sm:$0x3]
        %v4073 = vld [vmem:[#allocation2 + $0xa0] sm:$0xfc]
        %v4074 = vld [vmem:[#allocation2 + $0xb0] sm:$0x3]
        %v4075 = vld [vmem:[#allocation2 + $0xc0] sm:$0xfc]
        %v4076 = vld [vmem:[#allocation2 + $0xd0] sm:$0x3]
        %v4077 = vld [vmem:[%s718] sm:$0xfc]
        %v4078 = vld [vmem:[%s718 + $0x10] sm:$0x3]
        %v4079 = vld [vmem:[%s718 + $0x20] sm:$0xfc]
        %v4080 = vld [vmem:[%s718 + $0x30] sm:$0x3]
        %v4081 = vld [vmem:[%s718 + $0x40] sm:$0xfc]
        %v4082 = vld [vmem:[%s718 + $0x50] sm:$0x3]
        %v4083 = vld [vmem:[%s718 + $0x60] sm:$0xfc]
        %v4084 = vld [vmem:[%s718 + $0x70] sm:$0x3]
        %v4085 = vld [vmem:[%s718 + $0x80] sm:$0xfc]
        %v4086 = vld [vmem:[%s718 + $0x90] sm:$0x3]
        %v4087 = vld [vmem:[%s718 + $0xa0] sm:$0xfc]
        %v4088 = vld [vmem:[%s718 + $0xb0] sm:$0x3]
        %v4089 = vld [vmem:[%s718 + $0xc0] sm:$0xfc]
        %v4090 = vld [vmem:[%s718 + $0xd0] sm:$0x3]
        %s4091 = sld [smem:[#allocation3 + $0x12]]
        %s4092 = sld [smem:[#allocation7 + $0x12]]
        %v4093 = vstv %s4091
        %v4094 = vmul.f32 %v4093, %v4063
        %v4095 = vmul.f32 %v4093, %v4064
        %v4096 = vmul.f32 %v4093, %v4065
        %v4097 = vmul.f32 %v4093, %v4066
        %v4098 = vmul.f32 %v4093, %v4067
        %v4099 = vmul.f32 %v4093, %v4068
        %v4100 = vmul.f32 %v4093, %v4069
        %v4101 = vmul.f32 %v4093, %v4070
        %v4102 = vmul.f32 %v4093, %v4071
        %v4103 = vmul.f32 %v4093, %v4072
        %v4104 = vstv %s4092
        %v4105 = vmul.f32 %v4104, %v4077
        %v4106 = vmul.f32 %v4104, %v4078
        %v4107 = vmul.f32 %v4104, %v4079
        %v4108 = vmul.f32 %v4104, %v4080
        %v4109 = vmul.f32 %v4104, %v4081
        %v4110 = vmul.f32 %v4104, %v4082
        %v4111 = vmul.f32 %v4104, %v4083
        %v4112 = vmul.f32 %v4104, %v4084
        %v4113 = vmul.f32 %v4104, %v4085
        %v4114 = vmul.f32 %v4104, %v4086
        %v4115 = vsub.f32 %v4094, %v4105
        %v4116 = vsub.f32 %v4095, %v4106
        %v4117 = vsub.f32 %v4096, %v4107
        %v4118 = vsub.f32 %v4097, %v4108
        %v4119 = vsub.f32 %v4098, %v4109
        %v4120 = vsub.f32 %v4099, %v4110
        %v4121 = vsub.f32 %v4100, %v4111
        %v4122 = vsub.f32 %v4101, %v4112
        %v4123 = vsub.f32 %v4102, %v4113
        %v4124 = vsub.f32 %v4103, %v4114
        %vm4135 = vcmask 1045504
        %v4136 = vrot.slane %v4115, 2
        %v4137 = vrot.slane %v4116, 2
        %v4138 = vsel %vm4135, %v4136, %v4137
        %v4139 = vrot.slane %v4117, 2
        %v4140 = vrot.slane %v4118, 2
        %v4141 = vsel %vm4135, %v4139, %v4140
        %v4142 = vrot.slane %v4119, 2
        %v4143 = vrot.slane %v4120, 2
        %v4144 = vsel %vm4135, %v4142, %v4143
        %v4145 = vrot.slane %v4121, 2
        %v4146 = vrot.slane %v4122, 2
        %v4147 = vsel %vm4135, %v4145, %v4146
        %v4148 = vrot.slane %v4123, 2
        %v4149 = vrot.slane %v4124, 2
        %v4150 = vsel %vm4135, %v4148, %v4149
        %v4156 = vadd.f32 %v3913, %v4138
        %v4157 = vadd.f32 %v3914, %v4141
        %v4158 = vadd.f32 %v3915, %v4144
        %v4159 = vadd.f32 %v3916, %v4147
        %v4160 = vadd.f32 %v3917, %v4150
        %v4161 = vmul.f32 %v4093, %v4077
        %v4162 = vmul.f32 %v4093, %v4078
        %v4163 = vmul.f32 %v4093, %v4079
        %v4164 = vmul.f32 %v4093, %v4080
        %v4165 = vmul.f32 %v4093, %v4081
        %v4166 = vmul.f32 %v4093, %v4082
        %v4167 = vmul.f32 %v4093, %v4083
        %v4168 = vmul.f32 %v4093, %v4084
        %v4169 = vmul.f32 %v4093, %v4085
        %v4170 = vmul.f32 %v4093, %v4086
        %v4171 = vmul.f32 %v4104, %v4063
        %v4172 = vmul.f32 %v4104, %v4064
        %v4173 = vmul.f32 %v4104, %v4065
        %v4174 = vmul.f32 %v4104, %v4066
        %v4175 = vmul.f32 %v4104, %v4067
        %v4176 = vmul.f32 %v4104, %v4068
        %v4177 = vmul.f32 %v4104, %v4069
        %v4178 = vmul.f32 %v4104, %v4070
        %v4179 = vmul.f32 %v4104, %v4071
        %v4180 = vmul.f32 %v4104, %v4072
        %v4181 = vadd.f32 %v4161, %v4171
        %v4182 = vadd.f32 %v4162, %v4172
        %v4183 = vadd.f32 %v4163, %v4173
        %v4184 = vadd.f32 %v4164, %v4174
        %v4185 = vadd.f32 %v4165, %v4175
        %v4186 = vadd.f32 %v4166, %v4176
        %v4187 = vadd.f32 %v4167, %v4177
        %v4188 = vadd.f32 %v4168, %v4178
        %v4189 = vadd.f32 %v4169, %v4179
        %v4190 = vadd.f32 %v4170, %v4180
        %v4201 = vrot.slane %v4181, 2
        %v4202 = vrot.slane %v4182, 2
        %v4203 = vsel %vm4135, %v4201, %v4202
        %v4204 = vrot.slane %v4183, 2
        %v4205 = vrot.slane %v4184, 2
        %v4206 = vsel %vm4135, %v4204, %v4205
        %v4207 = vrot.slane %v4185, 2
        %v4208 = vrot.slane %v4186, 2
        %v4209 = vsel %vm4135, %v4207, %v4208
        %v4210 = vrot.slane %v4187, 2
        %v4211 = vrot.slane %v4188, 2
        %v4212 = vsel %vm4135, %v4210, %v4211
        %v4213 = vrot.slane %v4189, 2
        %v4214 = vrot.slane %v4190, 2
        %v4215 = vsel %vm4135, %v4213, %v4214
        %v4221 = vadd.f32 %v4058, %v4203
        %v4222 = vadd.f32 %v4059, %v4206
        %v4223 = vadd.f32 %v4060, %v4209
        %v4224 = vadd.f32 %v4061, %v4212
        %v4225 = vadd.f32 %v4062, %v4215
        %s4226 = sld [smem:[#allocation3 + $0x13]]
        %s4227 = sld [smem:[#allocation7 + $0x13]]
        %v4228 = vstv %s4226
        %v4229 = vmul.f32 %v4228, %v4065
        %v4230 = vmul.f32 %v4228, %v4066
        %v4231 = vmul.f32 %v4228, %v4067
        %v4232 = vmul.f32 %v4228, %v4068
        %v4233 = vmul.f32 %v4228, %v4069
        %v4234 = vmul.f32 %v4228, %v4070
        %v4235 = vmul.f32 %v4228, %v4071
        %v4236 = vmul.f32 %v4228, %v4072
        %v4237 = vmul.f32 %v4228, %v4073
        %v4238 = vmul.f32 %v4228, %v4074
        %v4239 = vstv %s4227
        %v4240 = vmul.f32 %v4239, %v4079
        %v4241 = vmul.f32 %v4239, %v4080
        %v4242 = vmul.f32 %v4239, %v4081
        %v4243 = vmul.f32 %v4239, %v4082
        %v4244 = vmul.f32 %v4239, %v4083
        %v4245 = vmul.f32 %v4239, %v4084
        %v4246 = vmul.f32 %v4239, %v4085
        %v4247 = vmul.f32 %v4239, %v4086
        %v4248 = vmul.f32 %v4239, %v4087
        %v4249 = vmul.f32 %v4239, %v4088
        %v4250 = vsub.f32 %v4229, %v4240
        %v4251 = vsub.f32 %v4230, %v4241
        %v4252 = vsub.f32 %v4231, %v4242
        %v4253 = vsub.f32 %v4232, %v4243
        %v4254 = vsub.f32 %v4233, %v4244
        %v4255 = vsub.f32 %v4234, %v4245
        %v4256 = vsub.f32 %v4235, %v4246
        %v4257 = vsub.f32 %v4236, %v4247
        %v4258 = vsub.f32 %v4237, %v4248
        %v4259 = vsub.f32 %v4238, %v4249
        %v4270 = vrot.slane %v4250, 2
        %v4271 = vrot.slane %v4251, 2
        %v4272 = vsel %vm4135, %v4270, %v4271
        %v4273 = vrot.slane %v4252, 2
        %v4274 = vrot.slane %v4253, 2
        %v4275 = vsel %vm4135, %v4273, %v4274
        %v4276 = vrot.slane %v4254, 2
        %v4277 = vrot.slane %v4255, 2
        %v4278 = vsel %vm4135, %v4276, %v4277
        %v4279 = vrot.slane %v4256, 2
        %v4280 = vrot.slane %v4257, 2
        %v4281 = vsel %vm4135, %v4279, %v4280
        %v4282 = vrot.slane %v4258, 2
        %v4283 = vrot.slane %v4259, 2
        %v4284 = vsel %vm4135, %v4282, %v4283
        %v4290 = vadd.f32 %v4156, %v4272
        %v4291 = vadd.f32 %v4157, %v4275
        %v4292 = vadd.f32 %v4158, %v4278
        %v4293 = vadd.f32 %v4159, %v4281
        %v4294 = vadd.f32 %v4160, %v4284
        %v4295 = vmul.f32 %v4228, %v4079
        %v4296 = vmul.f32 %v4228, %v4080
        %v4297 = vmul.f32 %v4228, %v4081
        %v4298 = vmul.f32 %v4228, %v4082
        %v4299 = vmul.f32 %v4228, %v4083
        %v4300 = vmul.f32 %v4228, %v4084
        %v4301 = vmul.f32 %v4228, %v4085
        %v4302 = vmul.f32 %v4228, %v4086
        %v4303 = vmul.f32 %v4228, %v4087
        %v4304 = vmul.f32 %v4228, %v4088
        %v4305 = vmul.f32 %v4239, %v4065
        %v4306 = vmul.f32 %v4239, %v4066
        %v4307 = vmul.f32 %v4239, %v4067
        %v4308 = vmul.f32 %v4239, %v4068
        %v4309 = vmul.f32 %v4239, %v4069
        %v4310 = vmul.f32 %v4239, %v4070
        %v4311 = vmul.f32 %v4239, %v4071
        %v4312 = vmul.f32 %v4239, %v4072
        %v4313 = vmul.f32 %v4239, %v4073
        %v4314 = vmul.f32 %v4239, %v4074
        %v4315 = vadd.f32 %v4295, %v4305
        %v4316 = vadd.f32 %v4296, %v4306
        %v4317 = vadd.f32 %v4297, %v4307
        %v4318 = vadd.f32 %v4298, %v4308
        %v4319 = vadd.f32 %v4299, %v4309
        %v4320 = vadd.f32 %v4300, %v4310
        %v4321 = vadd.f32 %v4301, %v4311
        %v4322 = vadd.f32 %v4302, %v4312
        %v4323 = vadd.f32 %v4303, %v4313
        %v4324 = vadd.f32 %v4304, %v4314
        %v4335 = vrot.slane %v4315, 2
        %v4336 = vrot.slane %v4316, 2
        %v4337 = vsel %vm4135, %v4335, %v4336
        %v4338 = vrot.slane %v4317, 2
        %v4339 = vrot.slane %v4318, 2
        %v4340 = vsel %vm4135, %v4338, %v4339
        %v4341 = vrot.slane %v4319, 2
        %v4342 = vrot.slane %v4320, 2
        %v4343 = vsel %vm4135, %v4341, %v4342
        %v4344 = vrot.slane %v4321, 2
        %v4345 = vrot.slane %v4322, 2
        %v4346 = vsel %vm4135, %v4344, %v4345
        %v4347 = vrot.slane %v4323, 2
        %v4348 = vrot.slane %v4324, 2
        %v4349 = vsel %vm4135, %v4347, %v4348
        %v4355 = vadd.f32 %v4221, %v4337
        %v4356 = vadd.f32 %v4222, %v4340
        %v4357 = vadd.f32 %v4223, %v4343
        %v4358 = vadd.f32 %v4224, %v4346
        %v4359 = vadd.f32 %v4225, %v4349
        %s4360 = sld [smem:[#allocation3 + $0x14]]
        %s4361 = sld [smem:[#allocation7 + $0x14]]
        %v4362 = vstv %s4360
        %v4363 = vmul.f32 %v4362, %v4067
        %v4364 = vmul.f32 %v4362, %v4068
        %v4365 = vmul.f32 %v4362, %v4069
        %v4366 = vmul.f32 %v4362, %v4070
        %v4367 = vmul.f32 %v4362, %v4071
        %v4368 = vmul.f32 %v4362, %v4072
        %v4369 = vmul.f32 %v4362, %v4073
        %v4370 = vmul.f32 %v4362, %v4074
        %v4371 = vmul.f32 %v4362, %v4075
        %v4372 = vmul.f32 %v4362, %v4076
        %v4373 = vstv %s4361
        %v4374 = vmul.f32 %v4373, %v4081
        %v4375 = vmul.f32 %v4373, %v4082
        %v4376 = vmul.f32 %v4373, %v4083
        %v4377 = vmul.f32 %v4373, %v4084
        %v4378 = vmul.f32 %v4373, %v4085
        %v4379 = vmul.f32 %v4373, %v4086
        %v4380 = vmul.f32 %v4373, %v4087
        %v4381 = vmul.f32 %v4373, %v4088
        %v4382 = vmul.f32 %v4373, %v4089
        %v4383 = vmul.f32 %v4373, %v4090
        %v4384 = vsub.f32 %v4363, %v4374
        %v4385 = vsub.f32 %v4364, %v4375
        %v4386 = vsub.f32 %v4365, %v4376
        %v4387 = vsub.f32 %v4366, %v4377
        %v4388 = vsub.f32 %v4367, %v4378
        %v4389 = vsub.f32 %v4368, %v4379
        %v4390 = vsub.f32 %v4369, %v4380
        %v4391 = vsub.f32 %v4370, %v4381
        %v4392 = vsub.f32 %v4371, %v4382
        %v4393 = vsub.f32 %v4372, %v4383
        %v4404 = vrot.slane %v4384, 2
        %v4405 = vrot.slane %v4385, 2
        %v4406 = vsel %vm4135, %v4404, %v4405
        %v4407 = vrot.slane %v4386, 2
        %v4408 = vrot.slane %v4387, 2
        %v4409 = vsel %vm4135, %v4407, %v4408
        %v4410 = vrot.slane %v4388, 2
        %v4411 = vrot.slane %v4389, 2
        %v4412 = vsel %vm4135, %v4410, %v4411
        %v4413 = vrot.slane %v4390, 2
        %v4414 = vrot.slane %v4391, 2
        %v4415 = vsel %vm4135, %v4413, %v4414
        %v4416 = vrot.slane %v4392, 2
        %v4417 = vrot.slane %v4393, 2
        %v4418 = vsel %vm4135, %v4416, %v4417
        %v4424 = vadd.f32 %v4290, %v4406
        %v4425 = vadd.f32 %v4291, %v4409
        %v4426 = vadd.f32 %v4292, %v4412
        %v4427 = vadd.f32 %v4293, %v4415
        %v4428 = vadd.f32 %v4294, %v4418
        %v4429 = vmul.f32 %v4362, %v4081
        %v4430 = vmul.f32 %v4362, %v4082
        %v4431 = vmul.f32 %v4362, %v4083
        %v4432 = vmul.f32 %v4362, %v4084
        %v4433 = vmul.f32 %v4362, %v4085
        %v4434 = vmul.f32 %v4362, %v4086
        %v4435 = vmul.f32 %v4362, %v4087
        %v4436 = vmul.f32 %v4362, %v4088
        %v4437 = vmul.f32 %v4362, %v4089
        %v4438 = vmul.f32 %v4362, %v4090
        %v4439 = vmul.f32 %v4373, %v4067
        %v4440 = vmul.f32 %v4373, %v4068
        %v4441 = vmul.f32 %v4373, %v4069
        %v4442 = vmul.f32 %v4373, %v4070
        %v4443 = vmul.f32 %v4373, %v4071
        %v4444 = vmul.f32 %v4373, %v4072
        %v4445 = vmul.f32 %v4373, %v4073
        %v4446 = vmul.f32 %v4373, %v4074
        %v4447 = vmul.f32 %v4373, %v4075
        %v4448 = vmul.f32 %v4373, %v4076
        %v4449 = vadd.f32 %v4429, %v4439
        %v4450 = vadd.f32 %v4430, %v4440
        %v4451 = vadd.f32 %v4431, %v4441
        %v4452 = vadd.f32 %v4432, %v4442
        %v4453 = vadd.f32 %v4433, %v4443
        %v4454 = vadd.f32 %v4434, %v4444
        %v4455 = vadd.f32 %v4435, %v4445
        %v4456 = vadd.f32 %v4436, %v4446
        %v4457 = vadd.f32 %v4437, %v4447
        %v4458 = vadd.f32 %v4438, %v4448
        %v4469 = vrot.slane %v4449, 2
        %v4470 = vrot.slane %v4450, 2
        %v4471 = vsel %vm4135, %v4469, %v4470
        %v4472 = vrot.slane %v4451, 2
        %v4473 = vrot.slane %v4452, 2
        %v4474 = vsel %vm4135, %v4472, %v4473
        %v4475 = vrot.slane %v4453, 2
        %v4476 = vrot.slane %v4454, 2
        %v4477 = vsel %vm4135, %v4475, %v4476
        %v4478 = vrot.slane %v4455, 2
        %v4479 = vrot.slane %v4456, 2
        %v4480 = vsel %vm4135, %v4478, %v4479
        %v4481 = vrot.slane %v4457, 2
        %v4482 = vrot.slane %v4458, 2
        %v4483 = vsel %vm4135, %v4481, %v4482
        %v4489 = vadd.f32 %v4355, %v4471
        %v4490 = vadd.f32 %v4356, %v4474
        %v4491 = vadd.f32 %v4357, %v4477
        %v4492 = vadd.f32 %v4358, %v4480
        %v4493 = vadd.f32 %v4359, %v4483
        %v4494 = vld [vmem:[#allocation2] sm:$0xfc]
        %v4495 = vld [vmem:[#allocation2 + $0x8] sm:$0xfc]
        %v4496 = vld [vmem:[#allocation2 + $0x10] sm:$0x3]
        %v4497 = vld [vmem:[#allocation2 + $0x18] sm:$0x3]
        %v4498 = vld [vmem:[#allocation2 + $0x20] sm:$0xfc]
        %v4499 = vld [vmem:[#allocation2 + $0x28] sm:$0xfc]
        %v4500 = vld [vmem:[#allocation2 + $0x30] sm:$0x3]
        %v4501 = vld [vmem:[#allocation2 + $0x38] sm:$0x3]
        %v4502 = vld [vmem:[#allocation2 + $0x40] sm:$0xfc]
        %v4503 = vld [vmem:[#allocation2 + $0x48] sm:$0xfc]
        %v4504 = vld [vmem:[#allocation2 + $0x50] sm:$0x3]
        %v4505 = vld [vmem:[#allocation2 + $0x58] sm:$0x3]
        %v4506 = vld [vmem:[#allocation2 + $0x60] sm:$0xfc]
        %v4507 = vld [vmem:[#allocation2 + $0x68] sm:$0xfc]
        %v4508 = vld [vmem:[#allocation2 + $0x70] sm:$0x3]
        %v4509 = vld [vmem:[#allocation2 + $0x78] sm:$0x3]
        %v4510 = vld [vmem:[#allocation2 + $0x80] sm:$0xfc]
        %v4511 = vld [vmem:[#allocation2 + $0x88] sm:$0xfc]
        %v4512 = vld [vmem:[#allocation2 + $0x90] sm:$0x3]
        %v4513 = vld [vmem:[#allocation2 + $0x98] sm:$0x3]
        %v4514 = vld [vmem:[#allocation2 + $0xa0] sm:$0xfc]
        %v4515 = vld [vmem:[#allocation2 + $0xa8] sm:$0xfc]
        %v4516 = vld [vmem:[#allocation2 + $0xb0] sm:$0x3]
        %v4517 = vld [vmem:[#allocation2 + $0xb8] sm:$0x3]
        %v4518 = vld [vmem:[#allocation2 + $0xc0] sm:$0xfc]
        %v4519 = vld [vmem:[#allocation2 + $0xc8] sm:$0xfc]
        %v4520 = vld [vmem:[#allocation2 + $0xd0] sm:$0x3]
        %v4521 = vld [vmem:[#allocation2 + $0xd8] sm:$0x3]
        %v4522 = vld [vmem:[%s718] sm:$0xfc]
        %v4523 = vld [vmem:[%s718 + $0x8] sm:$0xfc]
        %v4524 = vld [vmem:[%s718 + $0x10] sm:$0x3]
        %v4525 = vld [vmem:[%s718 + $0x18] sm:$0x3]
        %v4526 = vld [vmem:[%s718 + $0x20] sm:$0xfc]
        %v4527 = vld [vmem:[%s718 + $0x28] sm:$0xfc]
        %v4528 = vld [vmem:[%s718 + $0x30] sm:$0x3]
        %v4529 = vld [vmem:[%s718 + $0x38] sm:$0x3]
        %v4530 = vld [vmem:[%s718 + $0x40] sm:$0xfc]
        %v4531 = vld [vmem:[%s718 + $0x48] sm:$0xfc]
        %v4532 = vld [vmem:[%s718 + $0x50] sm:$0x3]
        %v4533 = vld [vmem:[%s718 + $0x58] sm:$0x3]
        %v4534 = vld [vmem:[%s718 + $0x60] sm:$0xfc]
        %v4535 = vld [vmem:[%s718 + $0x68] sm:$0xfc]
        %v4536 = vld [vmem:[%s718 + $0x70] sm:$0x3]
        %v4537 = vld [vmem:[%s718 + $0x78] sm:$0x3]
        %v4538 = vld [vmem:[%s718 + $0x80] sm:$0xfc]
        %v4539 = vld [vmem:[%s718 + $0x88] sm:$0xfc]
        %v4540 = vld [vmem:[%s718 + $0x90] sm:$0x3]
        %v4541 = vld [vmem:[%s718 + $0x98] sm:$0x3]
        %v4542 = vld [vmem:[%s718 + $0xa0] sm:$0xfc]
        %v4543 = vld [vmem:[%s718 + $0xa8] sm:$0xfc]
        %v4544 = vld [vmem:[%s718 + $0xb0] sm:$0x3]
        %v4545 = vld [vmem:[%s718 + $0xb8] sm:$0x3]
        %v4546 = vld [vmem:[%s718 + $0xc0] sm:$0xfc]
        %v4547 = vld [vmem:[%s718 + $0xc8] sm:$0xfc]
        %v4548 = vld [vmem:[%s718 + $0xd0] sm:$0x3]
        %v4549 = vld [vmem:[%s718 + $0xd8] sm:$0x3]
        %s4550 = sld [smem:[#allocation3 + $0x15]]
        %s4551 = sld [smem:[#allocation7 + $0x15]]
        %v4552 = vstv %s4550
        %v4553 = vmul.f32 %v4552, %v4494
        %v4554 = vmul.f32 %v4552, %v4495
        %v4555 = vmul.f32 %v4552, %v4496
        %v4556 = vmul.f32 %v4552, %v4497
        %v4557 = vmul.f32 %v4552, %v4498
        %v4558 = vmul.f32 %v4552, %v4499
        %v4559 = vmul.f32 %v4552, %v4500
        %v4560 = vmul.f32 %v4552, %v4501
        %v4561 = vmul.f32 %v4552, %v4502
        %v4562 = vmul.f32 %v4552, %v4503
        %v4563 = vmul.f32 %v4552, %v4504
        %v4564 = vmul.f32 %v4552, %v4505
        %v4565 = vmul.f32 %v4552, %v4506
        %v4566 = vmul.f32 %v4552, %v4507
        %v4567 = vmul.f32 %v4552, %v4508
        %v4568 = vmul.f32 %v4552, %v4509
        %v4569 = vmul.f32 %v4552, %v4510
        %v4570 = vmul.f32 %v4552, %v4511
        %v4571 = vmul.f32 %v4552, %v4512
        %v4572 = vmul.f32 %v4552, %v4513
        %v4573 = vstv %s4551
        %v4574 = vmul.f32 %v4573, %v4522
        %v4575 = vmul.f32 %v4573, %v4523
        %v4576 = vmul.f32 %v4573, %v4524
        %v4577 = vmul.f32 %v4573, %v4525
        %v4578 = vmul.f32 %v4573, %v4526
        %v4579 = vmul.f32 %v4573, %v4527
        %v4580 = vmul.f32 %v4573, %v4528
        %v4581 = vmul.f32 %v4573, %v4529
        %v4582 = vmul.f32 %v4573, %v4530
        %v4583 = vmul.f32 %v4573, %v4531
        %v4584 = vmul.f32 %v4573, %v4532
        %v4585 = vmul.f32 %v4573, %v4533
        %v4586 = vmul.f32 %v4573, %v4534
        %v4587 = vmul.f32 %v4573, %v4535
        %v4588 = vmul.f32 %v4573, %v4536
        %v4589 = vmul.f32 %v4573, %v4537
        %v4590 = vmul.f32 %v4573, %v4538
        %v4591 = vmul.f32 %v4573, %v4539
        %v4592 = vmul.f32 %v4573, %v4540
        %v4593 = vmul.f32 %v4573, %v4541
        %v4594 = vsub.f32 %v4553, %v4574
        %v4595 = vsub.f32 %v4554, %v4575
        %v4596 = vsub.f32 %v4555, %v4576
        %v4597 = vsub.f32 %v4556, %v4577
        %v4598 = vsub.f32 %v4557, %v4578
        %v4599 = vsub.f32 %v4558, %v4579
        %v4600 = vsub.f32 %v4559, %v4580
        %v4601 = vsub.f32 %v4560, %v4581
        %v4602 = vsub.f32 %v4561, %v4582
        %v4603 = vsub.f32 %v4562, %v4583
        %v4604 = vsub.f32 %v4563, %v4584
        %v4605 = vsub.f32 %v4564, %v4585
        %v4606 = vsub.f32 %v4565, %v4586
        %v4607 = vsub.f32 %v4566, %v4587
        %v4608 = vsub.f32 %v4567, %v4588
        %v4609 = vsub.f32 %v4568, %v4589
        %v4610 = vsub.f32 %v4569, %v4590
        %v4611 = vsub.f32 %v4570, %v4591
        %v4612 = vsub.f32 %v4571, %v4592
        %v4613 = vsub.f32 %v4572, %v4593
        %v4634 = vrot.slane %v4594, 2
        %v4635 = vrot.slane %v4596, 2
        %v4636 = vsel %vm4135, %v4634, %v4635
        %v4637 = vrot.slane %v4595, 2
        %v4638 = vrot.slane %v4597, 2
        %v4639 = vsel %vm4135, %v4637, %v4638
        %v4640 = vrot.slane %v4598, 2
        %v4641 = vrot.slane %v4600, 2
        %v4642 = vsel %vm4135, %v4640, %v4641
        %v4643 = vrot.slane %v4599, 2
        %v4644 = vrot.slane %v4601, 2
        %v4645 = vsel %vm4135, %v4643, %v4644
        %v4646 = vrot.slane %v4602, 2
        %v4647 = vrot.slane %v4604, 2
        %v4648 = vsel %vm4135, %v4646, %v4647
        %v4649 = vrot.slane %v4603, 2
        %v4650 = vrot.slane %v4605, 2
        %v4651 = vsel %vm4135, %v4649, %v4650
        %v4652 = vrot.slane %v4606, 2
        %v4653 = vrot.slane %v4608, 2
        %v4654 = vsel %vm4135, %v4652, %v4653
        %v4655 = vrot.slane %v4607, 2
        %v4656 = vrot.slane %v4609, 2
        %v4657 = vsel %vm4135, %v4655, %v4656
        %v4658 = vrot.slane %v4610, 2
        %v4659 = vrot.slane %v4612, 2
        %v4660 = vsel %vm4135, %v4658, %v4659
        %v4661 = vrot.slane %v4611, 2
        %v4662 = vrot.slane %v4613, 2
        %v4663 = vsel %vm4135, %v4661, %v4662
        %4664 = vrot.lane.b32.xlu0 %v4636, 127
        %v4665 = vpop.permute.xlu0 %4664
        %4666 = vrot.lane.b32.xlu0 %v4639, 127
        %v4667 = vpop.permute.xlu0 %4666
        %4668 = vrot.lane.b32.xlu0 %v4642, 127
        %v4669 = vpop.permute.xlu0 %4668
        %4670 = vrot.lane.b32.xlu0 %v4645, 127
        %v4671 = vpop.permute.xlu0 %4670
        %4672 = vrot.lane.b32.xlu0 %v4648, 127
        %v4673 = vpop.permute.xlu0 %4672
        %4674 = vrot.lane.b32.xlu0 %v4651, 127
        %v4675 = vpop.permute.xlu0 %4674
        %4676 = vrot.lane.b32.xlu0 %v4654, 127
        %v4677 = vpop.permute.xlu0 %4676
        %4678 = vrot.lane.b32.xlu0 %v4657, 127
        %v4679 = vpop.permute.xlu0 %4678
        %4680 = vrot.lane.b32.xlu0 %v4660, 127
        %v4681 = vpop.permute.xlu0 %4680
        %4682 = vrot.lane.b32.xlu0 %v4663, 127
        %v4683 = vpop.permute.xlu0 %4682
        %v4684 = vsel %vm950, %v4665, %v4667
        %v4685 = vsel %vm950, %v4669, %v4671
        %v4686 = vsel %vm950, %v4673, %v4675
        %v4687 = vsel %vm950, %v4677, %v4679
        %v4688 = vsel %vm950, %v4681, %v4683
        %v4694 = vadd.f32 %v4424, %v4684
        %v4695 = vadd.f32 %v4425, %v4685
        %v4696 = vadd.f32 %v4426, %v4686
        %v4697 = vadd.f32 %v4427, %v4687
        %v4698 = vadd.f32 %v4428, %v4688
        %v4699 = vmul.f32 %v4552, %v4522
        %v4700 = vmul.f32 %v4552, %v4523
        %v4701 = vmul.f32 %v4552, %v4524
        %v4702 = vmul.f32 %v4552, %v4525
        %v4703 = vmul.f32 %v4552, %v4526
        %v4704 = vmul.f32 %v4552, %v4527
        %v4705 = vmul.f32 %v4552, %v4528
        %v4706 = vmul.f32 %v4552, %v4529
        %v4707 = vmul.f32 %v4552, %v4530
        %v4708 = vmul.f32 %v4552, %v4531
        %v4709 = vmul.f32 %v4552, %v4532
        %v4710 = vmul.f32 %v4552, %v4533
        %v4711 = vmul.f32 %v4552, %v4534
        %v4712 = vmul.f32 %v4552, %v4535
        %v4713 = vmul.f32 %v4552, %v4536
        %v4714 = vmul.f32 %v4552, %v4537
        %v4715 = vmul.f32 %v4552, %v4538
        %v4716 = vmul.f32 %v4552, %v4539
        %v4717 = vmul.f32 %v4552, %v4540
        %v4718 = vmul.f32 %v4552, %v4541
        %v4719 = vmul.f32 %v4573, %v4494
        %v4720 = vmul.f32 %v4573, %v4495
        %v4721 = vmul.f32 %v4573, %v4496
        %v4722 = vmul.f32 %v4573, %v4497
        %v4723 = vmul.f32 %v4573, %v4498
        %v4724 = vmul.f32 %v4573, %v4499
        %v4725 = vmul.f32 %v4573, %v4500
        %v4726 = vmul.f32 %v4573, %v4501
        %v4727 = vmul.f32 %v4573, %v4502
        %v4728 = vmul.f32 %v4573, %v4503
        %v4729 = vmul.f32 %v4573, %v4504
        %v4730 = vmul.f32 %v4573, %v4505
        %v4731 = vmul.f32 %v4573, %v4506
        %v4732 = vmul.f32 %v4573, %v4507
        %v4733 = vmul.f32 %v4573, %v4508
        %v4734 = vmul.f32 %v4573, %v4509
        %v4735 = vmul.f32 %v4573, %v4510
        %v4736 = vmul.f32 %v4573, %v4511
        %v4737 = vmul.f32 %v4573, %v4512
        %v4738 = vmul.f32 %v4573, %v4513
        %v4739 = vadd.f32 %v4699, %v4719
        %v4740 = vadd.f32 %v4700, %v4720
        %v4741 = vadd.f32 %v4701, %v4721
        %v4742 = vadd.f32 %v4702, %v4722
        %v4743 = vadd.f32 %v4703, %v4723
        %v4744 = vadd.f32 %v4704, %v4724
        %v4745 = vadd.f32 %v4705, %v4725
        %v4746 = vadd.f32 %v4706, %v4726
        %v4747 = vadd.f32 %v4707, %v4727
        %v4748 = vadd.f32 %v4708, %v4728
        %v4749 = vadd.f32 %v4709, %v4729
        %v4750 = vadd.f32 %v4710, %v4730
        %v4751 = vadd.f32 %v4711, %v4731
        %v4752 = vadd.f32 %v4712, %v4732
        %v4753 = vadd.f32 %v4713, %v4733
        %v4754 = vadd.f32 %v4714, %v4734
        %v4755 = vadd.f32 %v4715, %v4735
        %v4756 = vadd.f32 %v4716, %v4736
        %v4757 = vadd.f32 %v4717, %v4737
        %v4758 = vadd.f32 %v4718, %v4738
        %v4779 = vrot.slane %v4739, 2
        %v4780 = vrot.slane %v4741, 2
        %v4781 = vsel %vm4135, %v4779, %v4780
        %v4782 = vrot.slane %v4740, 2
        %v4783 = vrot.slane %v4742, 2
        %v4784 = vsel %vm4135, %v4782, %v4783
        %v4785 = vrot.slane %v4743, 2
        %v4786 = vrot.slane %v4745, 2
        %v4787 = vsel %vm4135, %v4785, %v4786
        %v4788 = vrot.slane %v4744, 2
        %v4789 = vrot.slane %v4746, 2
        %v4790 = vsel %vm4135, %v4788, %v4789
        %v4791 = vrot.slane %v4747, 2
        %v4792 = vrot.slane %v4749, 2
        %v4793 = vsel %vm4135, %v4791, %v4792
        %v4794 = vrot.slane %v4748, 2
        %v4795 = vrot.slane %v4750, 2
        %v4796 = vsel %vm4135, %v4794, %v4795
        %v4797 = vrot.slane %v4751, 2
        %v4798 = vrot.slane %v4753, 2
        %v4799 = vsel %vm4135, %v4797, %v4798
        %v4800 = vrot.slane %v4752, 2
        %v4801 = vrot.slane %v4754, 2
        %v4802 = vsel %vm4135, %v4800, %v4801
        %v4803 = vrot.slane %v4755, 2
        %v4804 = vrot.slane %v4757, 2
        %v4805 = vsel %vm4135, %v4803, %v4804
        %v4806 = vrot.slane %v4756, 2
        %v4807 = vrot.slane %v4758, 2
        %v4808 = vsel %vm4135, %v4806, %v4807
        %4809 = vrot.lane.b32.xlu0 %v4781, 127
        %v4810 = vpop.permute.xlu0 %4809
        %4811 = vrot.lane.b32.xlu0 %v4784, 127
        %v4812 = vpop.permute.xlu0 %4811
        %4813 = vrot.lane.b32.xlu0 %v4787, 127
        %v4814 = vpop.permute.xlu0 %4813
        %4815 = vrot.lane.b32.xlu0 %v4790, 127
        %v4816 = vpop.permute.xlu0 %4815
        %4817 = vrot.lane.b32.xlu0 %v4793, 127
        %v4818 = vpop.permute.xlu0 %4817
        %4819 = vrot.lane.b32.xlu0 %v4796, 127
        %v4820 = vpop.permute.xlu0 %4819
        %4821 = vrot.lane.b32.xlu0 %v4799, 127
        %v4822 = vpop.permute.xlu0 %4821
        %4823 = vrot.lane.b32.xlu0 %v4802, 127
        %v4824 = vpop.permute.xlu0 %4823
        %4825 = vrot.lane.b32.xlu0 %v4805, 127
        %v4826 = vpop.permute.xlu0 %4825
        %4827 = vrot.lane.b32.xlu0 %v4808, 127
        %v4828 = vpop.permute.xlu0 %4827
        %v4829 = vsel %vm950, %v4810, %v4812
        %v4830 = vsel %vm950, %v4814, %v4816
        %v4831 = vsel %vm950, %v4818, %v4820
        %v4832 = vsel %vm950, %v4822, %v4824
        %v4833 = vsel %vm950, %v4826, %v4828
        %v4839 = vadd.f32 %v4489, %v4829
        %v4840 = vadd.f32 %v4490, %v4830
        %v4841 = vadd.f32 %v4491, %v4831
        %v4842 = vadd.f32 %v4492, %v4832
        %v4843 = vadd.f32 %v4493, %v4833
        %s4844 = sld [smem:[#allocation3 + $0x16]]
        %s4845 = sld [smem:[#allocation7 + $0x16]]
        %v4846 = vstv %s4844
        %v4847 = vmul.f32 %v4846, %v4498
        %v4848 = vmul.f32 %v4846, %v4499
        %v4849 = vmul.f32 %v4846, %v4500
        %v4850 = vmul.f32 %v4846, %v4501
        %v4851 = vmul.f32 %v4846, %v4502
        %v4852 = vmul.f32 %v4846, %v4503
        %v4853 = vmul.f32 %v4846, %v4504
        %v4854 = vmul.f32 %v4846, %v4505
        %v4855 = vmul.f32 %v4846, %v4506
        %v4856 = vmul.f32 %v4846, %v4507
        %v4857 = vmul.f32 %v4846, %v4508
        %v4858 = vmul.f32 %v4846, %v4509
        %v4859 = vmul.f32 %v4846, %v4510
        %v4860 = vmul.f32 %v4846, %v4511
        %v4861 = vmul.f32 %v4846, %v4512
        %v4862 = vmul.f32 %v4846, %v4513
        %v4863 = vmul.f32 %v4846, %v4514
        %v4864 = vmul.f32 %v4846, %v4515
        %v4865 = vmul.f32 %v4846, %v4516
        %v4866 = vmul.f32 %v4846, %v4517
        %v4867 = vstv %s4845
        %v4868 = vmul.f32 %v4867, %v4526
        %v4869 = vmul.f32 %v4867, %v4527
        %v4870 = vmul.f32 %v4867, %v4528
        %v4871 = vmul.f32 %v4867, %v4529
        %v4872 = vmul.f32 %v4867, %v4530
        %v4873 = vmul.f32 %v4867, %v4531
        %v4874 = vmul.f32 %v4867, %v4532
        %v4875 = vmul.f32 %v4867, %v4533
        %v4876 = vmul.f32 %v4867, %v4534
        %v4877 = vmul.f32 %v4867, %v4535
        %v4878 = vmul.f32 %v4867, %v4536
        %v4879 = vmul.f32 %v4867, %v4537
        %v4880 = vmul.f32 %v4867, %v4538
        %v4881 = vmul.f32 %v4867, %v4539
        %v4882 = vmul.f32 %v4867, %v4540
        %v4883 = vmul.f32 %v4867, %v4541
        %v4884 = vmul.f32 %v4867, %v4542
        %v4885 = vmul.f32 %v4867, %v4543
        %v4886 = vmul.f32 %v4867, %v4544
        %v4887 = vmul.f32 %v4867, %v4545
        %v4888 = vsub.f32 %v4847, %v4868
        %v4889 = vsub.f32 %v4848, %v4869
        %v4890 = vsub.f32 %v4849, %v4870
        %v4891 = vsub.f32 %v4850, %v4871
        %v4892 = vsub.f32 %v4851, %v4872
        %v4893 = vsub.f32 %v4852, %v4873
        %v4894 = vsub.f32 %v4853, %v4874
        %v4895 = vsub.f32 %v4854, %v4875
        %v4896 = vsub.f32 %v4855, %v4876
        %v4897 = vsub.f32 %v4856, %v4877
        %v4898 = vsub.f32 %v4857, %v4878
        %v4899 = vsub.f32 %v4858, %v4879
        %v4900 = vsub.f32 %v4859, %v4880
        %v4901 = vsub.f32 %v4860, %v4881
        %v4902 = vsub.f32 %v4861, %v4882
        %v4903 = vsub.f32 %v4862, %v4883
        %v4904 = vsub.f32 %v4863, %v4884
        %v4905 = vsub.f32 %v4864, %v4885
        %v4906 = vsub.f32 %v4865, %v4886
        %v4907 = vsub.f32 %v4866, %v4887
        %v4928 = vrot.slane %v4888, 2
        %v4929 = vrot.slane %v4890, 2
        %v4930 = vsel %vm4135, %v4928, %v4929
        %v4931 = vrot.slane %v4889, 2
        %v4932 = vrot.slane %v4891, 2
        %v4933 = vsel %vm4135, %v4931, %v4932
        %v4934 = vrot.slane %v4892, 2
        %v4935 = vrot.slane %v4894, 2
        %v4936 = vsel %vm4135, %v4934, %v4935
        %v4937 = vrot.slane %v4893, 2
        %v4938 = vrot.slane %v4895, 2
        %v4939 = vsel %vm4135, %v4937, %v4938
        %v4940 = vrot.slane %v4896, 2
        %v4941 = vrot.slane %v4898, 2
        %v4942 = vsel %vm4135, %v4940, %v4941
        %v4943 = vrot.slane %v4897, 2
        %v4944 = vrot.slane %v4899, 2
        %v4945 = vsel %vm4135, %v4943, %v4944
        %v4946 = vrot.slane %v4900, 2
        %v4947 = vrot.slane %v4902, 2
        %v4948 = vsel %vm4135, %v4946, %v4947
        %v4949 = vrot.slane %v4901, 2
        %v4950 = vrot.slane %v4903, 2
        %v4951 = vsel %vm4135, %v4949, %v4950
        %v4952 = vrot.slane %v4904, 2
        %v4953 = vrot.slane %v4906, 2
        %v4954 = vsel %vm4135, %v4952, %v4953
        %v4955 = vrot.slane %v4905, 2
        %v4956 = vrot.slane %v4907, 2
        %v4957 = vsel %vm4135, %v4955, %v4956
        %4958 = vrot.lane.b32.xlu0 %v4930, 127
        %v4959 = vpop.permute.xlu0 %4958
        %4960 = vrot.lane.b32.xlu0 %v4933, 127
        %v4961 = vpop.permute.xlu0 %4960
        %4962 = vrot.lane.b32.xlu0 %v4936, 127
        %v4963 = vpop.permute.xlu0 %4962
        %4964 = vrot.lane.b32.xlu0 %v4939, 127
        %v4965 = vpop.permute.xlu0 %4964
        %4966 = vrot.lane.b32.xlu0 %v4942, 127
        %v4967 = vpop.permute.xlu0 %4966
        %4968 = vrot.lane.b32.xlu0 %v4945, 127
        %v4969 = vpop.permute.xlu0 %4968
        %4970 = vrot.lane.b32.xlu0 %v4948, 127
        %v4971 = vpop.permute.xlu0 %4970
        %4972 = vrot.lane.b32.xlu0 %v4951, 127
        %v4973 = vpop.permute.xlu0 %4972
        %4974 = vrot.lane.b32.xlu0 %v4954, 127
        %v4975 = vpop.permute.xlu0 %4974
        %4976 = vrot.lane.b32.xlu0 %v4957, 127
        %v4977 = vpop.permute.xlu0 %4976
        %v4978 = vsel %vm950, %v4959, %v4961
        %v4979 = vsel %vm950, %v4963, %v4965
        %v4980 = vsel %vm950, %v4967, %v4969
        %v4981 = vsel %vm950, %v4971, %v4973
        %v4982 = vsel %vm950, %v4975, %v4977
        %v4988 = vadd.f32 %v4694, %v4978
        %v4989 = vadd.f32 %v4695, %v4979
        %v4990 = vadd.f32 %v4696, %v4980
        %v4991 = vadd.f32 %v4697, %v4981
        %v4992 = vadd.f32 %v4698, %v4982
        %v4993 = vmul.f32 %v4846, %v4526
        %v4994 = vmul.f32 %v4846, %v4527
        %v4995 = vmul.f32 %v4846, %v4528
        %v4996 = vmul.f32 %v4846, %v4529
        %v4997 = vmul.f32 %v4846, %v4530
        %v4998 = vmul.f32 %v4846, %v4531
        %v4999 = vmul.f32 %v4846, %v4532
        %v5000 = vmul.f32 %v4846, %v4533
        %v5001 = vmul.f32 %v4846, %v4534
        %v5002 = vmul.f32 %v4846, %v4535
        %v5003 = vmul.f32 %v4846, %v4536
        %v5004 = vmul.f32 %v4846, %v4537
        %v5005 = vmul.f32 %v4846, %v4538
        %v5006 = vmul.f32 %v4846, %v4539
        %v5007 = vmul.f32 %v4846, %v4540
        %v5008 = vmul.f32 %v4846, %v4541
        %v5009 = vmul.f32 %v4846, %v4542
        %v5010 = vmul.f32 %v4846, %v4543
        %v5011 = vmul.f32 %v4846, %v4544
        %v5012 = vmul.f32 %v4846, %v4545
        %v5013 = vmul.f32 %v4867, %v4498
        %v5014 = vmul.f32 %v4867, %v4499
        %v5015 = vmul.f32 %v4867, %v4500
        %v5016 = vmul.f32 %v4867, %v4501
        %v5017 = vmul.f32 %v4867, %v4502
        %v5018 = vmul.f32 %v4867, %v4503
        %v5019 = vmul.f32 %v4867, %v4504
        %v5020 = vmul.f32 %v4867, %v4505
        %v5021 = vmul.f32 %v4867, %v4506
        %v5022 = vmul.f32 %v4867, %v4507
        %v5023 = vmul.f32 %v4867, %v4508
        %v5024 = vmul.f32 %v4867, %v4509
        %v5025 = vmul.f32 %v4867, %v4510
        %v5026 = vmul.f32 %v4867, %v4511
        %v5027 = vmul.f32 %v4867, %v4512
        %v5028 = vmul.f32 %v4867, %v4513
        %v5029 = vmul.f32 %v4867, %v4514
        %v5030 = vmul.f32 %v4867, %v4515
        %v5031 = vmul.f32 %v4867, %v4516
        %v5032 = vmul.f32 %v4867, %v4517
        %v5033 = vadd.f32 %v4993, %v5013
        %v5034 = vadd.f32 %v4994, %v5014
        %v5035 = vadd.f32 %v4995, %v5015
        %v5036 = vadd.f32 %v4996, %v5016
        %v5037 = vadd.f32 %v4997, %v5017
        %v5038 = vadd.f32 %v4998, %v5018
        %v5039 = vadd.f32 %v4999, %v5019
        %v5040 = vadd.f32 %v5000, %v5020
        %v5041 = vadd.f32 %v5001, %v5021
        %v5042 = vadd.f32 %v5002, %v5022
        %v5043 = vadd.f32 %v5003, %v5023
        %v5044 = vadd.f32 %v5004, %v5024
        %v5045 = vadd.f32 %v5005, %v5025
        %v5046 = vadd.f32 %v5006, %v5026
        %v5047 = vadd.f32 %v5007, %v5027
        %v5048 = vadd.f32 %v5008, %v5028
        %v5049 = vadd.f32 %v5009, %v5029
        %v5050 = vadd.f32 %v5010, %v5030
        %v5051 = vadd.f32 %v5011, %v5031
        %v5052 = vadd.f32 %v5012, %v5032
        %v5073 = vrot.slane %v5033, 2
        %v5074 = vrot.slane %v5035, 2
        %v5075 = vsel %vm4135, %v5073, %v5074
        %v5076 = vrot.slane %v5034, 2
        %v5077 = vrot.slane %v5036, 2
        %v5078 = vsel %vm4135, %v5076, %v5077
        %v5079 = vrot.slane %v5037, 2
        %v5080 = vrot.slane %v5039, 2
        %v5081 = vsel %vm4135, %v5079, %v5080
        %v5082 = vrot.slane %v5038, 2
        %v5083 = vrot.slane %v5040, 2
        %v5084 = vsel %vm4135, %v5082, %v5083
        %v5085 = vrot.slane %v5041, 2
        %v5086 = vrot.slane %v5043, 2
        %v5087 = vsel %vm4135, %v5085, %v5086
        %v5088 = vrot.slane %v5042, 2
        %v5089 = vrot.slane %v5044, 2
        %v5090 = vsel %vm4135, %v5088, %v5089
        %v5091 = vrot.slane %v5045, 2
        %v5092 = vrot.slane %v5047, 2
        %v5093 = vsel %vm4135, %v5091, %v5092
        %v5094 = vrot.slane %v5046, 2
        %v5095 = vrot.slane %v5048, 2
        %v5096 = vsel %vm4135, %v5094, %v5095
        %v5097 = vrot.slane %v5049, 2
        %v5098 = vrot.slane %v5051, 2
        %v5099 = vsel %vm4135, %v5097, %v5098
        %v5100 = vrot.slane %v5050, 2
        %v5101 = vrot.slane %v5052, 2
        %v5102 = vsel %vm4135, %v5100, %v5101
        %5103 = vrot.lane.b32.xlu0 %v5075, 127
        %v5104 = vpop.permute.xlu0 %5103
        %5105 = vrot.lane.b32.xlu0 %v5078, 127
        %v5106 = vpop.permute.xlu0 %5105
        %5107 = vrot.lane.b32.xlu0 %v5081, 127
        %v5108 = vpop.permute.xlu0 %5107
        %5109 = vrot.lane.b32.xlu0 %v5084, 127
        %v5110 = vpop.permute.xlu0 %5109
        %5111 = vrot.lane.b32.xlu0 %v5087, 127
        %v5112 = vpop.permute.xlu0 %5111
        %5113 = vrot.lane.b32.xlu0 %v5090, 127
        %v5114 = vpop.permute.xlu0 %5113
        %5115 = vrot.lane.b32.xlu0 %v5093, 127
        %v5116 = vpop.permute.xlu0 %5115
        %5117 = vrot.lane.b32.xlu0 %v5096, 127
        %v5118 = vpop.permute.xlu0 %5117
        %5119 = vrot.lane.b32.xlu0 %v5099, 127
        %v5120 = vpop.permute.xlu0 %5119
        %5121 = vrot.lane.b32.xlu0 %v5102, 127
        %v5122 = vpop.permute.xlu0 %5121
        %v5123 = vsel %vm950, %v5104, %v5106
        %v5124 = vsel %vm950, %v5108, %v5110
        %v5125 = vsel %vm950, %v5112, %v5114
        %v5126 = vsel %vm950, %v5116, %v5118
        %v5127 = vsel %vm950, %v5120, %v5122
        %v5133 = vadd.f32 %v4839, %v5123
        %v5134 = vadd.f32 %v4840, %v5124
        %v5135 = vadd.f32 %v4841, %v5125
        %v5136 = vadd.f32 %v4842, %v5126
        %v5137 = vadd.f32 %v4843, %v5127
        %s5138 = sld [smem:[#allocation3 + $0x17]]
        %s5139 = sld [smem:[#allocation7 + $0x17]]
        %v5140 = vstv %s5138
        %v5141 = vmul.f32 %v5140, %v4502
        %v5142 = vmul.f32 %v5140, %v4503
        %v5143 = vmul.f32 %v5140, %v4504
        %v5144 = vmul.f32 %v5140, %v4505
        %v5145 = vmul.f32 %v5140, %v4506
        %v5146 = vmul.f32 %v5140, %v4507
        %v5147 = vmul.f32 %v5140, %v4508
        %v5148 = vmul.f32 %v5140, %v4509
        %v5149 = vmul.f32 %v5140, %v4510
        %v5150 = vmul.f32 %v5140, %v4511
        %v5151 = vmul.f32 %v5140, %v4512
        %v5152 = vmul.f32 %v5140, %v4513
        %v5153 = vmul.f32 %v5140, %v4514
        %v5154 = vmul.f32 %v5140, %v4515
        %v5155 = vmul.f32 %v5140, %v4516
        %v5156 = vmul.f32 %v5140, %v4517
        %v5157 = vmul.f32 %v5140, %v4518
        %v5158 = vmul.f32 %v5140, %v4519
        %v5159 = vmul.f32 %v5140, %v4520
        %v5160 = vmul.f32 %v5140, %v4521
        %v5161 = vstv %s5139
        %v5162 = vmul.f32 %v5161, %v4530
        %v5163 = vmul.f32 %v5161, %v4531
        %v5164 = vmul.f32 %v5161, %v4532
        %v5165 = vmul.f32 %v5161, %v4533
        %v5166 = vmul.f32 %v5161, %v4534
        %v5167 = vmul.f32 %v5161, %v4535
        %v5168 = vmul.f32 %v5161, %v4536
        %v5169 = vmul.f32 %v5161, %v4537
        %v5170 = vmul.f32 %v5161, %v4538
        %v5171 = vmul.f32 %v5161, %v4539
        %v5172 = vmul.f32 %v5161, %v4540
        %v5173 = vmul.f32 %v5161, %v4541
        %v5174 = vmul.f32 %v5161, %v4542
        %v5175 = vmul.f32 %v5161, %v4543
        %v5176 = vmul.f32 %v5161, %v4544
        %v5177 = vmul.f32 %v5161, %v4545
        %v5178 = vmul.f32 %v5161, %v4546
        %v5179 = vmul.f32 %v5161, %v4547
        %v5180 = vmul.f32 %v5161, %v4548
        %v5181 = vmul.f32 %v5161, %v4549
        %v5182 = vsub.f32 %v5141, %v5162
        %v5183 = vsub.f32 %v5142, %v5163
        %v5184 = vsub.f32 %v5143, %v5164
        %v5185 = vsub.f32 %v5144, %v5165
        %v5186 = vsub.f32 %v5145, %v5166
        %v5187 = vsub.f32 %v5146, %v5167
        %v5188 = vsub.f32 %v5147, %v5168
        %v5189 = vsub.f32 %v5148, %v5169
        %v5190 = vsub.f32 %v5149, %v5170
        %v5191 = vsub.f32 %v5150, %v5171
        %v5192 = vsub.f32 %v5151, %v5172
        %v5193 = vsub.f32 %v5152, %v5173
        %v5194 = vsub.f32 %v5153, %v5174
        %v5195 = vsub.f32 %v5154, %v5175
        %v5196 = vsub.f32 %v5155, %v5176
        %v5197 = vsub.f32 %v5156, %v5177
        %v5198 = vsub.f32 %v5157, %v5178
        %v5199 = vsub.f32 %v5158, %v5179
        %v5200 = vsub.f32 %v5159, %v5180
        %v5201 = vsub.f32 %v5160, %v5181
        %v5222 = vrot.slane %v5182, 2
        %v5223 = vrot.slane %v5184, 2
        %v5224 = vsel %vm4135, %v5222, %v5223
        %v5225 = vrot.slane %v5183, 2
        %v5226 = vrot.slane %v5185, 2
        %v5227 = vsel %vm4135, %v5225, %v5226
        %v5228 = vrot.slane %v5186, 2
        %v5229 = vrot.slane %v5188, 2
        %v5230 = vsel %vm4135, %v5228, %v5229
        %v5231 = vrot.slane %v5187, 2
        %v5232 = vrot.slane %v5189, 2
        %v5233 = vsel %vm4135, %v5231, %v5232
        %v5234 = vrot.slane %v5190, 2
        %v5235 = vrot.slane %v5192, 2
        %v5236 = vsel %vm4135, %v5234, %v5235
        %v5237 = vrot.slane %v5191, 2
        %v5238 = vrot.slane %v5193, 2
        %v5239 = vsel %vm4135, %v5237, %v5238
        %v5240 = vrot.slane %v5194, 2
        %v5241 = vrot.slane %v5196, 2
        %v5242 = vsel %vm4135, %v5240, %v5241
        %v5243 = vrot.slane %v5195, 2
        %v5244 = vrot.slane %v5197, 2
        %v5245 = vsel %vm4135, %v5243, %v5244
        %v5246 = vrot.slane %v5198, 2
        %v5247 = vrot.slane %v5200, 2
        %v5248 = vsel %vm4135, %v5246, %v5247
        %v5249 = vrot.slane %v5199, 2
        %v5250 = vrot.slane %v5201, 2
        %v5251 = vsel %vm4135, %v5249, %v5250
        %5252 = vrot.lane.b32.xlu0 %v5224, 127
        %v5253 = vpop.permute.xlu0 %5252
        %5254 = vrot.lane.b32.xlu0 %v5227, 127
        %v5255 = vpop.permute.xlu0 %5254
        %5256 = vrot.lane.b32.xlu0 %v5230, 127
        %v5257 = vpop.permute.xlu0 %5256
        %5258 = vrot.lane.b32.xlu0 %v5233, 127
        %v5259 = vpop.permute.xlu0 %5258
        %5260 = vrot.lane.b32.xlu0 %v5236, 127
        %v5261 = vpop.permute.xlu0 %5260
        %5262 = vrot.lane.b32.xlu0 %v5239, 127
        %v5263 = vpop.permute.xlu0 %5262
        %5264 = vrot.lane.b32.xlu0 %v5242, 127
        %v5265 = vpop.permute.xlu0 %5264
        %5266 = vrot.lane.b32.xlu0 %v5245, 127
        %v5267 = vpop.permute.xlu0 %5266
        %5268 = vrot.lane.b32.xlu0 %v5248, 127
        %v5269 = vpop.permute.xlu0 %5268
        %5270 = vrot.lane.b32.xlu0 %v5251, 127
        %v5271 = vpop.permute.xlu0 %5270
        %v5272 = vsel %vm950, %v5253, %v5255
        %v5273 = vsel %vm950, %v5257, %v5259
        %v5274 = vsel %vm950, %v5261, %v5263
        %v5275 = vsel %vm950, %v5265, %v5267
        %v5276 = vsel %vm950, %v5269, %v5271
        %v5282 = vadd.f32 %v4988, %v5272
        %v5283 = vadd.f32 %v4989, %v5273
        %v5284 = vadd.f32 %v4990, %v5274
        %v5285 = vadd.f32 %v4991, %v5275
        %v5286 = vadd.f32 %v4992, %v5276
        %v5287 = vmul.f32 %v5140, %v4530
        %v5288 = vmul.f32 %v5140, %v4531
        %v5289 = vmul.f32 %v5140, %v4532
        %v5290 = vmul.f32 %v5140, %v4533
        %v5291 = vmul.f32 %v5140, %v4534
        %v5292 = vmul.f32 %v5140, %v4535
        %v5293 = vmul.f32 %v5140, %v4536
        %v5294 = vmul.f32 %v5140, %v4537
        %v5295 = vmul.f32 %v5140, %v4538
        %v5296 = vmul.f32 %v5140, %v4539
        %v5297 = vmul.f32 %v5140, %v4540
        %v5298 = vmul.f32 %v5140, %v4541
        %v5299 = vmul.f32 %v5140, %v4542
        %v5300 = vmul.f32 %v5140, %v4543
        %v5301 = vmul.f32 %v5140, %v4544
        %v5302 = vmul.f32 %v5140, %v4545
        %v5303 = vmul.f32 %v5140, %v4546
        %v5304 = vmul.f32 %v5140, %v4547
        %v5305 = vmul.f32 %v5140, %v4548
        %v5306 = vmul.f32 %v5140, %v4549
        %v5307 = vmul.f32 %v5161, %v4502
        %v5308 = vmul.f32 %v5161, %v4503
        %v5309 = vmul.f32 %v5161, %v4504
        %v5310 = vmul.f32 %v5161, %v4505
        %v5311 = vmul.f32 %v5161, %v4506
        %v5312 = vmul.f32 %v5161, %v4507
        %v5313 = vmul.f32 %v5161, %v4508
        %v5314 = vmul.f32 %v5161, %v4509
        %v5315 = vmul.f32 %v5161, %v4510
        %v5316 = vmul.f32 %v5161, %v4511
        %v5317 = vmul.f32 %v5161, %v4512
        %v5318 = vmul.f32 %v5161, %v4513
        %v5319 = vmul.f32 %v5161, %v4514
        %v5320 = vmul.f32 %v5161, %v4515
        %v5321 = vmul.f32 %v5161, %v4516
        %v5322 = vmul.f32 %v5161, %v4517
        %v5323 = vmul.f32 %v5161, %v4518
        %v5324 = vmul.f32 %v5161, %v4519
        %v5325 = vmul.f32 %v5161, %v4520
        %v5326 = vmul.f32 %v5161, %v4521
        %v5327 = vadd.f32 %v5287, %v5307
        %v5328 = vadd.f32 %v5288, %v5308
        %v5329 = vadd.f32 %v5289, %v5309
        %v5330 = vadd.f32 %v5290, %v5310
        %v5331 = vadd.f32 %v5291, %v5311
        %v5332 = vadd.f32 %v5292, %v5312
        %v5333 = vadd.f32 %v5293, %v5313
        %v5334 = vadd.f32 %v5294, %v5314
        %v5335 = vadd.f32 %v5295, %v5315
        %v5336 = vadd.f32 %v5296, %v5316
        %v5337 = vadd.f32 %v5297, %v5317
        %v5338 = vadd.f32 %v5298, %v5318
        %v5339 = vadd.f32 %v5299, %v5319
        %v5340 = vadd.f32 %v5300, %v5320
        %v5341 = vadd.f32 %v5301, %v5321
        %v5342 = vadd.f32 %v5302, %v5322
        %v5343 = vadd.f32 %v5303, %v5323
        %v5344 = vadd.f32 %v5304, %v5324
        %v5345 = vadd.f32 %v5305, %v5325
        %v5346 = vadd.f32 %v5306, %v5326
        %v5367 = vrot.slane %v5327, 2
        %v5368 = vrot.slane %v5329, 2
        %v5369 = vsel %vm4135, %v5367, %v5368
        %v5370 = vrot.slane %v5328, 2
        %v5371 = vrot.slane %v5330, 2
        %v5372 = vsel %vm4135, %v5370, %v5371
        %v5373 = vrot.slane %v5331, 2
        %v5374 = vrot.slane %v5333, 2
        %v5375 = vsel %vm4135, %v5373, %v5374
        %v5376 = vrot.slane %v5332, 2
        %v5377 = vrot.slane %v5334, 2
        %v5378 = vsel %vm4135, %v5376, %v5377
        %v5379 = vrot.slane %v5335, 2
        %v5380 = vrot.slane %v5337, 2
        %v5381 = vsel %vm4135, %v5379, %v5380
        %v5382 = vrot.slane %v5336, 2
        %v5383 = vrot.slane %v5338, 2
        %v5384 = vsel %vm4135, %v5382, %v5383
        %v5385 = vrot.slane %v5339, 2
        %v5386 = vrot.slane %v5341, 2
        %v5387 = vsel %vm4135, %v5385, %v5386
        %v5388 = vrot.slane %v5340, 2
        %v5389 = vrot.slane %v5342, 2
        %v5390 = vsel %vm4135, %v5388, %v5389
        %v5391 = vrot.slane %v5343, 2
        %v5392 = vrot.slane %v5345, 2
        %v5393 = vsel %vm4135, %v5391, %v5392
        %v5394 = vrot.slane %v5344, 2
        %v5395 = vrot.slane %v5346, 2
        %v5396 = vsel %vm4135, %v5394, %v5395
        %5397 = vrot.lane.b32.xlu0 %v5369, 127
        %v5398 = vpop.permute.xlu0 %5397
        %5399 = vrot.lane.b32.xlu0 %v5372, 127
        %v5400 = vpop.permute.xlu0 %5399
        %5401 = vrot.lane.b32.xlu0 %v5375, 127
        %v5402 = vpop.permute.xlu0 %5401
        %5403 = vrot.lane.b32.xlu0 %v5378, 127
        %v5404 = vpop.permute.xlu0 %5403
        %5405 = vrot.lane.b32.xlu0 %v5381, 127
        %v5406 = vpop.permute.xlu0 %5405
        %5407 = vrot.lane.b32.xlu0 %v5384, 127
        %v5408 = vpop.permute.xlu0 %5407
        %5409 = vrot.lane.b32.xlu0 %v5387, 127
        %v5410 = vpop.permute.xlu0 %5409
        %5411 = vrot.lane.b32.xlu0 %v5390, 127
        %v5412 = vpop.permute.xlu0 %5411
        %5413 = vrot.lane.b32.xlu0 %v5393, 127
        %v5414 = vpop.permute.xlu0 %5413
        %5415 = vrot.lane.b32.xlu0 %v5396, 127
        %v5416 = vpop.permute.xlu0 %5415
        %v5417 = vsel %vm950, %v5398, %v5400
        %v5418 = vsel %vm950, %v5402, %v5404
        %v5419 = vsel %vm950, %v5406, %v5408
        %v5420 = vsel %vm950, %v5410, %v5412
        %v5421 = vsel %vm950, %v5414, %v5416
        %v5427 = vadd.f32 %v5133, %v5417
        %v5428 = vadd.f32 %v5134, %v5418
        %v5429 = vadd.f32 %v5135, %v5419
        %v5430 = vadd.f32 %v5136, %v5420
        %v5431 = vadd.f32 %v5137, %v5421
        %s5432 = sld [smem:[#allocation3 + $0x18]]
        %s5433 = sld [smem:[#allocation7 + $0x18]]
        %v5434 = vstv %s5432
        %v5435 = vmul.f32 %v5434, %v4494
        %v5436 = vmul.f32 %v5434, %v4495
        %v5437 = vmul.f32 %v5434, %v4496
        %v5438 = vmul.f32 %v5434, %v4497
        %v5439 = vmul.f32 %v5434, %v4498
        %v5440 = vmul.f32 %v5434, %v4499
        %v5441 = vmul.f32 %v5434, %v4500
        %v5442 = vmul.f32 %v5434, %v4501
        %v5443 = vmul.f32 %v5434, %v4502
        %v5444 = vmul.f32 %v5434, %v4503
        %v5445 = vmul.f32 %v5434, %v4504
        %v5446 = vmul.f32 %v5434, %v4505
        %v5447 = vmul.f32 %v5434, %v4506
        %v5448 = vmul.f32 %v5434, %v4507
        %v5449 = vmul.f32 %v5434, %v4508
        %v5450 = vmul.f32 %v5434, %v4509
        %v5451 = vmul.f32 %v5434, %v4510
        %v5452 = vmul.f32 %v5434, %v4511
        %v5453 = vmul.f32 %v5434, %v4512
        %v5454 = vmul.f32 %v5434, %v4513
        %v5455 = vstv %s5433
        %v5456 = vmul.f32 %v5455, %v4522
        %v5457 = vmul.f32 %v5455, %v4523
        %v5458 = vmul.f32 %v5455, %v4524
        %v5459 = vmul.f32 %v5455, %v4525
        %v5460 = vmul.f32 %v5455, %v4526
        %v5461 = vmul.f32 %v5455, %v4527
        %v5462 = vmul.f32 %v5455, %v4528
        %v5463 = vmul.f32 %v5455, %v4529
        %v5464 = vmul.f32 %v5455, %v4530
        %v5465 = vmul.f32 %v5455, %v4531
        %v5466 = vmul.f32 %v5455, %v4532
        %v5467 = vmul.f32 %v5455, %v4533
        %v5468 = vmul.f32 %v5455, %v4534
        %v5469 = vmul.f32 %v5455, %v4535
        %v5470 = vmul.f32 %v5455, %v4536
        %v5471 = vmul.f32 %v5455, %v4537
        %v5472 = vmul.f32 %v5455, %v4538
        %v5473 = vmul.f32 %v5455, %v4539
        %v5474 = vmul.f32 %v5455, %v4540
        %v5475 = vmul.f32 %v5455, %v4541
        %v5476 = vsub.f32 %v5435, %v5456
        %v5477 = vsub.f32 %v5436, %v5457
        %v5478 = vsub.f32 %v5437, %v5458
        %v5479 = vsub.f32 %v5438, %v5459
        %v5480 = vsub.f32 %v5439, %v5460
        %v5481 = vsub.f32 %v5440, %v5461
        %v5482 = vsub.f32 %v5441, %v5462
        %v5483 = vsub.f32 %v5442, %v5463
        %v5484 = vsub.f32 %v5443, %v5464
        %v5485 = vsub.f32 %v5444, %v5465
        %v5486 = vsub.f32 %v5445, %v5466
        %v5487 = vsub.f32 %v5446, %v5467
        %v5488 = vsub.f32 %v5447, %v5468
        %v5489 = vsub.f32 %v5448, %v5469
        %v5490 = vsub.f32 %v5449, %v5470
        %v5491 = vsub.f32 %v5450, %v5471
        %v5492 = vsub.f32 %v5451, %v5472
        %v5493 = vsub.f32 %v5452, %v5473
        %v5494 = vsub.f32 %v5453, %v5474
        %v5495 = vsub.f32 %v5454, %v5475
        %v5516 = vrot.slane %v5476, 2
        %v5517 = vrot.slane %v5478, 2
        %v5518 = vsel %vm4135, %v5516, %v5517
        %v5519 = vrot.slane %v5477, 2
        %v5520 = vrot.slane %v5479, 2
        %v5521 = vsel %vm4135, %v5519, %v5520
        %v5522 = vrot.slane %v5480, 2
        %v5523 = vrot.slane %v5482, 2
        %v5524 = vsel %vm4135, %v5522, %v5523
        %v5525 = vrot.slane %v5481, 2
        %v5526 = vrot.slane %v5483, 2
        %v5527 = vsel %vm4135, %v5525, %v5526
        %v5528 = vrot.slane %v5484, 2
        %v5529 = vrot.slane %v5486, 2
        %v5530 = vsel %vm4135, %v5528, %v5529
        %v5531 = vrot.slane %v5485, 2
        %v5532 = vrot.slane %v5487, 2
        %v5533 = vsel %vm4135, %v5531, %v5532
        %v5534 = vrot.slane %v5488, 2
        %v5535 = vrot.slane %v5490, 2
        %v5536 = vsel %vm4135, %v5534, %v5535
        %v5537 = vrot.slane %v5489, 2
        %v5538 = vrot.slane %v5491, 2
        %v5539 = vsel %vm4135, %v5537, %v5538
        %v5540 = vrot.slane %v5492, 2
        %v5541 = vrot.slane %v5494, 2
        %v5542 = vsel %vm4135, %v5540, %v5541
        %v5543 = vrot.slane %v5493, 2
        %v5544 = vrot.slane %v5495, 2
        %v5545 = vsel %vm4135, %v5543, %v5544
        %5546 = vrot.lane.b32.xlu0 %v5518, 126
        %v5547 = vpop.permute.xlu0 %5546
        %5548 = vrot.lane.b32.xlu0 %v5521, 126
        %v5549 = vpop.permute.xlu0 %5548
        %5550 = vrot.lane.b32.xlu0 %v5524, 126
        %v5551 = vpop.permute.xlu0 %5550
        %5552 = vrot.lane.b32.xlu0 %v5527, 126
        %v5553 = vpop.permute.xlu0 %5552
        %5554 = vrot.lane.b32.xlu0 %v5530, 126
        %v5555 = vpop.permute.xlu0 %5554
        %5556 = vrot.lane.b32.xlu0 %v5533, 126
        %v5557 = vpop.permute.xlu0 %5556
        %5558 = vrot.lane.b32.xlu0 %v5536, 126
        %v5559 = vpop.permute.xlu0 %5558
        %5560 = vrot.lane.b32.xlu0 %v5539, 126
        %v5561 = vpop.permute.xlu0 %5560
        %5562 = vrot.lane.b32.xlu0 %v5542, 126
        %v5563 = vpop.permute.xlu0 %5562
        %5564 = vrot.lane.b32.xlu0 %v5545, 126
        %v5565 = vpop.permute.xlu0 %5564
        %v5566 = vsel %vm1413, %v5547, %v5549
        %v5567 = vsel %vm1413, %v5551, %v5553
        %v5568 = vsel %vm1413, %v5555, %v5557
        %v5569 = vsel %vm1413, %v5559, %v5561
        %v5570 = vsel %vm1413, %v5563, %v5565
        %v5576 = vadd.f32 %v5282, %v5566
        %v5577 = vadd.f32 %v5283, %v5567
        %v5578 = vadd.f32 %v5284, %v5568
        %v5579 = vadd.f32 %v5285, %v5569
        %v5580 = vadd.f32 %v5286, %v5570
        %v5581 = vmul.f32 %v5434, %v4522
        %v5582 = vmul.f32 %v5434, %v4523
        %v5583 = vmul.f32 %v5434, %v4524
        %v5584 = vmul.f32 %v5434, %v4525
        %v5585 = vmul.f32 %v5434, %v4526
        %v5586 = vmul.f32 %v5434, %v4527
        %v5587 = vmul.f32 %v5434, %v4528
        %v5588 = vmul.f32 %v5434, %v4529
        %v5589 = vmul.f32 %v5434, %v4530
        %v5590 = vmul.f32 %v5434, %v4531
        %v5591 = vmul.f32 %v5434, %v4532
        %v5592 = vmul.f32 %v5434, %v4533
        %v5593 = vmul.f32 %v5434, %v4534
        %v5594 = vmul.f32 %v5434, %v4535
        %v5595 = vmul.f32 %v5434, %v4536
        %v5596 = vmul.f32 %v5434, %v4537
        %v5597 = vmul.f32 %v5434, %v4538
        %v5598 = vmul.f32 %v5434, %v4539
        %v5599 = vmul.f32 %v5434, %v4540
        %v5600 = vmul.f32 %v5434, %v4541
        %v5601 = vmul.f32 %v5455, %v4494
        %v5602 = vmul.f32 %v5455, %v4495
        %v5603 = vmul.f32 %v5455, %v4496
        %v5604 = vmul.f32 %v5455, %v4497
        %v5605 = vmul.f32 %v5455, %v4498
        %v5606 = vmul.f32 %v5455, %v4499
        %v5607 = vmul.f32 %v5455, %v4500
        %v5608 = vmul.f32 %v5455, %v4501
        %v5609 = vmul.f32 %v5455, %v4502
        %v5610 = vmul.f32 %v5455, %v4503
        %v5611 = vmul.f32 %v5455, %v4504
        %v5612 = vmul.f32 %v5455, %v4505
        %v5613 = vmul.f32 %v5455, %v4506
        %v5614 = vmul.f32 %v5455, %v4507
        %v5615 = vmul.f32 %v5455, %v4508
        %v5616 = vmul.f32 %v5455, %v4509
        %v5617 = vmul.f32 %v5455, %v4510
        %v5618 = vmul.f32 %v5455, %v4511
        %v5619 = vmul.f32 %v5455, %v4512
        %v5620 = vmul.f32 %v5455, %v4513
        %v5621 = vadd.f32 %v5581, %v5601
        %v5622 = vadd.f32 %v5582, %v5602
        %v5623 = vadd.f32 %v5583, %v5603
        %v5624 = vadd.f32 %v5584, %v5604
        %v5625 = vadd.f32 %v5585, %v5605
        %v5626 = vadd.f32 %v5586, %v5606
        %v5627 = vadd.f32 %v5587, %v5607
        %v5628 = vadd.f32 %v5588, %v5608
        %v5629 = vadd.f32 %v5589, %v5609
        %v5630 = vadd.f32 %v5590, %v5610
        %v5631 = vadd.f32 %v5591, %v5611
        %v5632 = vadd.f32 %v5592, %v5612
        %v5633 = vadd.f32 %v5593, %v5613
        %v5634 = vadd.f32 %v5594, %v5614
        %v5635 = vadd.f32 %v5595, %v5615
        %v5636 = vadd.f32 %v5596, %v5616
        %v5637 = vadd.f32 %v5597, %v5617
        %v5638 = vadd.f32 %v5598, %v5618
        %v5639 = vadd.f32 %v5599, %v5619
        %v5640 = vadd.f32 %v5600, %v5620
        %v5661 = vrot.slane %v5621, 2
        %v5662 = vrot.slane %v5623, 2
        %v5663 = vsel %vm4135, %v5661, %v5662
        %v5664 = vrot.slane %v5622, 2
        %v5665 = vrot.slane %v5624, 2
        %v5666 = vsel %vm4135, %v5664, %v5665
        %v5667 = vrot.slane %v5625, 2
        %v5668 = vrot.slane %v5627, 2
        %v5669 = vsel %vm4135, %v5667, %v5668
        %v5670 = vrot.slane %v5626, 2
        %v5671 = vrot.slane %v5628, 2
        %v5672 = vsel %vm4135, %v5670, %v5671
        %v5673 = vrot.slane %v5629, 2
        %v5674 = vrot.slane %v5631, 2
        %v5675 = vsel %vm4135, %v5673, %v5674
        %v5676 = vrot.slane %v5630, 2
        %v5677 = vrot.slane %v5632, 2
        %v5678 = vsel %vm4135, %v5676, %v5677
        %v5679 = vrot.slane %v5633, 2
        %v5680 = vrot.slane %v5635, 2
        %v5681 = vsel %vm4135, %v5679, %v5680
        %v5682 = vrot.slane %v5634, 2
        %v5683 = vrot.slane %v5636, 2
        %v5684 = vsel %vm4135, %v5682, %v5683
        %v5685 = vrot.slane %v5637, 2
        %v5686 = vrot.slane %v5639, 2
        %v5687 = vsel %vm4135, %v5685, %v5686
        %v5688 = vrot.slane %v5638, 2
        %v5689 = vrot.slane %v5640, 2
        %v5690 = vsel %vm4135, %v5688, %v5689
        %5691 = vrot.lane.b32.xlu0 %v5663, 126
        %v5692 = vpop.permute.xlu0 %5691
        %5693 = vrot.lane.b32.xlu0 %v5666, 126
        %v5694 = vpop.permute.xlu0 %5693
        %5695 = vrot.lane.b32.xlu0 %v5669, 126
        %v5696 = vpop.permute.xlu0 %5695
        %5697 = vrot.lane.b32.xlu0 %v5672, 126
        %v5698 = vpop.permute.xlu0 %5697
        %5699 = vrot.lane.b32.xlu0 %v5675, 126
        %v5700 = vpop.permute.xlu0 %5699
        %5701 = vrot.lane.b32.xlu0 %v5678, 126
        %v5702 = vpop.permute.xlu0 %5701
        %5703 = vrot.lane.b32.xlu0 %v5681, 126
        %v5704 = vpop.permute.xlu0 %5703
        %5705 = vrot.lane.b32.xlu0 %v5684, 126
        %v5706 = vpop.permute.xlu0 %5705
        %5707 = vrot.lane.b32.xlu0 %v5687, 126
        %v5708 = vpop.permute.xlu0 %5707
        %5709 = vrot.lane.b32.xlu0 %v5690, 126
        %v5710 = vpop.permute.xlu0 %5709
        %v5711 = vsel %vm1413, %v5692, %v5694
        %v5712 = vsel %vm1413, %v5696, %v5698
        %v5713 = vsel %vm1413, %v5700, %v5702
        %v5714 = vsel %vm1413, %v5704, %v5706
        %v5715 = vsel %vm1413, %v5708, %v5710
        %v5721 = vadd.f32 %v5427, %v5711
        %v5722 = vadd.f32 %v5428, %v5712
        %v5723 = vadd.f32 %v5429, %v5713
        %v5724 = vadd.f32 %v5430, %v5714
        %v5725 = vadd.f32 %v5431, %v5715
        %s5726 = sld [smem:[#allocation3 + $0x19]]
        %s5727 = sld [smem:[#allocation7 + $0x19]]
        %v5728 = vstv %s5726
        %v5729 = vmul.f32 %v5728, %v4498
        %v5730 = vmul.f32 %v5728, %v4499
        %v5731 = vmul.f32 %v5728, %v4500
        %v5732 = vmul.f32 %v5728, %v4501
        %v5733 = vmul.f32 %v5728, %v4502
        %v5734 = vmul.f32 %v5728, %v4503
        %v5735 = vmul.f32 %v5728, %v4504
        %v5736 = vmul.f32 %v5728, %v4505
        %v5737 = vmul.f32 %v5728, %v4506
        %v5738 = vmul.f32 %v5728, %v4507
        %v5739 = vmul.f32 %v5728, %v4508
        %v5740 = vmul.f32 %v5728, %v4509
        %v5741 = vmul.f32 %v5728, %v4510
        %v5742 = vmul.f32 %v5728, %v4511
        %v5743 = vmul.f32 %v5728, %v4512
        %v5744 = vmul.f32 %v5728, %v4513
        %v5745 = vmul.f32 %v5728, %v4514
        %v5746 = vmul.f32 %v5728, %v4515
        %v5747 = vmul.f32 %v5728, %v4516
        %v5748 = vmul.f32 %v5728, %v4517
        %v5749 = vstv %s5727
        %v5750 = vmul.f32 %v5749, %v4526
        %v5751 = vmul.f32 %v5749, %v4527
        %v5752 = vmul.f32 %v5749, %v4528
        %v5753 = vmul.f32 %v5749, %v4529
        %v5754 = vmul.f32 %v5749, %v4530
        %v5755 = vmul.f32 %v5749, %v4531
        %v5756 = vmul.f32 %v5749, %v4532
        %v5757 = vmul.f32 %v5749, %v4533
        %v5758 = vmul.f32 %v5749, %v4534
        %v5759 = vmul.f32 %v5749, %v4535
        %v5760 = vmul.f32 %v5749, %v4536
        %v5761 = vmul.f32 %v5749, %v4537
        %v5762 = vmul.f32 %v5749, %v4538
        %v5763 = vmul.f32 %v5749, %v4539
        %v5764 = vmul.f32 %v5749, %v4540
        %v5765 = vmul.f32 %v5749, %v4541
        %v5766 = vmul.f32 %v5749, %v4542
        %v5767 = vmul.f32 %v5749, %v4543
        %v5768 = vmul.f32 %v5749, %v4544
        %v5769 = vmul.f32 %v5749, %v4545
        %v5770 = vsub.f32 %v5729, %v5750
        %v5771 = vsub.f32 %v5730, %v5751
        %v5772 = vsub.f32 %v5731, %v5752
        %v5773 = vsub.f32 %v5732, %v5753
        %v5774 = vsub.f32 %v5733, %v5754
        %v5775 = vsub.f32 %v5734, %v5755
        %v5776 = vsub.f32 %v5735, %v5756
        %v5777 = vsub.f32 %v5736, %v5757
        %v5778 = vsub.f32 %v5737, %v5758
        %v5779 = vsub.f32 %v5738, %v5759
        %v5780 = vsub.f32 %v5739, %v5760
        %v5781 = vsub.f32 %v5740, %v5761
        %v5782 = vsub.f32 %v5741, %v5762
        %v5783 = vsub.f32 %v5742, %v5763
        %v5784 = vsub.f32 %v5743, %v5764
        %v5785 = vsub.f32 %v5744, %v5765
        %v5786 = vsub.f32 %v5745, %v5766
        %v5787 = vsub.f32 %v5746, %v5767
        %v5788 = vsub.f32 %v5747, %v5768
        %v5789 = vsub.f32 %v5748, %v5769
        %v5810 = vrot.slane %v5770, 2
        %v5811 = vrot.slane %v5772, 2
        %v5812 = vsel %vm4135, %v5810, %v5811
        %v5813 = vrot.slane %v5771, 2
        %v5814 = vrot.slane %v5773, 2
        %v5815 = vsel %vm4135, %v5813, %v5814
        %v5816 = vrot.slane %v5774, 2
        %v5817 = vrot.slane %v5776, 2
        %v5818 = vsel %vm4135, %v5816, %v5817
        %v5819 = vrot.slane %v5775, 2
        %v5820 = vrot.slane %v5777, 2
        %v5821 = vsel %vm4135, %v5819, %v5820
        %v5822 = vrot.slane %v5778, 2
        %v5823 = vrot.slane %v5780, 2
        %v5824 = vsel %vm4135, %v5822, %v5823
        %v5825 = vrot.slane %v5779, 2
        %v5826 = vrot.slane %v5781, 2
        %v5827 = vsel %vm4135, %v5825, %v5826
        %v5828 = vrot.slane %v5782, 2
        %v5829 = vrot.slane %v5784, 2
        %v5830 = vsel %vm4135, %v5828, %v5829
        %v5831 = vrot.slane %v5783, 2
        %v5832 = vrot.slane %v5785, 2
        %v5833 = vsel %vm4135, %v5831, %v5832
        %v5834 = vrot.slane %v5786, 2
        %v5835 = vrot.slane %v5788, 2
        %v5836 = vsel %vm4135, %v5834, %v5835
        %v5837 = vrot.slane %v5787, 2
        %v5838 = vrot.slane %v5789, 2
        %v5839 = vsel %vm4135, %v5837, %v5838
        %5840 = vrot.lane.b32.xlu0 %v5812, 126
        %v5841 = vpop.permute.xlu0 %5840
        %5842 = vrot.lane.b32.xlu0 %v5815, 126
        %v5843 = vpop.permute.xlu0 %5842
        %5844 = vrot.lane.b32.xlu0 %v5818, 126
        %v5845 = vpop.permute.xlu0 %5844
        %5846 = vrot.lane.b32.xlu0 %v5821, 126
        %v5847 = vpop.permute.xlu0 %5846
        %5848 = vrot.lane.b32.xlu0 %v5824, 126
        %v5849 = vpop.permute.xlu0 %5848
        %5850 = vrot.lane.b32.xlu0 %v5827, 126
        %v5851 = vpop.permute.xlu0 %5850
        %5852 = vrot.lane.b32.xlu0 %v5830, 126
        %v5853 = vpop.permute.xlu0 %5852
        %5854 = vrot.lane.b32.xlu0 %v5833, 126
        %v5855 = vpop.permute.xlu0 %5854
        %5856 = vrot.lane.b32.xlu0 %v5836, 126
        %v5857 = vpop.permute.xlu0 %5856
        %5858 = vrot.lane.b32.xlu0 %v5839, 126
        %v5859 = vpop.permute.xlu0 %5858
        %v5860 = vsel %vm1413, %v5841, %v5843
        %v5861 = vsel %vm1413, %v5845, %v5847
        %v5862 = vsel %vm1413, %v5849, %v5851
        %v5863 = vsel %vm1413, %v5853, %v5855
        %v5864 = vsel %vm1413, %v5857, %v5859
        %v5870 = vadd.f32 %v5576, %v5860
        %v5871 = vadd.f32 %v5577, %v5861
        %v5872 = vadd.f32 %v5578, %v5862
        %v5873 = vadd.f32 %v5579, %v5863
        %v5874 = vadd.f32 %v5580, %v5864
        %v5875 = vmul.f32 %v5728, %v4526
        %v5876 = vmul.f32 %v5728, %v4527
        %v5877 = vmul.f32 %v5728, %v4528
        %v5878 = vmul.f32 %v5728, %v4529
        %v5879 = vmul.f32 %v5728, %v4530
        %v5880 = vmul.f32 %v5728, %v4531
        %v5881 = vmul.f32 %v5728, %v4532
        %v5882 = vmul.f32 %v5728, %v4533
        %v5883 = vmul.f32 %v5728, %v4534
        %v5884 = vmul.f32 %v5728, %v4535
        %v5885 = vmul.f32 %v5728, %v4536
        %v5886 = vmul.f32 %v5728, %v4537
        %v5887 = vmul.f32 %v5728, %v4538
        %v5888 = vmul.f32 %v5728, %v4539
        %v5889 = vmul.f32 %v5728, %v4540
        %v5890 = vmul.f32 %v5728, %v4541
        %v5891 = vmul.f32 %v5728, %v4542
        %v5892 = vmul.f32 %v5728, %v4543
        %v5893 = vmul.f32 %v5728, %v4544
        %v5894 = vmul.f32 %v5728, %v4545
        %v5895 = vmul.f32 %v5749, %v4498
        %v5896 = vmul.f32 %v5749, %v4499
        %v5897 = vmul.f32 %v5749, %v4500
        %v5898 = vmul.f32 %v5749, %v4501
        %v5899 = vmul.f32 %v5749, %v4502
        %v5900 = vmul.f32 %v5749, %v4503
        %v5901 = vmul.f32 %v5749, %v4504
        %v5902 = vmul.f32 %v5749, %v4505
        %v5903 = vmul.f32 %v5749, %v4506
        %v5904 = vmul.f32 %v5749, %v4507
        %v5905 = vmul.f32 %v5749, %v4508
        %v5906 = vmul.f32 %v5749, %v4509
        %v5907 = vmul.f32 %v5749, %v4510
        %v5908 = vmul.f32 %v5749, %v4511
        %v5909 = vmul.f32 %v5749, %v4512
        %v5910 = vmul.f32 %v5749, %v4513
        %v5911 = vmul.f32 %v5749, %v4514
        %v5912 = vmul.f32 %v5749, %v4515
        %v5913 = vmul.f32 %v5749, %v4516
        %v5914 = vmul.f32 %v5749, %v4517
        %v5915 = vadd.f32 %v5875, %v5895
        %v5916 = vadd.f32 %v5876, %v5896
        %v5917 = vadd.f32 %v5877, %v5897
        %v5918 = vadd.f32 %v5878, %v5898
        %v5919 = vadd.f32 %v5879, %v5899
        %v5920 = vadd.f32 %v5880, %v5900
        %v5921 = vadd.f32 %v5881, %v5901
        %v5922 = vadd.f32 %v5882, %v5902
        %v5923 = vadd.f32 %v5883, %v5903
        %v5924 = vadd.f32 %v5884, %v5904
        %v5925 = vadd.f32 %v5885, %v5905
        %v5926 = vadd.f32 %v5886, %v5906
        %v5927 = vadd.f32 %v5887, %v5907
        %v5928 = vadd.f32 %v5888, %v5908
        %v5929 = vadd.f32 %v5889, %v5909
        %v5930 = vadd.f32 %v5890, %v5910
        %v5931 = vadd.f32 %v5891, %v5911
        %v5932 = vadd.f32 %v5892, %v5912
        %v5933 = vadd.f32 %v5893, %v5913
        %v5934 = vadd.f32 %v5894, %v5914
        %v5955 = vrot.slane %v5915, 2
        %v5956 = vrot.slane %v5917, 2
        %v5957 = vsel %vm4135, %v5955, %v5956
        %v5958 = vrot.slane %v5916, 2
        %v5959 = vrot.slane %v5918, 2
        %v5960 = vsel %vm4135, %v5958, %v5959
        %v5961 = vrot.slane %v5919, 2
        %v5962 = vrot.slane %v5921, 2
        %v5963 = vsel %vm4135, %v5961, %v5962
        %v5964 = vrot.slane %v5920, 2
        %v5965 = vrot.slane %v5922, 2
        %v5966 = vsel %vm4135, %v5964, %v5965
        %v5967 = vrot.slane %v5923, 2
        %v5968 = vrot.slane %v5925, 2
        %v5969 = vsel %vm4135, %v5967, %v5968
        %v5970 = vrot.slane %v5924, 2
        %v5971 = vrot.slane %v5926, 2
        %v5972 = vsel %vm4135, %v5970, %v5971
        %v5973 = vrot.slane %v5927, 2
        %v5974 = vrot.slane %v5929, 2
        %v5975 = vsel %vm4135, %v5973, %v5974
        %v5976 = vrot.slane %v5928, 2
        %v5977 = vrot.slane %v5930, 2
        %v5978 = vsel %vm4135, %v5976, %v5977
        %v5979 = vrot.slane %v5931, 2
        %v5980 = vrot.slane %v5933, 2
        %v5981 = vsel %vm4135, %v5979, %v5980
        %v5982 = vrot.slane %v5932, 2
        %v5983 = vrot.slane %v5934, 2
        %v5984 = vsel %vm4135, %v5982, %v5983
        %5985 = vrot.lane.b32.xlu0 %v5957, 126
        %v5986 = vpop.permute.xlu0 %5985
        %5987 = vrot.lane.b32.xlu0 %v5960, 126
        %v5988 = vpop.permute.xlu0 %5987
        %5989 = vrot.lane.b32.xlu0 %v5963, 126
        %v5990 = vpop.permute.xlu0 %5989
        %5991 = vrot.lane.b32.xlu0 %v5966, 126
        %v5992 = vpop.permute.xlu0 %5991
        %5993 = vrot.lane.b32.xlu0 %v5969, 126
        %v5994 = vpop.permute.xlu0 %5993
        %5995 = vrot.lane.b32.xlu0 %v5972, 126
        %v5996 = vpop.permute.xlu0 %5995
        %5997 = vrot.lane.b32.xlu0 %v5975, 126
        %v5998 = vpop.permute.xlu0 %5997
        %5999 = vrot.lane.b32.xlu0 %v5978, 126
        %v6000 = vpop.permute.xlu0 %5999
        %6001 = vrot.lane.b32.xlu0 %v5981, 126
        %v6002 = vpop.permute.xlu0 %6001
        %6003 = vrot.lane.b32.xlu0 %v5984, 126
        %v6004 = vpop.permute.xlu0 %6003
        %v6005 = vsel %vm1413, %v5986, %v5988
        %v6006 = vsel %vm1413, %v5990, %v5992
        %v6007 = vsel %vm1413, %v5994, %v5996
        %v6008 = vsel %vm1413, %v5998, %v6000
        %v6009 = vsel %vm1413, %v6002, %v6004
        %v6015 = vadd.f32 %v5721, %v6005
        %v6016 = vadd.f32 %v5722, %v6006
        %v6017 = vadd.f32 %v5723, %v6007
        %v6018 = vadd.f32 %v5724, %v6008
        %v6019 = vadd.f32 %v5725, %v6009
        %s6020 = sld [smem:[#allocation3 + $0x1a]]
        %s6021 = sld [smem:[#allocation7 + $0x1a]]
        %v6022 = vstv %s6020
        %v6023 = vmul.f32 %v6022, %v4502
        %v6024 = vmul.f32 %v6022, %v4503
        %v6025 = vmul.f32 %v6022, %v4504
        %v6026 = vmul.f32 %v6022, %v4505
        %v6027 = vmul.f32 %v6022, %v4506
        %v6028 = vmul.f32 %v6022, %v4507
        %v6029 = vmul.f32 %v6022, %v4508
        %v6030 = vmul.f32 %v6022, %v4509
        %v6031 = vmul.f32 %v6022, %v4510
        %v6032 = vmul.f32 %v6022, %v4511
        %v6033 = vmul.f32 %v6022, %v4512
        %v6034 = vmul.f32 %v6022, %v4513
        %v6035 = vmul.f32 %v6022, %v4514
        %v6036 = vmul.f32 %v6022, %v4515
        %v6037 = vmul.f32 %v6022, %v4516
        %v6038 = vmul.f32 %v6022, %v4517
        %v6039 = vmul.f32 %v6022, %v4518
        %v6040 = vmul.f32 %v6022, %v4519
        %v6041 = vmul.f32 %v6022, %v4520
        %v6042 = vmul.f32 %v6022, %v4521
        %v6043 = vstv %s6021
        %v6044 = vmul.f32 %v6043, %v4530
        %v6045 = vmul.f32 %v6043, %v4531
        %v6046 = vmul.f32 %v6043, %v4532
        %v6047 = vmul.f32 %v6043, %v4533
        %v6048 = vmul.f32 %v6043, %v4534
        %v6049 = vmul.f32 %v6043, %v4535
        %v6050 = vmul.f32 %v6043, %v4536
        %v6051 = vmul.f32 %v6043, %v4537
        %v6052 = vmul.f32 %v6043, %v4538
        %v6053 = vmul.f32 %v6043, %v4539
        %v6054 = vmul.f32 %v6043, %v4540
        %v6055 = vmul.f32 %v6043, %v4541
        %v6056 = vmul.f32 %v6043, %v4542
        %v6057 = vmul.f32 %v6043, %v4543
        %v6058 = vmul.f32 %v6043, %v4544
        %v6059 = vmul.f32 %v6043, %v4545
        %v6060 = vmul.f32 %v6043, %v4546
        %v6061 = vmul.f32 %v6043, %v4547
        %v6062 = vmul.f32 %v6043, %v4548
        %v6063 = vmul.f32 %v6043, %v4549
        %v6064 = vsub.f32 %v6023, %v6044
        %v6065 = vsub.f32 %v6024, %v6045
        %v6066 = vsub.f32 %v6025, %v6046
        %v6067 = vsub.f32 %v6026, %v6047
        %v6068 = vsub.f32 %v6027, %v6048
        %v6069 = vsub.f32 %v6028, %v6049
        %v6070 = vsub.f32 %v6029, %v6050
        %v6071 = vsub.f32 %v6030, %v6051
        %v6072 = vsub.f32 %v6031, %v6052
        %v6073 = vsub.f32 %v6032, %v6053
        %v6074 = vsub.f32 %v6033, %v6054
        %v6075 = vsub.f32 %v6034, %v6055
        %v6076 = vsub.f32 %v6035, %v6056
        %v6077 = vsub.f32 %v6036, %v6057
        %v6078 = vsub.f32 %v6037, %v6058
        %v6079 = vsub.f32 %v6038, %v6059
        %v6080 = vsub.f32 %v6039, %v6060
        %v6081 = vsub.f32 %v6040, %v6061
        %v6082 = vsub.f32 %v6041, %v6062
        %v6083 = vsub.f32 %v6042, %v6063
        %v6104 = vrot.slane %v6064, 2
        %v6105 = vrot.slane %v6066, 2
        %v6106 = vsel %vm4135, %v6104, %v6105
        %v6107 = vrot.slane %v6065, 2
        %v6108 = vrot.slane %v6067, 2
        %v6109 = vsel %vm4135, %v6107, %v6108
        %v6110 = vrot.slane %v6068, 2
        %v6111 = vrot.slane %v6070, 2
        %v6112 = vsel %vm4135, %v6110, %v6111
        %v6113 = vrot.slane %v6069, 2
        %v6114 = vrot.slane %v6071, 2
        %v6115 = vsel %vm4135, %v6113, %v6114
        %v6116 = vrot.slane %v6072, 2
        %v6117 = vrot.slane %v6074, 2
        %v6118 = vsel %vm4135, %v6116, %v6117
        %v6119 = vrot.slane %v6073, 2
        %v6120 = vrot.slane %v6075, 2
        %v6121 = vsel %vm4135, %v6119, %v6120
        %v6122 = vrot.slane %v6076, 2
        %v6123 = vrot.slane %v6078, 2
        %v6124 = vsel %vm4135, %v6122, %v6123
        %v6125 = vrot.slane %v6077, 2
        %v6126 = vrot.slane %v6079, 2
        %v6127 = vsel %vm4135, %v6125, %v6126
        %v6128 = vrot.slane %v6080, 2
        %v6129 = vrot.slane %v6082, 2
        %v6130 = vsel %vm4135, %v6128, %v6129
        %v6131 = vrot.slane %v6081, 2
        %v6132 = vrot.slane %v6083, 2
        %v6133 = vsel %vm4135, %v6131, %v6132
        %6134 = vrot.lane.b32.xlu0 %v6106, 126
        %v6135 = vpop.permute.xlu0 %6134
        %6136 = vrot.lane.b32.xlu0 %v6109, 126
        %v6137 = vpop.permute.xlu0 %6136
        %6138 = vrot.lane.b32.xlu0 %v6112, 126
        %v6139 = vpop.permute.xlu0 %6138
        %6140 = vrot.lane.b32.xlu0 %v6115, 126
        %v6141 = vpop.permute.xlu0 %6140
        %6142 = vrot.lane.b32.xlu0 %v6118, 126
        %v6143 = vpop.permute.xlu0 %6142
        %6144 = vrot.lane.b32.xlu0 %v6121, 126
        %v6145 = vpop.permute.xlu0 %6144
        %6146 = vrot.lane.b32.xlu0 %v6124, 126
        %v6147 = vpop.permute.xlu0 %6146
        %6148 = vrot.lane.b32.xlu0 %v6127, 126
        %v6149 = vpop.permute.xlu0 %6148
        %6150 = vrot.lane.b32.xlu0 %v6130, 126
        %v6151 = vpop.permute.xlu0 %6150
        %6152 = vrot.lane.b32.xlu0 %v6133, 126
        %v6153 = vpop.permute.xlu0 %6152
        %v6154 = vsel %vm1413, %v6135, %v6137
        %v6155 = vsel %vm1413, %v6139, %v6141
        %v6156 = vsel %vm1413, %v6143, %v6145
        %v6157 = vsel %vm1413, %v6147, %v6149
        %v6158 = vsel %vm1413, %v6151, %v6153
        %v6164 = vadd.f32 %v5870, %v6154
        %v6165 = vadd.f32 %v5871, %v6155
        %v6166 = vadd.f32 %v5872, %v6156
        %v6167 = vadd.f32 %v5873, %v6157
        %v6168 = vadd.f32 %v5874, %v6158
        %v6169 = vmul.f32 %v6022, %v4530
        %v6170 = vmul.f32 %v6022, %v4531
        %v6171 = vmul.f32 %v6022, %v4532
        %v6172 = vmul.f32 %v6022, %v4533
        %v6173 = vmul.f32 %v6022, %v4534
        %v6174 = vmul.f32 %v6022, %v4535
        %v6175 = vmul.f32 %v6022, %v4536
        %v6176 = vmul.f32 %v6022, %v4537
        %v6177 = vmul.f32 %v6022, %v4538
        %v6178 = vmul.f32 %v6022, %v4539
        %v6179 = vmul.f32 %v6022, %v4540
        %v6180 = vmul.f32 %v6022, %v4541
        %v6181 = vmul.f32 %v6022, %v4542
        %v6182 = vmul.f32 %v6022, %v4543
        %v6183 = vmul.f32 %v6022, %v4544
        %v6184 = vmul.f32 %v6022, %v4545
        %v6185 = vmul.f32 %v6022, %v4546
        %v6186 = vmul.f32 %v6022, %v4547
        %v6187 = vmul.f32 %v6022, %v4548
        %v6188 = vmul.f32 %v6022, %v4549
        %v6189 = vmul.f32 %v6043, %v4502
        %v6190 = vmul.f32 %v6043, %v4503
        %v6191 = vmul.f32 %v6043, %v4504
        %v6192 = vmul.f32 %v6043, %v4505
        %v6193 = vmul.f32 %v6043, %v4506
        %v6194 = vmul.f32 %v6043, %v4507
        %v6195 = vmul.f32 %v6043, %v4508
        %v6196 = vmul.f32 %v6043, %v4509
        %v6197 = vmul.f32 %v6043, %v4510
        %v6198 = vmul.f32 %v6043, %v4511
        %v6199 = vmul.f32 %v6043, %v4512
        %v6200 = vmul.f32 %v6043, %v4513
        %v6201 = vmul.f32 %v6043, %v4514
        %v6202 = vmul.f32 %v6043, %v4515
        %v6203 = vmul.f32 %v6043, %v4516
        %v6204 = vmul.f32 %v6043, %v4517
        %v6205 = vmul.f32 %v6043, %v4518
        %v6206 = vmul.f32 %v6043, %v4519
        %v6207 = vmul.f32 %v6043, %v4520
        %v6208 = vmul.f32 %v6043, %v4521
        %v6209 = vadd.f32 %v6169, %v6189
        %v6210 = vadd.f32 %v6170, %v6190
        %v6211 = vadd.f32 %v6171, %v6191
        %v6212 = vadd.f32 %v6172, %v6192
        %v6213 = vadd.f32 %v6173, %v6193
        %v6214 = vadd.f32 %v6174, %v6194
        %v6215 = vadd.f32 %v6175, %v6195
        %v6216 = vadd.f32 %v6176, %v6196
        %v6217 = vadd.f32 %v6177, %v6197
        %v6218 = vadd.f32 %v6178, %v6198
        %v6219 = vadd.f32 %v6179, %v6199
        %v6220 = vadd.f32 %v6180, %v6200
        %v6221 = vadd.f32 %v6181, %v6201
        %v6222 = vadd.f32 %v6182, %v6202
        %v6223 = vadd.f32 %v6183, %v6203
        %v6224 = vadd.f32 %v6184, %v6204
        %v6225 = vadd.f32 %v6185, %v6205
        %v6226 = vadd.f32 %v6186, %v6206
        %v6227 = vadd.f32 %v6187, %v6207
        %v6228 = vadd.f32 %v6188, %v6208
        %v6249 = vrot.slane %v6209, 2
        %v6250 = vrot.slane %v6211, 2
        %v6251 = vsel %vm4135, %v6249, %v6250
        %v6252 = vrot.slane %v6210, 2
        %v6253 = vrot.slane %v6212, 2
        %v6254 = vsel %vm4135, %v6252, %v6253
        %v6255 = vrot.slane %v6213, 2
        %v6256 = vrot.slane %v6215, 2
        %v6257 = vsel %vm4135, %v6255, %v6256
        %v6258 = vrot.slane %v6214, 2
        %v6259 = vrot.slane %v6216, 2
        %v6260 = vsel %vm4135, %v6258, %v6259
        %v6261 = vrot.slane %v6217, 2
        %v6262 = vrot.slane %v6219, 2
        %v6263 = vsel %vm4135, %v6261, %v6262
        %v6264 = vrot.slane %v6218, 2
        %v6265 = vrot.slane %v6220, 2
        %v6266 = vsel %vm4135, %v6264, %v6265
        %v6267 = vrot.slane %v6221, 2
        %v6268 = vrot.slane %v6223, 2
        %v6269 = vsel %vm4135, %v6267, %v6268
        %v6270 = vrot.slane %v6222, 2
        %v6271 = vrot.slane %v6224, 2
        %v6272 = vsel %vm4135, %v6270, %v6271
        %v6273 = vrot.slane %v6225, 2
        %v6274 = vrot.slane %v6227, 2
        %v6275 = vsel %vm4135, %v6273, %v6274
        %v6276 = vrot.slane %v6226, 2
        %v6277 = vrot.slane %v6228, 2
        %v6278 = vsel %vm4135, %v6276, %v6277
        %6279 = vrot.lane.b32.xlu0 %v6251, 126
        %v6280 = vpop.permute.xlu0 %6279
        %6281 = vrot.lane.b32.xlu0 %v6254, 126
        %v6282 = vpop.permute.xlu0 %6281
        %6283 = vrot.lane.b32.xlu0 %v6257, 126
        %v6284 = vpop.permute.xlu0 %6283
        %6285 = vrot.lane.b32.xlu0 %v6260, 126
        %v6286 = vpop.permute.xlu0 %6285
        %6287 = vrot.lane.b32.xlu0 %v6263, 126
        %v6288 = vpop.permute.xlu0 %6287
        %6289 = vrot.lane.b32.xlu0 %v6266, 126
        %v6290 = vpop.permute.xlu0 %6289
        %6291 = vrot.lane.b32.xlu0 %v6269, 126
        %v6292 = vpop.permute.xlu0 %6291
        %6293 = vrot.lane.b32.xlu0 %v6272, 126
        %v6294 = vpop.permute.xlu0 %6293
        %6295 = vrot.lane.b32.xlu0 %v6275, 126
        %v6296 = vpop.permute.xlu0 %6295
        %6297 = vrot.lane.b32.xlu0 %v6278, 126
        %v6298 = vpop.permute.xlu0 %6297
        %v6299 = vsel %vm1413, %v6280, %v6282
        %v6300 = vsel %vm1413, %v6284, %v6286
        %v6301 = vsel %vm1413, %v6288, %v6290
        %v6302 = vsel %vm1413, %v6292, %v6294
        %v6303 = vsel %vm1413, %v6296, %v6298
        %v6309 = vadd.f32 %v6015, %v6299
        %v6310 = vadd.f32 %v6016, %v6300
        %v6311 = vadd.f32 %v6017, %v6301
        %v6312 = vadd.f32 %v6018, %v6302
        %v6313 = vadd.f32 %v6019, %v6303
        %6314 = vst [vmem:[%s478] sm:$0xff] %v6164
        %6315 = vst [vmem:[%s478 + $0x8] sm:$0xff] %v6165
        %6316 = vst [vmem:[%s478 + $0x10] sm:$0xff] %v6166
        %6317 = vst [vmem:[%s478 + $0x18] sm:$0xff] %v6167
        %6318 = vst [vmem:[%s478 + $0x20] sm:$0xff] %v6168
        %s6319 = scalar_lea.vmem %s478, 40 [#allocation14]
        %6320 = vst [vmem:[%s6319] sm:$0xff] %v6309
        %6321 = vst [vmem:[%s6319 + $0x8] sm:$0xff] %v6310
        %6322 = vst [vmem:[%s6319 + $0x10] sm:$0xff] %v6311
        %6323 = vst [vmem:[%s6319 + $0x18] sm:$0xff] %v6312
        %6324 = vst [vmem:[%s6319 + $0x20] sm:$0xff] %v6313
        %s6325 = sand.u32 %s189, 1
        %s6326 = scalar_lea.sflag [#allocation5], %s6325
        %s6327 = sand.u32 %s189, 1
        %s6328 = smul.addr %s6327, 80
        %s6329 = scalar_lea.vmem [#allocation14], %s6328
        // Predicated region
        $region69: #{conv3dc_forward.1} parent=43 // pred_check
          %p6330 = pneg %p199
        $region70: #{conv3dc_forward.1} parent=43 // pred_check_branch
          %6332 = sbr.rel (%p6330) target = $region72
        $region71: #{conv3dc_forward.1} parent=43 // pred_region
          #allocation22 [shape = 'u32[6]{0}', space=smem, size = 0x18, scoped, tag = 'DMA stride descriptor']
          %s6333 = smul.u32 5, %s28
          %s6335 = ssub.s32 1280, 1280
          %6336 = vsyncadd %s6326, %s6335
          %s6337 = smul.addr %s6333, 128
          %s6338 = scalar_lea.hbm %s6, %s6337
          %s6340 = sshll.u32 1, 14
          %s6341 = sxor.u32 4294967295, %s6340
          %s6344 = sshll.u32 7, 18
          %s6345 = sxor.u32 4294967295, %s6344
          %s6346 = sand.u32 0, %s6345
          %s6348 = sor.u32 %s6346, 0
          %s6350 = sshll.u32 3, 24
          %s6351 = sxor.u32 4294967295, %s6350
          %s6352 = sand.u32 %s6348, %s6351
          %s6354 = sor.u32 %s6352, 0
          %s6355 = sshll.u32 %s6329, 4
          %s6356 = int_to_ptr.vmem [resolvable:$true] %s6355
          %6362 = sst [smem:[#allocation22]] 640
          %s6363 = scalar_lea.smem [#allocation22], 1
          %6364 = sst [smem:[%s6363]] 1280
          %s6365 = scalar_lea.smem [#allocation22], 2
          %6366 = sst [smem:[%s6365]] 5
          %s6367 = scalar_lea.smem [#allocation22], 3
          %6368 = sst [smem:[%s6367]] 128
          %s6369 = scalar_lea.smem [#allocation22], 4
          %6370 = sst [smem:[%s6369]] 128
          %s6371 = scalar_lea.smem [#allocation22], 5
          %6372 = sst [smem:[%s6371]] 8
          %6374 = dma.general %s6356, 1280, %s6338, %s6326, [#allocation21], [#allocation22], %s6354, 0
        $region72: #{conv3dc_forward.1} parent=43 // pred_fallthru
          _
      $region44: #{conv3dc_forward.1} parent=5 // pred_fallthru
        _
      %p6375 = scmp.le.s32.totalorder 2, %s23
      // Predicated region
      $region73: #{conv3dc_forward.1} parent=5 // pred_check
        %p6376 = pneg %p6375
      $region74: #{conv3dc_forward.1} parent=5 // pred_check_branch
        %6378 = sbr.rel (%p6376) target = $region76
      $region75: #{conv3dc_forward.1} parent=5 // pred_region
        %s6379 = ssub.s32 %s23, 2
        // Predicated region
        $region77: #{conv3dc_forward.1} parent=75 // pred_check
          %p6380 = pneg %p205
        $region78: #{conv3dc_forward.1} parent=75 // pred_check_branch
          %6382 = sbr.rel (%p6380) target = $region80
        $region79: #{conv3dc_forward.1} parent=75 // pred_region
          %s6383 = sand.u32 %s190, 1
          %s6384 = scalar_lea.sflag [#allocation5], %s6383
          %s6385 = sand.u32 %s190, 1
          %s6386 = smul.addr %s6385, 80
          %s6387 = scalar_lea.vmem [#allocation14], %s6386
          %6388 = dma.done %s6384, 1280
        $region80: #{conv3dc_forward.1} parent=75 // pred_fallthru
          _
      $region76: #{conv3dc_forward.1} parent=5 // pred_fallthru
        _
    $region6: #{conv3dc_forward.1} parent=1 // loop_footer
      %s27 = sadd.s32 1, %s23
    $region7: #{conv3dc_forward.1} parent=1 // loop_footer_branch
      %22 = sbr.rel target = $region3
    $region8: #{conv3dc_forward.1} parent=1 // loop_exit
      _
    %6389 = vsyncpa [#allocation4], 1
    %s6390 = scalar_lea.sflag [#allocation4], 1
    %6391 = vsyncpa %s6390, 1
    %6392 = vsyncpa [#allocation12], 1
    %s6393 = scalar_lea.sflag [#allocation12], 1
    %6394 = vsyncpa %s6393, 1
    %6395 = vsyncpa [#allocation5], 1
    %s6396 = scalar_lea.sflag [#allocation5], 1
    %6397 = vsyncpa %s6396, 1
    %6398 = vsyncpa [#allocation6], 1
    %s6399 = scalar_lea.sflag [#allocation6], 1
    %6400 = vsyncpa %s6399, 1
    %6401 = vsyncpa [#allocation8], 1

</llo_original>
